<compile_context>
chip_gen: v6e
topology: v6e:2x2x1
jax: 0.10.0
libtpu: 0.0.40
codegen_flags: <defaults>
</compile_context>

<pallas_src>
import functools

import jax
import jax.numpy as jnp
from jax import lax
from jax.experimental import pallas as pl
from jax.experimental.pallas import tpu as pltpu

# ---- module hyper-parameters (match PyTorch __init__ defaults, except
#      feature_dim which is shrunk for the small synthetic example) ----------
FEATURE_DIM = 64            # PyTorch default is 2048; small synthetic size
PROJ_DIM = 128
ATT_HIDDEN = 64
TEMPERATURE = 0.1
BASE_TEMPERATURE = 0.07
MAX_SAMPLES = 64
SIM_THRESHOLD = 0.7
LOSS_WEIGHT = 0.1
BN_EPS = 1e-5

# Max number of positive-pair chunks: ceil(64*63/16) = 252, padded to a lane multiple.
K_PAD = 256
# A single row's positives occupy consecutive ranks, so they span at most
# floor((16-1 + 63-1)/16) + 1 = 5 consecutive chunks.
N_SLOTS = 5


def _round_up(x, m):
    return ((x + m - 1) // m) * m


def _tpu_vmem_bytes():
    try:
        info = pltpu.get_tpu_info()
        return int(getattr(info, "vmem_capacity_bytes", 64 << 20))
    except Exception:
        return 64 << 20


def _pick_tile_p(P, cin):
    """Generation-aware pixel tile for kernel 1.

    Budget ~1/4 of physical VMEM for the double-buffered (TILE_P, Cin) x tiles:
    at Cin=2048 this gives TILE_P~1024 on v7x (64 MiB VMEM) and TILE_P~2048 on
    v5e/v6e (128 MiB VMEM)."""
    vmem = _tpu_vmem_bytes()
    budget = vmem // 4
    tp = budget // max(2 * cin * 4, 1)
    tp = int(max(256, min(2048, tp)))
    tp = (tp // 256) * 256
    tp = min(tp, _round_up(P, 256))
    return max(tp, 8), vmem


# ---------------------------------------------------------------------------
# Kernel 1A (tiled over pixels): proj conv1x1 #1 + pixel-attention head +
#                                per-tile BN partial sums
# ---------------------------------------------------------------------------
def _stage1_kernel(x_ref, w1_ref, b1_ref, wa1_ref, ba1_ref, wa2r_ref, ba2_ref,
                   h_ref, att_ref, stat_ref, *, tile_p, n_real):
    i = pl.program_id(0)
    x = x_ref[...]                                                 # (TILE_P, Cin)

    # projection conv1x1 #1; BN/ReLU/conv #2 happen in stage 2 once the batch
    # statistics (a global reduction over all pixels) are known.
    h = jnp.dot(x, w1_ref[...], preferred_element_type=jnp.float32) + b1_ref[...]
    h_ref[...] = h

    # pixel attention: conv1x1 -> ReLU -> conv1x1(64->1) -> sigmoid.
    a = jnp.maximum(
        jnp.dot(x, wa1_ref[...], preferred_element_type=jnp.float32) + ba1_ref[...],
        0.0)
    # final 64->1 projection as a VPU multiply + lane reduce instead of an
    # N=1-output MXU matmul (frees the MXU; output stays (TILE_P, 1)).
    att = jnp.sum(a * wa2r_ref[...], axis=-1, keepdims=True) + ba2_ref[...]
    att_ref[...] = jax.nn.sigmoid(att)

    # per-tile BN partial sums over the real (non-padded) rows only; packed
    # into sublanes 0 (sum) and 1 (sum of squares) of a (1,8,128) tile so the
    # store stays (8,128)-aligned.  XLU reduce work hides under the MXU matmul.
    rowid = i * tile_p + lax.broadcasted_iota(jnp.int32, (tile_p, 1), 0)
    m = (rowid < n_real).astype(jnp.float32)
    hm = h * m
    s = jnp.sum(hm, axis=0, keepdims=True).reshape(1, 1, PROJ_DIM)       # Σ h
    sq = jnp.sum(hm * h, axis=0, keepdims=True).reshape(1, 1, PROJ_DIM)  # Σ h²
    sub = lax.broadcasted_iota(jnp.int32, (1, 8, PROJ_DIM), 1)
    stat_ref[...] = jnp.where(sub == 0, s, jnp.where(sub == 1, sq, 0.0))


# ---------------------------------------------------------------------------
# Kernel 1B (tiled over pixels): BN(scale/shift) -> ReLU -> conv1x1 -> L2 norm
# ---------------------------------------------------------------------------
def _stage2_kernel(h_ref, scale_ref, shift_ref, w2_ref, b2_ref, proj_ref):
    y = jnp.maximum(h_ref[...] * scale_ref[...] + shift_ref[...], 0.0)
    p = jnp.dot(y, w2_ref[...], preferred_element_type=jnp.float32) + b2_ref[...]
    # F.normalize(p=2, dim=-1): 1/max(||p||, 1e-12) via EUP rsqrt.
    ss = jnp.sum(p * p, axis=-1, keepdims=True)
    inv = jnp.minimum(lax.rsqrt(ss), 1e12)
    proj_ref[...] = p * inv


# ---------------------------------------------------------------------------
# Kernel 2: per-image contrastive loss (gridded over batch, "parallel")
# ---------------------------------------------------------------------------
def _contrastive_kernel(cnt_ref, f_ref, w_ref, wt_ref, out_ref):
    b = pl.program_id(0)
    n = cnt_ref[b]                                  # int32: #valid (class==1) samples
    f = f_ref[0]                                    # (N, D)  l2-normalized, zero-padded
    wcol = w_ref[0]                                 # (N, 1)  attention weights (zero-padded)
    wrow = wt_ref[0]                                # (1, N)  same weights, lane-major
    N = f.shape[0]

    row = lax.broadcasted_iota(jnp.int32, (N, N), 0)
    col = lax.broadcasted_iota(jnp.int32, (N, N), 1)
    valid_r = row < n
    valid_c = col < n

    dn = (((1,), (1,)), ((), ()))                   # f @ f.T
    sim = lax.dot_general(f, f, dn, preferred_element_type=jnp.float32) / TEMPERATURE
    pos_mask = (sim > SIM_THRESHOLD) & valid_r & valid_c & (row != col)
    pos_f = pos_mask.astype(jnp.float32)

    # softmax denominator over the n real columns (diagonal included — matches torch).
    # exp without max-subtraction also matches torch; safe since sim <= 1/T = 10.
    exp_sim = jnp.exp(sim)
    denom = jnp.maximum(
        jnp.sum(jnp.where(valid_c, exp_sim, 0.0), axis=1, keepdims=True), 1e-30)
    log_prob = jnp.log(exp_sim / denom + 1e-10)                           # (N, N)

    # pair weights w[r]*w[c]: VPU broadcast outer product (no K=1 MXU matmul).
    wpair = wcol * wrow

    # row-major rank of each positive pair among all positive pairs:
    #   rank[r,c] = (#positives in rows < r) + (#positives in row r with col' < c)
    # The first term uses column counts (== row counts, pos_mask is symmetric)
    # as a VPU/XLU broadcast-reduce; only the second term needs an MXU matmul.
    upper = (row < col).astype(jnp.float32)
    colcnt = jnp.sum(pos_f, axis=0, keepdims=True)                        # (1, N)
    prefix = jnp.sum(jnp.where(row > col, colcnt, 0.0), axis=1, keepdims=True)  # (N,1)
    dnm = (((1,), (0,)), ((), ()))
    within = lax.dot_general(pos_f, upper, dnm, preferred_element_type=jnp.float32)
    rank = prefix + within                                                # exact ints in f32

    # Chunked positive-pair reduction, reproducing the PyTorch broadcasting
    # quirk (chunk,1)*(chunk,) -> (chunk,chunk): each chunk of chunk_size
    # consecutive pairs contributes (sum of pair-weights) * (sum of log-probs).
    cs = jnp.maximum(jnp.minimum(n, 16), 1).astype(jnp.float32)
    cid = jnp.floor(rank / cs)                       # (N,N) chunk id per pair (exact)
    base_f = jnp.floor(prefix / cs)                  # (N,1) first chunk id of each row
    wpair_m = wpair * pos_f
    lp_m = log_prob * pos_f

    # Vectorized segmented sums (no serial 252-iteration loop):
    # a row's positives span at most N_SLOTS consecutive chunks, so build
    # per-row/per-slot partial sums with 2-D ops, scatter them onto a
    # lane-dense (N, K_PAD) chunk grid, and reduce over rows.
    kk = lax.broadcasted_iota(jnp.int32, (N, K_PAD), 1)
    base_i = base_f.astype(jnp.int32)
    off_k = kk - base_i                              # (N, K_PAD) slot offset per chunk id
    t_w = jnp.zeros((N, K_PAD), jnp.float32)
    t_lp = jnp.zeros((N, K_PAD), jnp.float32)
    for s in range(N_SLOTS):                         # static, fully unrolled
        sel = pos_mask & (cid == base_f + s)         # pairs of row r in chunk base[r]+s
        rw = jnp.sum(jnp.where(sel, wpair_m, 0.0), axis=1, keepdims=True)   # (N,1)
        rlp = jnp.sum(jnp.where(sel, lp_m, 0.0), axis=1, keepdims=True)     # (N,1)
        hit = off_k == s                             # (N, K_PAD)
        t_w = t_w + jnp.where(hit, rw, 0.0)
        t_lp = t_lp + jnp.where(hit, rlp, 0.0)
    s_w = jnp.sum(t_w, axis=0, keepdims=True)        # (1, K_PAD) per-chunk weight sums
    s_lp = jnp.sum(t_lp, axis=0, keepdims=True)      # (1, K_PAD) per-chunk log-prob sums
    pair_term = jnp.sum(s_w * s_lp)

    loss_num = -(TEMPERATURE / BASE_TEMPERATURE) * pair_term
    pcnt = jnp.sum(pos_f)
    wsum = jnp.sum(wcol)

    # pack the three per-image scalars into lanes 0..2 of one tiny output row
    # (one small DMA per grid step instead of three 4KB blocks).
    lane = lax.broadcasted_iota(jnp.int32, (1, 1, 128), 2)
    out_ref[...] = jnp.where(lane == 0, loss_num,
                    jnp.where(lane == 1, pcnt,
                     jnp.where(lane == 2, wsum, 0.0)))


# ---------------------------------------------------------------------------
# Parameter init (deterministic, synthetic — shapes from the PyTorch __init__)
# ---------------------------------------------------------------------------
def init_params(key, feature_dim=FEATURE_DIM):
    ks = jax.random.split(key, 8)
    s = 0.05
    w1 = jax.random.normal(ks[0], (feature_dim, PROJ_DIM), jnp.float32) * s
    b1 = jax.random.normal(ks[1], (1, PROJ_DIM), jnp.float32) * s
    gamma = jnp.ones((1, PROJ_DIM), jnp.float32)      # BN affine defaults
    beta = jnp.zeros((1, PROJ_DIM), jnp.float32)
    w2 = jax.random.normal(ks[2], (PROJ_DIM, PROJ_DIM), jnp.float32) * s
    b2 = jax.random.normal(ks[3], (1, PROJ_DIM), jnp.float32) * s
    wa1 = jax.random.normal(ks[4], (feature_dim, ATT_HIDDEN), jnp.float32) * s
    ba1 = jax.random.normal(ks[5], (1, ATT_HIDDEN), jnp.float32) * s
    wa2 = jax.random.normal(ks[6], (ATT_HIDDEN, 1), jnp.float32) * s
    ba2 = jax.random.normal(ks[7], (1, 1), jnp.float32) * s
    return (w1, b1, gamma, beta, w2, b2, wa1, ba1, wa2, ba2)


# ---------------------------------------------------------------------------
# Forward pass (wrapper: reshapes, BN stat folding, label resize, gather = glue)
# ---------------------------------------------------------------------------
def pixel_contrastive_loss(feats_nchw, labels, params):
    # NOTE: the torch `feats.requires_grad` gate has no JAX analogue; training path assumed.
    w1, b1, gamma, beta, w2, b2, wa1, ba1, wa2, ba2 = params
    B, C, H, W = feats_nchw.shape
    P = B * H * W
    TILE_P, vmem = _pick_tile_p(P, C)
    P_pad = _round_up(P, TILE_P)
    n_tiles = P_pad // TILE_P
    vmem_limit = int(min(vmem * 3 // 4, 112 << 20))

    x = jnp.transpose(feats_nchw, (0, 2, 3, 1)).reshape(P, C).astype(jnp.float32)
    if P_pad != P:
        x = jnp.pad(x, ((0, P_pad - P), (0, 0)))

    wa2_row = jnp.transpose(wa2)                       # (1, ATT_HIDDEN) lane-major

    # ---- pass A: conv1x1 #1 + attention head + BN partial sums, pixel-tiled
    h, att, stats = pl.pallas_call(
        functools.partial(_stage1_kernel, tile_p=TILE_P, n_real=P),
        grid=(n_tiles,),
        in_specs=[
            pl.BlockSpec((TILE_P, C), lambda i: (i, 0)),
            pl.BlockSpec((C, PROJ_DIM), lambda i: (0, 0)),
            pl.BlockSpec((1, PROJ_DIM), lambda i: (0, 0)),
            pl.BlockSpec((C, ATT_HIDDEN), lambda i: (0, 0)),
            pl.BlockSpec((1, ATT_HIDDEN), lambda i: (0, 0)),
            pl.BlockSpec((1, ATT_HIDDEN), lambda i: (0, 0)),
            pl.BlockSpec((1, 1), lambda i: (0, 0)),
        ],
        out_specs=(
            pl.BlockSpec((TILE_P, PROJ_DIM), lambda i: (i, 0)),
            pl.BlockSpec((TILE_P, 1), lambda i: (i, 0)),
            pl.BlockSpec((1, 8, PROJ_DIM), lambda i: (i, 0, 0)),
        ),
        out_shape=(jax.ShapeDtypeStruct((P_pad, PROJ_DIM), jnp.float32),
                   jax.ShapeDtypeStruct((P_pad, 1), jnp.float32),
                   jax.ShapeDtypeStruct((n_tiles, 8, PROJ_DIM), jnp.float32)),
        compiler_params=pltpu.CompilerParams(
            dimension_semantics=("parallel",), vmem_limit_bytes=vmem_limit),
    )(x, w1, b1, wa1, ba1, wa2_row, ba2)

    # ---- BN batch statistics (biased var, training-mode forward): only a tiny
    # (n_tiles, 128) reduction of the per-tile partial sums — h is never
    # re-read from HBM.  Folded into scale/shift so pass B stays per-tile.
    sum_h = jnp.sum(stats[:, 0, :], axis=0, keepdims=True)        # (1, 128)
    sumsq_h = jnp.sum(stats[:, 1, :], axis=0, keepdims=True)      # (1, 128)
    mean = sum_h / P
    var = jnp.maximum(sumsq_h / P - mean * mean, 0.0)
    bn_scale = gamma * lax.rsqrt(var + BN_EPS)
    bn_shift = beta - mean * bn_scale

    # ---- pass B: BN + ReLU + conv1x1 + L2-normalize, pixel-tiled
    proj = pl.pallas_call(
        _stage2_kernel,
        grid=(n_tiles,),
        in_specs=[
            pl.BlockSpec((TILE_P, PROJ_DIM), lambda i: (i, 0)),
            pl.BlockSpec((1, PROJ_DIM), lambda i: (0, 0)),
            pl.BlockSpec((1, PROJ_DIM), lambda i: (0, 0)),
            pl.BlockSpec((PROJ_DIM, PROJ_DIM), lambda i: (0, 0)),
            pl.BlockSpec((1, PROJ_DIM), lambda i: (0, 0)),
        ],
        out_specs=pl.BlockSpec((TILE_P, PROJ_DIM), lambda i: (i, 0)),
        out_shape=jax.ShapeDtypeStruct((P_pad, PROJ_DIM), jnp.float32),
        compiler_params=pltpu.CompilerParams(
            dimension_semantics=("parallel",), vmem_limit_bytes=vmem_limit),
    )(h, bn_scale, bn_shift, w2, b2)

    proj = proj[:P].reshape(B, H * W, PROJ_DIM)
    att = att[:P].reshape(B, H * W, 1)

    # F.interpolate(..., mode='nearest') of labels down to the feature resolution.
    Hl, Wl = labels.shape[1], labels.shape[2]
    src_h = jnp.floor(jnp.arange(H) * (Hl / H)).astype(jnp.int32)
    src_w = jnp.floor(jnp.arange(W) * (Wl / W)).astype(jnp.int32)
    tgt = labels[:, src_h[:, None], src_w[None, :]].reshape(B, H * W)

    HW = H * W

    def gather_one(lbl, pf, pw):
        valid = lbl == 1
        count = jnp.sum(valid.astype(jnp.int32))
        # TODO(synk): torch uses randperm subsampling when count > max_samples;
        # here we deterministically keep the first max_samples valid pixels.
        order = jnp.argsort(jnp.where(valid, jnp.arange(HW), HW))
        sel = order[:MAX_SAMPLES]
        n = jnp.minimum(count, MAX_SAMPLES)
        keep = jnp.arange(MAX_SAMPLES) < n
        tf = jnp.where(keep[:, None], pf[sel], 0.0)
        tw = jnp.where(keep[:, None], pw[sel], 0.0)
        return tf, tw, n

    tls_f, tls_w, n_valid = jax.vmap(gather_one)(tgt, proj, att)
    counts = n_valid.astype(jnp.int32)
    tls_w_row = jnp.transpose(tls_w, (0, 2, 1))        # (B, 1, MAX_SAMPLES)

    grid_spec = pltpu.PrefetchScalarGridSpec(
        num_scalar_prefetch=1,
        grid=(B,),
        in_specs=[
            pl.BlockSpec((1, MAX_SAMPLES, PROJ_DIM), lambda b, cnt: (b, 0, 0)),
            pl.BlockSpec((1, MAX_SAMPLES, 1), lambda b, cnt: (b, 0, 0)),
            pl.BlockSpec((1, 1, MAX_SAMPLES), lambda b, cnt: (b, 0, 0)),
        ],
        out_specs=pl.BlockSpec((1, 1, 128), lambda b, cnt: (b, 0, 0)),
    )
    packed = pl.pallas_call(
        _contrastive_kernel,
        grid_spec=grid_spec,
        out_shape=jax.ShapeDtypeStruct((B, 1, 128), jnp.float32),
        compiler_params=pltpu.CompilerParams(
            dimension_semantics=("parallel",), vmem_limit_bytes=vmem_limit),
    )(counts, tls_f, tls_w, tls_w_row)

    loss_num = packed[:, 0, 0]
    pcnt = packed[:, 0, 1]
    wsum = packed[:, 0, 2]

    # torch's per-image "return None" cases -> skip the image.
    valid_img = (n_valid >= 2) & (pcnt > 0) & (wsum != 0)
    safe_wsum = jnp.where(wsum != 0, wsum, 1.0)
    per_image = jnp.where(valid_img, loss_num / safe_wsum, 0.0)
    n_ok = jnp.sum(valid_img.astype(jnp.float32))
    loss = jnp.where(n_ok > 0, jnp.sum(per_image) / n_ok * LOSS_WEIGHT, 0.0)
    return jnp.reshape(loss, (1,))


if __name__ == "__main__":
    key = jax.random.PRNGKey(0)
    k1, k2, k3 = jax.random.split(key, 3)
    B, C, H, W = 2, FEATURE_DIM, 16, 16
    feats = jax.random.normal(k1, (B, C, H, W), jnp.float32)          # NCHW like torch
    labels = (jax.random.uniform(k2, (B, 2 * H, 2 * W)) < 0.15).astype(jnp.int32)
    params = init_params(k3)

    loss = jax.jit(pixel_contrastive_loss)(feats, labels, params)
    loss = jax.block_until_ready(loss)
    assert loss.shape == (1,) and bool(jnp.isfinite(loss).all())
    print("KERNEL_OK")
</pallas_src>

<mosaic_0001>
module attributes {stable_mosaic.version = 11 : i64} {
  func.func @_stage1_kernel(%arg0: i32, %arg1: memref<512x64xf32, #tpu.memory_space<vmem>>, %arg2: memref<64x128xf32, #tpu.memory_space<vmem>>, %arg3: memref<1x128xf32, #tpu.memory_space<vmem>>, %arg4: memref<64x64xf32, #tpu.memory_space<vmem>>, %arg5: memref<1x64xf32, #tpu.memory_space<vmem>>, %arg6: memref<1x64xf32, #tpu.memory_space<vmem>>, %arg7: memref<1x1xf32, #tpu.memory_space<vmem>>, %arg8: memref<512x128xf32, #tpu.memory_space<vmem>>, %arg9: memref<512x1xf32, #tpu.memory_space<vmem>>, %arg10: memref<1x8x128xf32, #tpu.memory_space<vmem>>) attributes {dimension_semantics = [#tpu.dimension_semantics<parallel>], iteration_bounds = array<i64: 1>, scalar_prefetch = 0 : i64, scratch_operands = 0 : i64, tpu.core_type = #tpu.core_type<tc>, window_params = [{transform_indices = @transform_0, window_bounds = array<i64: 512, 64>}, {pipeline_mode = #tpu.pipeline_mode<synchronous>, transform_indices = @transform_1, window_bounds = array<i64: 64, 128>}, {pipeline_mode = #tpu.pipeline_mode<synchronous>, transform_indices = @transform_2, window_bounds = array<i64: 1, 128>}, {pipeline_mode = #tpu.pipeline_mode<synchronous>, transform_indices = @transform_3, window_bounds = array<i64: 64, 64>}, {pipeline_mode = #tpu.pipeline_mode<synchronous>, transform_indices = @transform_4, window_bounds = array<i64: 1, 64>}, {pipeline_mode = #tpu.pipeline_mode<synchronous>, transform_indices = @transform_5, window_bounds = array<i64: 1, 64>}, {pipeline_mode = #tpu.pipeline_mode<synchronous>, transform_indices = @transform_6, window_bounds = array<i64: 1, 1>}, {transform_indices = @transform_7, window_bounds = array<i64: 512, 128>}, {transform_indices = @transform_8, window_bounds = array<i64: 512, 1>}, {transform_indices = @transform_9, window_bounds = array<i64: 1, 8, 128>}]} {
    %c0 = arith.constant 0 : index
    %c0_0 = arith.constant 0 : index
    %0 = vector.load %arg1[%c0, %c0_0] : memref<512x64xf32, #tpu.memory_space<vmem>>, vector<512x64xf32>
    %c0_1 = arith.constant 0 : index
    %c0_2 = arith.constant 0 : index
    %1 = vector.load %arg2[%c0_1, %c0_2] : memref<64x128xf32, #tpu.memory_space<vmem>>, vector<64x128xf32>
    %cst = arith.constant dense<0.000000e+00> : vector<512x128xf32>
    %2 = tpu.matmul %0, %1, %cst {dimension_numbers = #tpu.dot_dimension_numbers<[1], [0], [0], [1], [0, 0, 1, 1], [], []>} : vector<512x64xf32>, vector<64x128xf32>, vector<512x128xf32> -> vector<512x128xf32>
    %c0_3 = arith.constant 0 : index
    %c0_4 = arith.constant 0 : index
    %3 = vector.load %arg3[%c0_3, %c0_4] : memref<1x128xf32, #tpu.memory_space<vmem>>, vector<1x128xf32>
    %4 = vector.broadcast %3 : vector<1x128xf32> to vector<512x128xf32>
    %5 = arith.addf %2, %4 : vector<512x128xf32>
    %c0_5 = arith.constant 0 : index
    %c0_6 = arith.constant 0 : index
    %6 = vector.load %arg8[%c0_5, %c0_6] : memref<512x128xf32, #tpu.memory_space<vmem>>, vector<512x128xf32>
    tpu.vector_store %arg8[%c0_5, %c0_6], %5 {strides = array<i32>} : memref<512x128xf32, #tpu.memory_space<vmem>>, vector<512x128xf32>,
    %c0_7 = arith.constant 0 : index
    %c0_8 = arith.constant 0 : index
    %7 = vector.load %arg4[%c0_7, %c0_8] : memref<64x64xf32, #tpu.memory_space<vmem>>, vector<64x64xf32>
    %cst_9 = arith.constant dense<0.000000e+00> : vector<512x64xf32>
    %8 = tpu.matmul %0, %7, %cst_9 {dimension_numbers = #tpu.dot_dimension_numbers<[1], [0], [0], [1], [0, 0, 1, 1], [], []>} : vector<512x64xf32>, vector<64x64xf32>, vector<512x64xf32> -> vector<512x64xf32>
    %c0_10 = arith.constant 0 : index
    %c0_11 = arith.constant 0 : index
    %9 = vector.load %arg5[%c0_10, %c0_11] : memref<1x64xf32, #tpu.memory_space<vmem>>, vector<1x64xf32>
    %10 = vector.broadcast %9 : vector<1x64xf32> to vector<512x64xf32>
    %11 = arith.addf %8, %10 : vector<512x64xf32>
    %cst_12 = arith.constant 0.000000e+00 : f32
    %12 = vector.broadcast %cst_12 : f32 to vector<512x64xf32>
    %13 = arith.maximumf %11, %12 : vector<512x64xf32>
    %c0_13 = arith.constant 0 : index
    %c0_14 = arith.constant 0 : index
    %14 = vector.load %arg6[%c0_13, %c0_14] : memref<1x64xf32, #tpu.memory_space<vmem>>, vector<1x64xf32>
    %15 = vector.broadcast %14 : vector<1x64xf32> to vector<512x64xf32>
    %16 = arith.mulf %13, %15 : vector<512x64xf32>
    %cst_15 = arith.constant dense<0.000000e+00> : vector<512xf32>
    %17 = vector.multi_reduction <add>, %16, %cst_15 [1] : vector<512x64xf32> to vector<512xf32>
    %18 = vector.shape_cast %17 : vector<512xf32> to vector<512x1xf32>
    %c0_16 = arith.constant 0 : index
    %c0_17 = arith.constant 0 : index
    %19 = vector.load %arg7[%c0_16, %c0_17] : memref<1x1xf32, #tpu.memory_space<vmem>>, vector<1x1xf32>
    %20 = vector.broadcast %19 : vector<1x1xf32> to vector<512x1xf32>
    %21 = arith.addf %18, %20 : vector<512x1xf32>
    %22 = arith.negf %21 : vector<512x1xf32>
    %23 = math.exp %22 : vector<512x1xf32>
    %cst_18 = arith.constant 1.000000e+00 : f32
    %24 = vector.broadcast %cst_18 : f32 to vector<512x1xf32>
    %25 = arith.addf %24, %23 : vector<512x1xf32>
    %26 = arith.divf %24, %25 : vector<512x1xf32>
    %c0_19 = arith.constant 0 : index
    %c0_20 = arith.constant 0 : index
    %27 = vector.load %arg9[%c0_19, %c0_20] : memref<512x1xf32, #tpu.memory_space<vmem>>, vector<512x1xf32>
    tpu.vector_store %arg9[%c0_19, %c0_20], %26 {strides = array<i32>} : memref<512x1xf32, #tpu.memory_space<vmem>>, vector<512x1xf32>,
    %c512_i32 = arith.constant 512 : i32
    %28 = arith.muli %arg0, %c512_i32 : i32
    %29 = tpu.iota {dimensions = array<i32: 0>} : vector<512x1xi32>
    %30 = vector.broadcast %28 : i32 to vector<512x1xi32>
    %31 = arith.addi %30, %29 : vector<512x1xi32>
    %c512_i32_21 = arith.constant 512 : i32
    %32 = vector.broadcast %c512_i32_21 : i32 to vector<512x1xi32>
    %33 = arith.cmpi slt, %31, %32 : vector<512x1xi32>
    %34 = arith.extui %33 : vector<512x1xi1> to vector<512x1xi32>
    %35 = arith.sitofp %34 : vector<512x1xi32> to vector<512x1xf32>
    %36 = vector.broadcast %35 : vector<512x1xf32> to vector<512x128xf32>
    %37 = arith.mulf %5, %36 : vector<512x128xf32>
    %cst_22 = arith.constant dense<0.000000e+00> : vector<128xf32>
    %38 = vector.multi_reduction <add>, %37, %cst_22 [0] : vector<512x128xf32> to vector<128xf32>
    %39 = vector.shape_cast %38 : vector<128xf32> to vector<1x128xf32>
    %40 = vector.shape_cast %39 : vector<1x128xf32> to vector<1x1x128xf32>
    %41 = arith.mulf %37, %5 : vector<512x128xf32>
    %cst_23 = arith.constant dense<0.000000e+00> : vector<128xf32>
    %42 = vector.multi_reduction <add>, %41, %cst_23 [0] : vector<512x128xf32> to vector<128xf32>
    %43 = vector.shape_cast %42 : vector<128xf32> to vector<1x128xf32>
    %44 = vector.shape_cast %43 : vector<1x128xf32> to vector<1x1x128xf32>
    %45 = tpu.iota {dimensions = array<i32: 1>} : vector<1x8x128xi32>
    %c0_i32 = arith.constant 0 : i32
    %46 = vector.broadcast %c0_i32 : i32 to vector<1x8x128xi32>
    %47 = arith.cmpi eq, %45, %46 : vector<1x8x128xi32>
    %c1_i32 = arith.constant 1 : i32
    %48 = vector.broadcast %c1_i32 : i32 to vector<1x8x128xi32>
    %49 = arith.cmpi eq, %45, %48 : vector<1x8x128xi32>
    %cst_24 = arith.constant 0.000000e+00 : f32
    %50 = vector.shape_cast %44 : vector<1x1x128xf32> to vector<1x1x128xf32>
    %51 = vector.broadcast %50 : vector<1x1x128xf32> to vector<1x8x128xf32>
    %52 = vector.broadcast %cst_24 : f32 to vector<1x8x128xf32>
    %53 = arith.select %49, %51, %52 : vector<1x8x128xi1>, vector<1x8x128xf32>
    %54 = vector.shape_cast %40 : vector<1x1x128xf32> to vector<1x1x128xf32>
    %55 = vector.broadcast %54 : vector<1x1x128xf32> to vector<1x8x128xf32>
    %56 = arith.select %47, %55, %53 : vector<1x8x128xi1>, vector<1x8x128xf32>
    %c0_25 = arith.constant 0 : index
    %c0_26 = arith.constant 0 : index
    %c0_27 = arith.constant 0 : index
    %57 = vector.load %arg10[%c0_25, %c0_26, %c0_27] : memref<1x8x128xf32, #tpu.memory_space<vmem>>, vector<1x8x128xf32>
    tpu.vector_store %arg10[%c0_25, %c0_26, %c0_27], %56 {strides = array<i32>} : memref<1x8x128xf32, #tpu.memory_space<vmem>>, vector<1x8x128xf32>,
    return
  }
  func.func @transform_0(%arg0: i32) -> (i32, i32) {
    %c0_i32 = arith.constant 0 : i32
    %c0_i32_0 = arith.constant 0 : i32
    return %arg0, %c0_i32 : i32, i32
  }
  func.func @transform_1(%arg0: i32) -> (i32, i32) {
    %c0_i32 = arith.constant 0 : i32
    %c0_i32_0 = arith.constant 0 : i32
    %c0_i32_1 = arith.constant 0 : i32
    return %c0_i32, %c0_i32_0 : i32, i32
  }
  func.func @transform_2(%arg0: i32) -> (i32, i32) {
    %c0_i32 = arith.constant 0 : i32
    %c0_i32_0 = arith.constant 0 : i32
    %c0_i32_1 = arith.constant 0 : i32
    return %c0_i32, %c0_i32_0 : i32, i32
  }
  func.func @transform_3(%arg0: i32) -> (i32, i32) {
    %c0_i32 = arith.constant 0 : i32
    %c0_i32_0 = arith.constant 0 : i32
    %c0_i32_1 = arith.constant 0 : i32
    return %c0_i32, %c0_i32_0 : i32, i32
  }
  func.func @transform_4(%arg0: i32) -> (i32, i32) {
    %c0_i32 = arith.constant 0 : i32
    %c0_i32_0 = arith.constant 0 : i32
    %c0_i32_1 = arith.constant 0 : i32
    return %c0_i32, %c0_i32_0 : i32, i32
  }
  func.func @transform_5(%arg0: i32) -> (i32, i32) {
    %c0_i32 = arith.constant 0 : i32
    %c0_i32_0 = arith.constant 0 : i32
    %c0_i32_1 = arith.constant 0 : i32
    return %c0_i32, %c0_i32_0 : i32, i32
  }
  func.func @transform_6(%arg0: i32) -> (i32, i32) {
    %c0_i32 = arith.constant 0 : i32
    %c0_i32_0 = arith.constant 0 : i32
    %c0_i32_1 = arith.constant 0 : i32
    return %c0_i32, %c0_i32_0 : i32, i32
  }
  func.func @transform_7(%arg0: i32) -> (i32, i32) {
    %c0_i32 = arith.constant 0 : i32
    %c0_i32_0 = arith.constant 0 : i32
    return %arg0, %c0_i32 : i32, i32
  }
  func.func @transform_8(%arg0: i32) -> (i32, i32) {
    %c0_i32 = arith.constant 0 : i32
    %c0_i32_0 = arith.constant 0 : i32
    return %arg0, %c0_i32 : i32, i32
  }
  func.func @transform_9(%arg0: i32) -> (i32, i32, i32) {
    %c0_i32 = arith.constant 0 : i32
    %c0_i32_0 = arith.constant 0 : i32
    %c0_i32_1 = arith.constant 0 : i32
    return %arg0, %c0_i32, %c0_i32_0 : i32, i32, i32
  }
}

module attributes {stable_mosaic.version = 11 : i64} {
  func.func @_stage2_kernel(%arg0: i32, %arg1: memref<512x128xf32, #tpu.memory_space<vmem>>, %arg2: memref<1x128xf32, #tpu.memory_space<vmem>>, %arg3: memref<1x128xf32, #tpu.memory_space<vmem>>, %arg4: memref<128x128xf32, #tpu.memory_space<vmem>>, %arg5: memref<1x128xf32, #tpu.memory_space<vmem>>, %arg6: memref<512x128xf32, #tpu.memory_space<vmem>>) attributes {dimension_semantics = [#tpu.dimension_semantics<parallel>], iteration_bounds = array<i64: 1>, scalar_prefetch = 0 : i64, scratch_operands = 0 : i64, tpu.core_type = #tpu.core_type<tc>, window_params = [{transform_indices = @transform_0, window_bounds = array<i64: 512, 128>}, {pipeline_mode = #tpu.pipeline_mode<synchronous>, transform_indices = @transform_1, window_bounds = array<i64: 1, 128>}, {pipeline_mode = #tpu.pipeline_mode<synchronous>, transform_indices = @transform_2, window_bounds = array<i64: 1, 128>}, {pipeline_mode = #tpu.pipeline_mode<synchronous>, transform_indices = @transform_3, window_bounds = array<i64: 128, 128>}, {pipeline_mode = #tpu.pipeline_mode<synchronous>, transform_indices = @transform_4, window_bounds = array<i64: 1, 128>}, {transform_indices = @transform_5, window_bounds = array<i64: 512, 128>}]} {
    %c0 = arith.constant 0 : index
    %c0_0 = arith.constant 0 : index
    %0 = vector.load %arg1[%c0, %c0_0] : memref<512x128xf32, #tpu.memory_space<vmem>>, vector<512x128xf32>
    %c0_1 = arith.constant 0 : index
    %c0_2 = arith.constant 0 : index
    %1 = vector.load %arg2[%c0_1, %c0_2] : memref<1x128xf32, #tpu.memory_space<vmem>>, vector<1x128xf32>
    %2 = vector.broadcast %1 : vector<1x128xf32> to vector<512x128xf32>
    %3 = arith.mulf %0, %2 : vector<512x128xf32>
    %c0_3 = arith.constant 0 : index
    %c0_4 = arith.constant 0 : index
    %4 = vector.load %arg3[%c0_3, %c0_4] : memref<1x128xf32, #tpu.memory_space<vmem>>, vector<1x128xf32>
    %5 = vector.broadcast %4 : vector<1x128xf32> to vector<512x128xf32>
    %6 = arith.addf %3, %5 : vector<512x128xf32>
    %cst = arith.constant 0.000000e+00 : f32
    %7 = vector.broadcast %cst : f32 to vector<512x128xf32>
    %8 = arith.maximumf %6, %7 : vector<512x128xf32>
    %c0_5 = arith.constant 0 : index
    %c0_6 = arith.constant 0 : index
    %9 = vector.load %arg4[%c0_5, %c0_6] : memref<128x128xf32, #tpu.memory_space<vmem>>, vector<128x128xf32>
    %cst_7 = arith.constant dense<0.000000e+00> : vector<512x128xf32>
    %10 = tpu.matmul %8, %9, %cst_7 {dimension_numbers = #tpu.dot_dimension_numbers<[1], [0], [0], [1], [0, 0, 1, 1], [], []>} : vector<512x128xf32>, vector<128x128xf32>, vector<512x128xf32> -> vector<512x128xf32>
    %c0_8 = arith.constant 0 : index
    %c0_9 = arith.constant 0 : index
    %11 = vector.load %arg5[%c0_8, %c0_9] : memref<1x128xf32, #tpu.memory_space<vmem>>, vector<1x128xf32>
    %12 = vector.broadcast %11 : vector<1x128xf32> to vector<512x128xf32>
    %13 = arith.addf %10, %12 : vector<512x128xf32>
    %14 = arith.mulf %13, %13 : vector<512x128xf32>
    %cst_10 = arith.constant dense<0.000000e+00> : vector<512xf32>
    %15 = vector.multi_reduction <add>, %14, %cst_10 [1] : vector<512x128xf32> to vector<512xf32>
    %16 = vector.shape_cast %15 : vector<512xf32> to vector<512x1xf32>
    %17 = math.rsqrt %16 : vector<512x1xf32>
    %cst_11 = arith.constant 9.99999995E+11 : f32
    %18 = vector.broadcast %cst_11 : f32 to vector<512x1xf32>
    %19 = arith.minimumf %17, %18 : vector<512x1xf32>
    %20 = vector.broadcast %19 : vector<512x1xf32> to vector<512x128xf32>
    %21 = arith.mulf %13, %20 : vector<512x128xf32>
    %c0_12 = arith.constant 0 : index
    %c0_13 = arith.constant 0 : index
    %22 = vector.load %arg6[%c0_12, %c0_13] : memref<512x128xf32, #tpu.memory_space<vmem>>, vector<512x128xf32>
    tpu.vector_store %arg6[%c0_12, %c0_13], %21 {strides = array<i32>} : memref<512x128xf32, #tpu.memory_space<vmem>>, vector<512x128xf32>,
    return
  }
  func.func @transform_0(%arg0: i32) -> (i32, i32) {
    %c0_i32 = arith.constant 0 : i32
    %c0_i32_0 = arith.constant 0 : i32
    return %arg0, %c0_i32 : i32, i32
  }
  func.func @transform_1(%arg0: i32) -> (i32, i32) {
    %c0_i32 = arith.constant 0 : i32
    %c0_i32_0 = arith.constant 0 : i32
    %c0_i32_1 = arith.constant 0 : i32
    return %c0_i32, %c0_i32_0 : i32, i32
  }
  func.func @transform_2(%arg0: i32) -> (i32, i32) {
    %c0_i32 = arith.constant 0 : i32
    %c0_i32_0 = arith.constant 0 : i32
    %c0_i32_1 = arith.constant 0 : i32
    return %c0_i32, %c0_i32_0 : i32, i32
  }
  func.func @transform_3(%arg0: i32) -> (i32, i32) {
    %c0_i32 = arith.constant 0 : i32
    %c0_i32_0 = arith.constant 0 : i32
    %c0_i32_1 = arith.constant 0 : i32
    return %c0_i32, %c0_i32_0 : i32, i32
  }
  func.func @transform_4(%arg0: i32) -> (i32, i32) {
    %c0_i32 = arith.constant 0 : i32
    %c0_i32_0 = arith.constant 0 : i32
    %c0_i32_1 = arith.constant 0 : i32
    return %c0_i32, %c0_i32_0 : i32, i32
  }
  func.func @transform_5(%arg0: i32) -> (i32, i32) {
    %c0_i32 = arith.constant 0 : i32
    %c0_i32_0 = arith.constant 0 : i32
    return %arg0, %c0_i32 : i32, i32
  }
}

module attributes {stable_mosaic.version = 11 : i64} {
  func.func @_contrastive_kernel(%arg0: i32, %arg1: memref<2xi32, #tpu.memory_space<smem>>, %arg2: memref<1x64x128xf32, #tpu.memory_space<vmem>>, %arg3: memref<1x64x1xf32, #tpu.memory_space<vmem>>, %arg4: memref<1x1x64xf32, #tpu.memory_space<vmem>>, %arg5: memref<1x1x128xf32, #tpu.memory_space<vmem>>) attributes {dimension_semantics = [#tpu.dimension_semantics<parallel>], iteration_bounds = array<i64: 2>, scalar_prefetch = 1 : i64, scratch_operands = 0 : i64, tpu.core_type = #tpu.core_type<tc>, window_params = [{transform_indices = @transform_0, window_bounds = array<i64: 1, 64, 128>}, {transform_indices = @transform_1, window_bounds = array<i64: 1, 64, 1>}, {transform_indices = @transform_2, window_bounds = array<i64: 1, 1, 64>}, {transform_indices = @transform_3, window_bounds = array<i64: 1, 1, 128>}]} {
    %0 = arith.index_cast %arg0 : i32 to index
    %1 = memref.load %arg1[%0] : memref<2xi32, #tpu.memory_space<smem>>
    %c0 = arith.constant 0 : index
    %c0_0 = arith.constant 0 : index
    %c0_1 = arith.constant 0 : index
    %2 = vector.load %arg2[%c0, %c0_0, %c0_1] : memref<1x64x128xf32, #tpu.memory_space<vmem>>, vector<1x64x128xf32>
    %3 = vector.shape_cast %2 : vector<1x64x128xf32> to vector<64x128xf32>
    %c0_2 = arith.constant 0 : index
    %c0_3 = arith.constant 0 : index
    %c0_4 = arith.constant 0 : index
    %4 = vector.load %arg3[%c0_2, %c0_3, %c0_4] : memref<1x64x1xf32, #tpu.memory_space<vmem>>, vector<1x64x1xf32>
    %5 = vector.shape_cast %4 : vector<1x64x1xf32> to vector<64x1xf32>
    %c0_5 = arith.constant 0 : index
    %c0_6 = arith.constant 0 : index
    %c0_7 = arith.constant 0 : index
    %6 = vector.load %arg4[%c0_5, %c0_6, %c0_7] : memref<1x1x64xf32, #tpu.memory_space<vmem>>, vector<1x1x64xf32>
    %7 = vector.shape_cast %6 : vector<1x1x64xf32> to vector<1x64xf32>
    %8 = tpu.iota {dimensions = array<i32: 0>} : vector<64x64xi32>
    %9 = tpu.iota {dimensions = array<i32: 1>} : vector<64x64xi32>
    %10 = vector.broadcast %1 : i32 to vector<64x64xi32>
    %11 = arith.cmpi slt, %8, %10 : vector<64x64xi32>
    %12 = vector.broadcast %1 : i32 to vector<64x64xi32>
    %13 = arith.cmpi slt, %9, %12 : vector<64x64xi32>
    %cst = arith.constant dense<0.000000e+00> : vector<64x64xf32>
    %14 = tpu.matmul %3, %3, %cst {dimension_numbers = #tpu.dot_dimension_numbers<[1], [1], [0], [0], [0, 0, 1, 0], [], []>} : vector<64x128xf32>, vector<64x128xf32>, vector<64x64xf32> -> vector<64x64xf32>
    %cst_8 = arith.constant 1.000000e-01 : f32
    %15 = vector.broadcast %cst_8 : f32 to vector<64x64xf32>
    %16 = arith.divf %14, %15 : vector<64x64xf32>
    %cst_9 = arith.constant 0.699999988 : f32
    %17 = vector.broadcast %cst_9 : f32 to vector<64x64xf32>
    %18 = arith.cmpf ogt, %16, %17 : vector<64x64xf32>
    %19 = arith.andi %18, %11 : vector<64x64xi1>
    %20 = arith.andi %19, %13 : vector<64x64xi1>
    %21 = arith.cmpi ne, %8, %9 : vector<64x64xi32>
    %22 = arith.andi %20, %21 : vector<64x64xi1>
    %23 = arith.extui %22 : vector<64x64xi1> to vector<64x64xi32>
    %24 = arith.sitofp %23 : vector<64x64xi32> to vector<64x64xf32>
    %25 = math.exp %16 : vector<64x64xf32>
    %cst_10 = arith.constant 0.000000e+00 : f32
    %26 = vector.broadcast %cst_10 : f32 to vector<64x64xf32>
    %27 = arith.select %13, %25, %26 : vector<64x64xi1>, vector<64x64xf32>
    %cst_11 = arith.constant dense<0.000000e+00> : vector<64xf32>
    %28 = vector.multi_reduction <add>, %27, %cst_11 [1] : vector<64x64xf32> to vector<64xf32>
    %29 = vector.shape_cast %28 : vector<64xf32> to vector<64x1xf32>
    %cst_12 = arith.constant 1.000000e-30 : f32
    %30 = vector.broadcast %cst_12 : f32 to vector<64x1xf32>
    %31 = arith.maximumf %29, %30 : vector<64x1xf32>
    %32 = vector.broadcast %31 : vector<64x1xf32> to vector<64x64xf32>
    %33 = arith.divf %25, %32 : vector<64x64xf32>
    %cst_13 = arith.constant 1.000000e-10 : f32
    %34 = vector.broadcast %cst_13 : f32 to vector<64x64xf32>
    %35 = arith.addf %33, %34 : vector<64x64xf32>
    %36 = math.log %35 : vector<64x64xf32>
    %37 = vector.broadcast %5 : vector<64x1xf32> to vector<64x64xf32>
    %38 = vector.broadcast %7 : vector<1x64xf32> to vector<64x64xf32>
    %39 = arith.mulf %37, %38 : vector<64x64xf32>
    %40 = arith.cmpi slt, %8, %9 : vector<64x64xi32>
    %41 = arith.extui %40 : vector<64x64xi1> to vector<64x64xi32>
    %42 = arith.sitofp %41 : vector<64x64xi32> to vector<64x64xf32>
    %cst_14 = arith.constant dense<0.000000e+00> : vector<64xf32>
    %43 = vector.multi_reduction <add>, %24, %cst_14 [0] : vector<64x64xf32> to vector<64xf32>
    %44 = vector.shape_cast %43 : vector<64xf32> to vector<1x64xf32>
    %45 = arith.cmpi sgt, %8, %9 : vector<64x64xi32>
    %cst_15 = arith.constant 0.000000e+00 : f32
    %46 = vector.shape_cast %44 : vector<1x64xf32> to vector<1x64xf32>
    %47 = vector.broadcast %46 : vector<1x64xf32> to vector<64x64xf32>
    %48 = vector.broadcast %cst_15 : f32 to vector<64x64xf32>
    %49 = arith.select %45, %47, %48 : vector<64x64xi1>, vector<64x64xf32>
    %cst_16 = arith.constant dense<0.000000e+00> : vector<64xf32>
    %50 = vector.multi_reduction <add>, %49, %cst_16 [1] : vector<64x64xf32> to vector<64xf32>
    %51 = vector.shape_cast %50 : vector<64xf32> to vector<64x1xf32>
    %cst_17 = arith.constant dense<0.000000e+00> : vector<64x64xf32>
    %52 = tpu.matmul %24, %42, %cst_17 {dimension_numbers = #tpu.dot_dimension_numbers<[1], [0], [0], [1], [0, 0, 1, 1], [], []>} : vector<64x64xf32>, vector<64x64xf32>, vector<64x64xf32> -> vector<64x64xf32>
    %53 = vector.broadcast %51 : vector<64x1xf32> to vector<64x64xf32>
    %54 = arith.addf %53, %52 : vector<64x64xf32>
    %c16_i32 = arith.constant 16 : i32
    %55 = arith.minsi %1, %c16_i32 : i32
    %c1_i32 = arith.constant 1 : i32
    %56 = arith.maxsi %55, %c1_i32 : i32
    %57 = arith.sitofp %56 : i32 to f32
    %58 = vector.broadcast %57 : f32 to vector<64x64xf32>
    %59 = arith.divf %54, %58 : vector<64x64xf32>
    %60 = math.floor %59 : vector<64x64xf32>
    %61 = vector.broadcast %57 : f32 to vector<64x1xf32>
    %62 = arith.divf %51, %61 : vector<64x1xf32>
    %63 = math.floor %62 : vector<64x1xf32>
    %64 = arith.mulf %39, %24 : vector<64x64xf32>
    %65 = arith.mulf %36, %24 : vector<64x64xf32>
    %66 = tpu.iota {dimensions = array<i32: 1>} : vector<64x256xi32>
    %67 = arith.fptosi %63 : vector<64x1xf32> to vector<64x1xi32>
    %68 = vector.broadcast %67 : vector<64x1xi32> to vector<64x256xi32>
    %69 = arith.subi %66, %68 : vector<64x256xi32>
    %cst_18 = arith.constant 0.000000e+00 : f32
    %70 = vector.broadcast %cst_18 : f32 to vector<64x256xf32>
    %cst_19 = arith.constant 0.000000e+00 : f32
    %71 = vector.broadcast %cst_19 : f32 to vector<64x256xf32>
    %cst_20 = arith.constant 0.000000e+00 : f32
    %72 = vector.broadcast %cst_20 : f32 to vector<64x1xf32>
    %73 = arith.addf %63, %72 : vector<64x1xf32>
    %74 = vector.broadcast %73 : vector<64x1xf32> to vector<64x64xf32>
    %75 = arith.cmpf oeq, %60, %74 : vector<64x64xf32>
    %76 = arith.andi %22, %75 : vector<64x64xi1>
    %cst_21 = arith.constant 0.000000e+00 : f32
    %77 = vector.broadcast %cst_21 : f32 to vector<64x64xf32>
    %78 = arith.select %76, %64, %77 : vector<64x64xi1>, vector<64x64xf32>
    %cst_22 = arith.constant dense<0.000000e+00> : vector<64xf32>
    %79 = vector.multi_reduction <add>, %78, %cst_22 [1] : vector<64x64xf32> to vector<64xf32>
    %80 = vector.shape_cast %79 : vector<64xf32> to vector<64x1xf32>
    %cst_23 = arith.constant 0.000000e+00 : f32
    %81 = vector.broadcast %cst_23 : f32 to vector<64x64xf32>
    %82 = arith.select %76, %65, %81 : vector<64x64xi1>, vector<64x64xf32>
    %cst_24 = arith.constant dense<0.000000e+00> : vector<64xf32>
    %83 = vector.multi_reduction <add>, %82, %cst_24 [1] : vector<64x64xf32> to vector<64xf32>
    %84 = vector.shape_cast %83 : vector<64xf32> to vector<64x1xf32>
    %c0_i32 = arith.constant 0 : i32
    %85 = vector.broadcast %c0_i32 : i32 to vector<64x256xi32>
    %86 = arith.cmpi eq, %69, %85 : vector<64x256xi32>
    %cst_25 = arith.constant 0.000000e+00 : f32
    %87 = vector.shape_cast %80 : vector<64x1xf32> to vector<64x1xf32>
    %88 = vector.broadcast %87 : vector<64x1xf32> to vector<64x256xf32>
    %89 = vector.broadcast %cst_25 : f32 to vector<64x256xf32>
    %90 = arith.select %86, %88, %89 : vector<64x256xi1>, vector<64x256xf32>
    %91 = arith.addf %70, %90 : vector<64x256xf32>
    %cst_26 = arith.constant 0.000000e+00 : f32
    %92 = vector.shape_cast %84 : vector<64x1xf32> to vector<64x1xf32>
    %93 = vector.broadcast %92 : vector<64x1xf32> to vector<64x256xf32>
    %94 = vector.broadcast %cst_26 : f32 to vector<64x256xf32>
    %95 = arith.select %86, %93, %94 : vector<64x256xi1>, vector<64x256xf32>
    %96 = arith.addf %71, %95 : vector<64x256xf32>
    %cst_27 = arith.constant 1.000000e+00 : f32
    %97 = vector.broadcast %cst_27 : f32 to vector<64x1xf32>
    %98 = arith.addf %63, %97 : vector<64x1xf32>
    %99 = vector.broadcast %98 : vector<64x1xf32> to vector<64x64xf32>
    %100 = arith.cmpf oeq, %60, %99 : vector<64x64xf32>
    %101 = arith.andi %22, %100 : vector<64x64xi1>
    %cst_28 = arith.constant 0.000000e+00 : f32
    %102 = vector.broadcast %cst_28 : f32 to vector<64x64xf32>
    %103 = arith.select %101, %64, %102 : vector<64x64xi1>, vector<64x64xf32>
    %cst_29 = arith.constant dense<0.000000e+00> : vector<64xf32>
    %104 = vector.multi_reduction <add>, %103, %cst_29 [1] : vector<64x64xf32> to vector<64xf32>
    %105 = vector.shape_cast %104 : vector<64xf32> to vector<64x1xf32>
    %cst_30 = arith.constant 0.000000e+00 : f32
    %106 = vector.broadcast %cst_30 : f32 to vector<64x64xf32>
    %107 = arith.select %101, %65, %106 : vector<64x64xi1>, vector<64x64xf32>
    %cst_31 = arith.constant dense<0.000000e+00> : vector<64xf32>
    %108 = vector.multi_reduction <add>, %107, %cst_31 [1] : vector<64x64xf32> to vector<64xf32>
    %109 = vector.shape_cast %108 : vector<64xf32> to vector<64x1xf32>
    %c1_i32_32 = arith.constant 1 : i32
    %110 = vector.broadcast %c1_i32_32 : i32 to vector<64x256xi32>
    %111 = arith.cmpi eq, %69, %110 : vector<64x256xi32>
    %cst_33 = arith.constant 0.000000e+00 : f32
    %112 = vector.shape_cast %105 : vector<64x1xf32> to vector<64x1xf32>
    %113 = vector.broadcast %112 : vector<64x1xf32> to vector<64x256xf32>
    %114 = vector.broadcast %cst_33 : f32 to vector<64x256xf32>
    %115 = arith.select %111, %113, %114 : vector<64x256xi1>, vector<64x256xf32>
    %116 = arith.addf %91, %115 : vector<64x256xf32>
    %cst_34 = arith.constant 0.000000e+00 : f32
    %117 = vector.shape_cast %109 : vector<64x1xf32> to vector<64x1xf32>
    %118 = vector.broadcast %117 : vector<64x1xf32> to vector<64x256xf32>
    %119 = vector.broadcast %cst_34 : f32 to vector<64x256xf32>
    %120 = arith.select %111, %118, %119 : vector<64x256xi1>, vector<64x256xf32>
    %121 = arith.addf %96, %120 : vector<64x256xf32>
    %cst_35 = arith.constant 2.000000e+00 : f32
    %122 = vector.broadcast %cst_35 : f32 to vector<64x1xf32>
    %123 = arith.addf %63, %122 : vector<64x1xf32>
    %124 = vector.broadcast %123 : vector<64x1xf32> to vector<64x64xf32>
    %125 = arith.cmpf oeq, %60, %124 : vector<64x64xf32>
    %126 = arith.andi %22, %125 : vector<64x64xi1>
    %cst_36 = arith.constant 0.000000e+00 : f32
    %127 = vector.broadcast %cst_36 : f32 to vector<64x64xf32>
    %128 = arith.select %126, %64, %127 : vector<64x64xi1>, vector<64x64xf32>
    %cst_37 = arith.constant dense<0.000000e+00> : vector<64xf32>
    %129 = vector.multi_reduction <add>, %128, %cst_37 [1] : vector<64x64xf32> to vector<64xf32>
    %130 = vector.shape_cast %129 : vector<64xf32> to vector<64x1xf32>
    %cst_38 = arith.constant 0.000000e+00 : f32
    %131 = vector.broadcast %cst_38 : f32 to vector<64x64xf32>
    %132 = arith.select %126, %65, %131 : vector<64x64xi1>, vector<64x64xf32>
    %cst_39 = arith.constant dense<0.000000e+00> : vector<64xf32>
    %133 = vector.multi_reduction <add>, %132, %cst_39 [1] : vector<64x64xf32> to vector<64xf32>
    %134 = vector.shape_cast %133 : vector<64xf32> to vector<64x1xf32>
    %c2_i32 = arith.constant 2 : i32
    %135 = vector.broadcast %c2_i32 : i32 to vector<64x256xi32>
    %136 = arith.cmpi eq, %69, %135 : vector<64x256xi32>
    %cst_40 = arith.constant 0.000000e+00 : f32
    %137 = vector.shape_cast %130 : vector<64x1xf32> to vector<64x1xf32>
    %138 = vector.broadcast %137 : vector<64x1xf32> to vector<64x256xf32>
    %139 = vector.broadcast %cst_40 : f32 to vector<64x256xf32>
    %140 = arith.select %136, %138, %139 : vector<64x256xi1>, vector<64x256xf32>
    %141 = arith.addf %116, %140 : vector<64x256xf32>
    %cst_41 = arith.constant 0.000000e+00 : f32
    %142 = vector.shape_cast %134 : vector<64x1xf32> to vector<64x1xf32>
    %143 = vector.broadcast %142 : vector<64x1xf32> to vector<64x256xf32>
    %144 = vector.broadcast %cst_41 : f32 to vector<64x256xf32>
    %145 = arith.select %136, %143, %144 : vector<64x256xi1>, vector<64x256xf32>
    %146 = arith.addf %121, %145 : vector<64x256xf32>
    %cst_42 = arith.constant 3.000000e+00 : f32
    %147 = vector.broadcast %cst_42 : f32 to vector<64x1xf32>
    %148 = arith.addf %63, %147 : vector<64x1xf32>
    %149 = vector.broadcast %148 : vector<64x1xf32> to vector<64x64xf32>
    %150 = arith.cmpf oeq, %60, %149 : vector<64x64xf32>
    %151 = arith.andi %22, %150 : vector<64x64xi1>
    %cst_43 = arith.constant 0.000000e+00 : f32
    %152 = vector.broadcast %cst_43 : f32 to vector<64x64xf32>
    %153 = arith.select %151, %64, %152 : vector<64x64xi1>, vector<64x64xf32>
    %cst_44 = arith.constant dense<0.000000e+00> : vector<64xf32>
    %154 = vector.multi_reduction <add>, %153, %cst_44 [1] : vector<64x64xf32> to vector<64xf32>
    %155 = vector.shape_cast %154 : vector<64xf32> to vector<64x1xf32>
    %cst_45 = arith.constant 0.000000e+00 : f32
    %156 = vector.broadcast %cst_45 : f32 to vector<64x64xf32>
    %157 = arith.select %151, %65, %156 : vector<64x64xi1>, vector<64x64xf32>
    %cst_46 = arith.constant dense<0.000000e+00> : vector<64xf32>
    %158 = vector.multi_reduction <add>, %157, %cst_46 [1] : vector<64x64xf32> to vector<64xf32>
    %159 = vector.shape_cast %158 : vector<64xf32> to vector<64x1xf32>
    %c3_i32 = arith.constant 3 : i32
    %160 = vector.broadcast %c3_i32 : i32 to vector<64x256xi32>
    %161 = arith.cmpi eq, %69, %160 : vector<64x256xi32>
    %cst_47 = arith.constant 0.000000e+00 : f32
    %162 = vector.shape_cast %155 : vector<64x1xf32> to vector<64x1xf32>
    %163 = vector.broadcast %162 : vector<64x1xf32> to vector<64x256xf32>
    %164 = vector.broadcast %cst_47 : f32 to vector<64x256xf32>
    %165 = arith.select %161, %163, %164 : vector<64x256xi1>, vector<64x256xf32>
    %166 = arith.addf %141, %165 : vector<64x256xf32>
    %cst_48 = arith.constant 0.000000e+00 : f32
    %167 = vector.shape_cast %159 : vector<64x1xf32> to vector<64x1xf32>
    %168 = vector.broadcast %167 : vector<64x1xf32> to vector<64x256xf32>
    %169 = vector.broadcast %cst_48 : f32 to vector<64x256xf32>
    %170 = arith.select %161, %168, %169 : vector<64x256xi1>, vector<64x256xf32>
    %171 = arith.addf %146, %170 : vector<64x256xf32>
    %cst_49 = arith.constant 4.000000e+00 : f32
    %172 = vector.broadcast %cst_49 : f32 to vector<64x1xf32>
    %173 = arith.addf %63, %172 : vector<64x1xf32>
    %174 = vector.broadcast %173 : vector<64x1xf32> to vector<64x64xf32>
    %175 = arith.cmpf oeq, %60, %174 : vector<64x64xf32>
    %176 = arith.andi %22, %175 : vector<64x64xi1>
    %cst_50 = arith.constant 0.000000e+00 : f32
    %177 = vector.broadcast %cst_50 : f32 to vector<64x64xf32>
    %178 = arith.select %176, %64, %177 : vector<64x64xi1>, vector<64x64xf32>
    %cst_51 = arith.constant dense<0.000000e+00> : vector<64xf32>
    %179 = vector.multi_reduction <add>, %178, %cst_51 [1] : vector<64x64xf32> to vector<64xf32>
    %180 = vector.shape_cast %179 : vector<64xf32> to vector<64x1xf32>
    %cst_52 = arith.constant 0.000000e+00 : f32
    %181 = vector.broadcast %cst_52 : f32 to vector<64x64xf32>
    %182 = arith.select %176, %65, %181 : vector<64x64xi1>, vector<64x64xf32>
    %cst_53 = arith.constant dense<0.000000e+00> : vector<64xf32>
    %183 = vector.multi_reduction <add>, %182, %cst_53 [1] : vector<64x64xf32> to vector<64xf32>
    %184 = vector.shape_cast %183 : vector<64xf32> to vector<64x1xf32>
    %c4_i32 = arith.constant 4 : i32
    %185 = vector.broadcast %c4_i32 : i32 to vector<64x256xi32>
    %186 = arith.cmpi eq, %69, %185 : vector<64x256xi32>
    %cst_54 = arith.constant 0.000000e+00 : f32
    %187 = vector.shape_cast %180 : vector<64x1xf32> to vector<64x1xf32>
    %188 = vector.broadcast %187 : vector<64x1xf32> to vector<64x256xf32>
    %189 = vector.broadcast %cst_54 : f32 to vector<64x256xf32>
    %190 = arith.select %186, %188, %189 : vector<64x256xi1>, vector<64x256xf32>
    %191 = arith.addf %166, %190 : vector<64x256xf32>
    %cst_55 = arith.constant 0.000000e+00 : f32
    %192 = vector.shape_cast %184 : vector<64x1xf32> to vector<64x1xf32>
    %193 = vector.broadcast %192 : vector<64x1xf32> to vector<64x256xf32>
    %194 = vector.broadcast %cst_55 : f32 to vector<64x256xf32>
    %195 = arith.select %186, %193, %194 : vector<64x256xi1>, vector<64x256xf32>
    %196 = arith.addf %171, %195 : vector<64x256xf32>
    %cst_56 = arith.constant dense<0.000000e+00> : vector<256xf32>
    %197 = vector.multi_reduction <add>, %191, %cst_56 [0] : vector<64x256xf32> to vector<256xf32>
    %198 = vector.shape_cast %197 : vector<256xf32> to vector<1x256xf32>
    %cst_57 = arith.constant dense<0.000000e+00> : vector<256xf32>
    %199 = vector.multi_reduction <add>, %196, %cst_57 [0] : vector<64x256xf32> to vector<256xf32>
    %200 = vector.shape_cast %199 : vector<256xf32> to vector<1x256xf32>
    %201 = arith.mulf %198, %200 : vector<1x256xf32>
    %202 = vector.shape_cast %201 : vector<1x256xf32> to vector<1x1x256xf32>
    %cst_58 = arith.constant dense<0.000000e+00> : vector<1xf32>
    %203 = vector.multi_reduction <add>, %202, %cst_58 [1, 2] : vector<1x1x256xf32> to vector<1xf32>
    %204 = vector.shape_cast %203 : vector<1xf32> to vector<1x1x1xf32>
    %205 = vector.extract %204[0, 0, 0] : f32 from vector<1x1x1xf32>
    %cst_59 = arith.constant -1.42857146 : f32
    %206 = arith.mulf %cst_59, %205 : f32
    %207 = vector.shape_cast %24 : vector<64x64xf32> to vector<1x64x64xf32>
    %cst_60 = arith.constant dense<0.000000e+00> : vector<1xf32>
    %208 = vector.multi_reduction <add>, %207, %cst_60 [1, 2] : vector<1x64x64xf32> to vector<1xf32>
    %209 = vector.shape_cast %208 : vector<1xf32> to vector<1x1x1xf32>
    %210 = vector.extract %209[0, 0, 0] : f32 from vector<1x1x1xf32>
    %211 = vector.shape_cast %5 : vector<64x1xf32> to vector<1x64x1xf32>
    %cst_61 = arith.constant dense<0.000000e+00> : vector<1xf32>
    %212 = vector.multi_reduction <add>, %211, %cst_61 [1, 2] : vector<1x64x1xf32> to vector<1xf32>
    %213 = vector.shape_cast %212 : vector<1xf32> to vector<1x1x1xf32>
    %214 = vector.extract %213[0, 0, 0] : f32 from vector<1x1x1xf32>
    %215 = tpu.iota {dimensions = array<i32: 2>} : vector<1x1x128xi32>
    %c0_i32_62 = arith.constant 0 : i32
    %216 = vector.broadcast %c0_i32_62 : i32 to vector<1x1x128xi32>
    %217 = arith.cmpi eq, %215, %216 : vector<1x1x128xi32>
    %c1_i32_63 = arith.constant 1 : i32
    %218 = vector.broadcast %c1_i32_63 : i32 to vector<1x1x128xi32>
    %219 = arith.cmpi eq, %215, %218 : vector<1x1x128xi32>
    %c2_i32_64 = arith.constant 2 : i32
    %220 = vector.broadcast %c2_i32_64 : i32 to vector<1x1x128xi32>
    %221 = arith.cmpi eq, %215, %220 : vector<1x1x128xi32>
    %cst_65 = arith.constant 0.000000e+00 : f32
    %222 = vector.broadcast %214 : f32 to vector<1x1x128xf32>
    %223 = vector.broadcast %cst_65 : f32 to vector<1x1x128xf32>
    %224 = arith.select %221, %222, %223 : vector<1x1x128xi1>, vector<1x1x128xf32>
    %225 = vector.broadcast %210 : f32 to vector<1x1x128xf32>
    %226 = arith.select %219, %225, %224 : vector<1x1x128xi1>, vector<1x1x128xf32>
    %227 = vector.broadcast %206 : f32 to vector<1x1x128xf32>
    %228 = arith.select %217, %227, %226 : vector<1x1x128xi1>, vector<1x1x128xf32>
    %c0_66 = arith.constant 0 : index
    %c0_67 = arith.constant 0 : index
    %c0_68 = arith.constant 0 : index
    %229 = vector.load %arg5[%c0_66, %c0_67, %c0_68] : memref<1x1x128xf32, #tpu.memory_space<vmem>>, vector<1x1x128xf32>
    tpu.vector_store %arg5[%c0_66, %c0_67, %c0_68], %228 {strides = array<i32>} : memref<1x1x128xf32, #tpu.memory_space<vmem>>, vector<1x1x128xf32>,
    return
  }
  func.func @transform_0(%arg0: i32, %arg1: memref<2xi32, #tpu.memory_space<smem>>) -> (i32, i32, i32) {
    %c0_i32 = arith.constant 0 : i32
    %c0_i32_0 = arith.constant 0 : i32
    %c0_i32_1 = arith.constant 0 : i32
    return %arg0, %c0_i32, %c0_i32_0 : i32, i32, i32
  }
  func.func @transform_1(%arg0: i32, %arg1: memref<2xi32, #tpu.memory_space<smem>>) -> (i32, i32, i32) {
    %c0_i32 = arith.constant 0 : i32
    %c0_i32_0 = arith.constant 0 : i32
    %c0_i32_1 = arith.constant 0 : i32
    return %arg0, %c0_i32, %c0_i32_0 : i32, i32, i32
  }
  func.func @transform_2(%arg0: i32, %arg1: memref<2xi32, #tpu.memory_space<smem>>) -> (i32, i32, i32) {
    %c0_i32 = arith.constant 0 : i32
    %c0_i32_0 = arith.constant 0 : i32
    %c0_i32_1 = arith.constant 0 : i32
    return %arg0, %c0_i32, %c0_i32_0 : i32, i32, i32
  }
  func.func @transform_3(%arg0: i32, %arg1: memref<2xi32, #tpu.memory_space<smem>>) -> (i32, i32, i32) {
    %c0_i32 = arith.constant 0 : i32
    %c0_i32_0 = arith.constant 0 : i32
    %c0_i32_1 = arith.constant 0 : i32
    return %arg0, %c0_i32, %c0_i32_0 : i32, i32, i32
  }
}

</mosaic_0001>

<llo_original>
// kernel: pixel_contrastive_loss.4
$region0: #{pixel_contrastive_loss.4}
  #allocation0 [shape = 'u32[]', space=smem, size = 0x4, offset = 0x4, fixed_abs, tag = 'smem constant byte address 0x4 - core index']
  #allocation1 [shape = 'u32[144,128]{1,0:T(1,128)}', space=vmem, size = 0x12000, scoped, tag = 'internal scratch']
  %s0 = inlined_call_operand.vmem [shape: f32[512,128], index: 0, kind: input, shape index: {}]
  %s1 = inlined_call_operand.vmem [shape: f32[1,128], index: 1, kind: input, shape index: {}]
  %s2 = inlined_call_operand.vmem [shape: f32[1,128], index: 2, kind: input, shape index: {}]
  %s3 = inlined_call_operand.vmem [shape: f32[128,128], index: 3, kind: input, shape index: {}]
  %s4 = inlined_call_operand.vmem [shape: f32[1,128], index: 4, kind: input, shape index: {}]
  %s5 = inlined_call_operand.vmem [shape: f32[512,128], index: 5, kind: output, shape index: {}]
  %s6 = sld [smem:[#allocation0]]
  $region30: #{pixel_contrastive_loss.4} parent=0
    _
  %s8 = ssub.s32 1, %s6
  %s9 = scalar_select 0, %s8, %s6
  // Predicated region
  $region2: #{pixel_contrastive_loss.4} parent=0 // pred_check
    _
  $region3: #{pixel_contrastive_loss.4} parent=0 // pred_check_branch
    %11 = sbr.rel (0) target = $region5
  $region4: #{pixel_contrastive_loss.4} parent=0 // pred_region
    _
  $region5: #{pixel_contrastive_loss.4} parent=0 // pred_fallthru
    _
  // Predicated region
  $region6: #{pixel_contrastive_loss.4} parent=0 // pred_check
    _
  $region7: #{pixel_contrastive_loss.4} parent=0 // pred_check_branch
    %13 = sbr.rel (0) target = $region9
  $region8: #{pixel_contrastive_loss.4} parent=0 // pred_region
    _
  $region9: #{pixel_contrastive_loss.4} parent=0 // pred_fallthru
    _
  // Predicated region
  $region10: #{pixel_contrastive_loss.4} parent=0 // pred_check
    _
  $region11: #{pixel_contrastive_loss.4} parent=0 // pred_check_branch
    %15 = sbr.rel (0) target = $region13
  $region12: #{pixel_contrastive_loss.4} parent=0 // pred_region
    _
  $region13: #{pixel_contrastive_loss.4} parent=0 // pred_fallthru
    _
  // Predicated region
  $region14: #{pixel_contrastive_loss.4} parent=0 // pred_check
    _
  $region15: #{pixel_contrastive_loss.4} parent=0 // pred_check_branch
    %17 = sbr.rel (0) target = $region17
  $region16: #{pixel_contrastive_loss.4} parent=0 // pred_region
    _
  $region17: #{pixel_contrastive_loss.4} parent=0 // pred_fallthru
    _
  // Predicated region
  $region18: #{pixel_contrastive_loss.4} parent=0 // pred_check
    _
  $region19: #{pixel_contrastive_loss.4} parent=0 // pred_check_branch
    %19 = sbr.rel (0) target = $region21
  $region20: #{pixel_contrastive_loss.4} parent=0 // pred_region
    _
  $region21: #{pixel_contrastive_loss.4} parent=0 // pred_fallthru
    _
  %v20 = vld [vmem:[%s0] sm:$0xff]
  %v21 = vld [vmem:[%s0 + $0x8] sm:$0xff]
  %v22 = vld [vmem:[%s0 + $0x10] sm:$0xff]
  %v23 = vld [vmem:[%s0 + $0x18] sm:$0xff]
  %v24 = vld [vmem:[%s0 + $0x20] sm:$0xff]
  %v25 = vld [vmem:[%s0 + $0x28] sm:$0xff]
  %v26 = vld [vmem:[%s0 + $0x30] sm:$0xff]
  %v27 = vld [vmem:[%s0 + $0x38] sm:$0xff]
  %v28 = vld [vmem:[%s0 + $0x40] sm:$0xff]
  %v29 = vld [vmem:[%s0 + $0x48] sm:$0xff]
  %v30 = vld [vmem:[%s0 + $0x50] sm:$0xff]
  %v31 = vld [vmem:[%s0 + $0x58] sm:$0xff]
  %v32 = vld [vmem:[%s0 + $0x60] sm:$0xff]
  %v33 = vld [vmem:[%s0 + $0x68] sm:$0xff]
  %v34 = vld [vmem:[%s0 + $0x70] sm:$0xff]
  %v35 = vld [vmem:[%s0 + $0x78] sm:$0xff]
  %v36 = vld [vmem:[%s0 + $0x80] sm:$0xff]
  %v37 = vld [vmem:[%s0 + $0x88] sm:$0xff]
  %v38 = vld [vmem:[%s0 + $0x90] sm:$0xff]
  %v39 = vld [vmem:[%s0 + $0x98] sm:$0xff]
  %v40 = vld [vmem:[%s0 + $0xa0] sm:$0xff]
  %v41 = vld [vmem:[%s0 + $0xa8] sm:$0xff]
  %v42 = vld [vmem:[%s0 + $0xb0] sm:$0xff]
  %v43 = vld [vmem:[%s0 + $0xb8] sm:$0xff]
  %v44 = vld [vmem:[%s0 + $0xc0] sm:$0xff]
  %v45 = vld [vmem:[%s0 + $0xc8] sm:$0xff]
  %v46 = vld [vmem:[%s0 + $0xd0] sm:$0xff]
  %v47 = vld [vmem:[%s0 + $0xd8] sm:$0xff]
  %v48 = vld [vmem:[%s0 + $0xe0] sm:$0xff]
  %v49 = vld [vmem:[%s0 + $0xe8] sm:$0xff]
  %v50 = vld [vmem:[%s0 + $0xf0] sm:$0xff]
  %v51 = vld [vmem:[%s0 + $0xf8] sm:$0xff]
  %v52 = vld [vmem:[%s0 + $0x100] sm:$0xff]
  %v53 = vld [vmem:[%s0 + $0x108] sm:$0xff]
  %v54 = vld [vmem:[%s0 + $0x110] sm:$0xff]
  %v55 = vld [vmem:[%s0 + $0x118] sm:$0xff]
  %v56 = vld [vmem:[%s0 + $0x120] sm:$0xff]
  %v57 = vld [vmem:[%s0 + $0x128] sm:$0xff]
  %v58 = vld [vmem:[%s0 + $0x130] sm:$0xff]
  %v59 = vld [vmem:[%s0 + $0x138] sm:$0xff]
  %v60 = vld [vmem:[%s0 + $0x140] sm:$0xff]
  %v61 = vld [vmem:[%s0 + $0x148] sm:$0xff]
  %v62 = vld [vmem:[%s0 + $0x150] sm:$0xff]
  %v63 = vld [vmem:[%s0 + $0x158] sm:$0xff]
  %v64 = vld [vmem:[%s0 + $0x160] sm:$0xff]
  %v65 = vld [vmem:[%s0 + $0x168] sm:$0xff]
  %v66 = vld [vmem:[%s0 + $0x170] sm:$0xff]
  %v67 = vld [vmem:[%s0 + $0x178] sm:$0xff]
  %v68 = vld [vmem:[%s0 + $0x180] sm:$0xff]
  %v69 = vld [vmem:[%s0 + $0x188] sm:$0xff]
  %v70 = vld [vmem:[%s0 + $0x190] sm:$0xff]
  %v71 = vld [vmem:[%s0 + $0x198] sm:$0xff]
  %v72 = vld [vmem:[%s0 + $0x1a0] sm:$0xff]
  %v73 = vld [vmem:[%s0 + $0x1a8] sm:$0xff]
  %v74 = vld [vmem:[%s0 + $0x1b0] sm:$0xff]
  %v75 = vld [vmem:[%s0 + $0x1b8] sm:$0xff]
  %v76 = vld [vmem:[%s0 + $0x1c0] sm:$0xff]
  %v77 = vld [vmem:[%s0 + $0x1c8] sm:$0xff]
  %v78 = vld [vmem:[%s0 + $0x1d0] sm:$0xff]
  %v79 = vld [vmem:[%s0 + $0x1d8] sm:$0xff]
  %v80 = vld [vmem:[%s0 + $0x1e0] sm:$0xff]
  %v81 = vld [vmem:[%s0 + $0x1e8] sm:$0xff]
  %v82 = vld [vmem:[%s0 + $0x1f0] sm:$0xff]
  %v83 = vld [vmem:[%s0 + $0x1f8] sm:$0xff]
  %v84 = vld [vmem:[%s1] sm:$0x1]
  %v86 = vlaneseq
  %v87 = vshrl.u32 %v86, 7
  %v88 = vsub.s32 0, %v87
  %v89 = vrot.slane %v84, %v88
  %v91 = vmul.f32 %v20, %v89
  %v92 = vmul.f32 %v21, %v89
  %v93 = vmul.f32 %v22, %v89
  %v94 = vmul.f32 %v23, %v89
  %v95 = vmul.f32 %v24, %v89
  %v96 = vmul.f32 %v25, %v89
  %v97 = vmul.f32 %v26, %v89
  %v98 = vmul.f32 %v27, %v89
  %v99 = vmul.f32 %v28, %v89
  %v100 = vmul.f32 %v29, %v89
  %v101 = vmul.f32 %v30, %v89
  %v102 = vmul.f32 %v31, %v89
  %v103 = vmul.f32 %v32, %v89
  %v104 = vmul.f32 %v33, %v89
  %v105 = vmul.f32 %v34, %v89
  %v106 = vmul.f32 %v35, %v89
  %v107 = vmul.f32 %v36, %v89
  %v108 = vmul.f32 %v37, %v89
  %v109 = vmul.f32 %v38, %v89
  %v110 = vmul.f32 %v39, %v89
  %v111 = vmul.f32 %v40, %v89
  %v112 = vmul.f32 %v41, %v89
  %v113 = vmul.f32 %v42, %v89
  %v114 = vmul.f32 %v43, %v89
  %v115 = vmul.f32 %v44, %v89
  %v116 = vmul.f32 %v45, %v89
  %v117 = vmul.f32 %v46, %v89
  %v118 = vmul.f32 %v47, %v89
  %v119 = vmul.f32 %v48, %v89
  %v120 = vmul.f32 %v49, %v89
  %v121 = vmul.f32 %v50, %v89
  %v122 = vmul.f32 %v51, %v89
  %v123 = vmul.f32 %v52, %v89
  %v124 = vmul.f32 %v53, %v89
  %v125 = vmul.f32 %v54, %v89
  %v126 = vmul.f32 %v55, %v89
  %v127 = vmul.f32 %v56, %v89
  %v128 = vmul.f32 %v57, %v89
  %v129 = vmul.f32 %v58, %v89
  %v130 = vmul.f32 %v59, %v89
  %v131 = vmul.f32 %v60, %v89
  %v132 = vmul.f32 %v61, %v89
  %v133 = vmul.f32 %v62, %v89
  %v134 = vmul.f32 %v63, %v89
  %v135 = vmul.f32 %v64, %v89
  %v136 = vmul.f32 %v65, %v89
  %v137 = vmul.f32 %v66, %v89
  %v138 = vmul.f32 %v67, %v89
  %v139 = vmul.f32 %v68, %v89
  %v140 = vmul.f32 %v69, %v89
  %v141 = vmul.f32 %v70, %v89
  %v142 = vmul.f32 %v71, %v89
  %v143 = vmul.f32 %v72, %v89
  %v144 = vmul.f32 %v73, %v89
  %v145 = vmul.f32 %v74, %v89
  %v146 = vmul.f32 %v75, %v89
  %v147 = vmul.f32 %v76, %v89
  %v148 = vmul.f32 %v77, %v89
  %v149 = vmul.f32 %v78, %v89
  %v150 = vmul.f32 %v79, %v89
  %v151 = vmul.f32 %v80, %v89
  %v152 = vmul.f32 %v81, %v89
  %v153 = vmul.f32 %v82, %v89
  %v154 = vmul.f32 %v83, %v89
  %v155 = vld [vmem:[%s2] sm:$0x1]
  %v157 = vlaneseq
  %v158 = vshrl.u32 %v157, 7
  %v159 = vsub.s32 0, %v158
  %v160 = vrot.slane %v155, %v159
  %v162 = vadd.f32 %v91, %v160
  %v163 = vadd.f32 %v92, %v160
  %v164 = vadd.f32 %v93, %v160
  %v165 = vadd.f32 %v94, %v160
  %v166 = vadd.f32 %v95, %v160
  %v167 = vadd.f32 %v96, %v160
  %v168 = vadd.f32 %v97, %v160
  %v169 = vadd.f32 %v98, %v160
  %v170 = vadd.f32 %v99, %v160
  %v171 = vadd.f32 %v100, %v160
  %v172 = vadd.f32 %v101, %v160
  %v173 = vadd.f32 %v102, %v160
  %v174 = vadd.f32 %v103, %v160
  %v175 = vadd.f32 %v104, %v160
  %v176 = vadd.f32 %v105, %v160
  %v177 = vadd.f32 %v106, %v160
  %v178 = vadd.f32 %v107, %v160
  %v179 = vadd.f32 %v108, %v160
  %v180 = vadd.f32 %v109, %v160
  %v181 = vadd.f32 %v110, %v160
  %v182 = vadd.f32 %v111, %v160
  %v183 = vadd.f32 %v112, %v160
  %v184 = vadd.f32 %v113, %v160
  %v185 = vadd.f32 %v114, %v160
  %v186 = vadd.f32 %v115, %v160
  %v187 = vadd.f32 %v116, %v160
  %v188 = vadd.f32 %v117, %v160
  %v189 = vadd.f32 %v118, %v160
  %v190 = vadd.f32 %v119, %v160
  %v191 = vadd.f32 %v120, %v160
  %v192 = vadd.f32 %v121, %v160
  %v193 = vadd.f32 %v122, %v160
  %v194 = vadd.f32 %v123, %v160
  %v195 = vadd.f32 %v124, %v160
  %v196 = vadd.f32 %v125, %v160
  %v197 = vadd.f32 %v126, %v160
  %v198 = vadd.f32 %v127, %v160
  %v199 = vadd.f32 %v128, %v160
  %v200 = vadd.f32 %v129, %v160
  %v201 = vadd.f32 %v130, %v160
  %v202 = vadd.f32 %v131, %v160
  %v203 = vadd.f32 %v132, %v160
  %v204 = vadd.f32 %v133, %v160
  %v205 = vadd.f32 %v134, %v160
  %v206 = vadd.f32 %v135, %v160
  %v207 = vadd.f32 %v136, %v160
  %v208 = vadd.f32 %v137, %v160
  %v209 = vadd.f32 %v138, %v160
  %v210 = vadd.f32 %v139, %v160
  %v211 = vadd.f32 %v140, %v160
  %v212 = vadd.f32 %v141, %v160
  %v213 = vadd.f32 %v142, %v160
  %v214 = vadd.f32 %v143, %v160
  %v215 = vadd.f32 %v144, %v160
  %v216 = vadd.f32 %v145, %v160
  %v217 = vadd.f32 %v146, %v160
  %v218 = vadd.f32 %v147, %v160
  %v219 = vadd.f32 %v148, %v160
  %v220 = vadd.f32 %v149, %v160
  %v221 = vadd.f32 %v150, %v160
  %v222 = vadd.f32 %v151, %v160
  %v223 = vadd.f32 %v152, %v160
  %v224 = vadd.f32 %v153, %v160
  %v225 = vadd.f32 %v154, %v160
  %v226 = vmax.f32 %v162, 0.0
  %v227 = vmax.f32 %v163, 0.0
  %v228 = vmax.f32 %v164, 0.0
  %v229 = vmax.f32 %v165, 0.0
  %v230 = vmax.f32 %v166, 0.0
  %v231 = vmax.f32 %v167, 0.0
  %v232 = vmax.f32 %v168, 0.0
  %v233 = vmax.f32 %v169, 0.0
  %v234 = vmax.f32 %v170, 0.0
  %v235 = vmax.f32 %v171, 0.0
  %v236 = vmax.f32 %v172, 0.0
  %v237 = vmax.f32 %v173, 0.0
  %v238 = vmax.f32 %v174, 0.0
  %v239 = vmax.f32 %v175, 0.0
  %v240 = vmax.f32 %v176, 0.0
  %v241 = vmax.f32 %v177, 0.0
  %v242 = vmax.f32 %v178, 0.0
  %v243 = vmax.f32 %v179, 0.0
  %v244 = vmax.f32 %v180, 0.0
  %v245 = vmax.f32 %v181, 0.0
  %v246 = vmax.f32 %v182, 0.0
  %v247 = vmax.f32 %v183, 0.0
  %v248 = vmax.f32 %v184, 0.0
  %v249 = vmax.f32 %v185, 0.0
  %v250 = vmax.f32 %v186, 0.0
  %v251 = vmax.f32 %v187, 0.0
  %v252 = vmax.f32 %v188, 0.0
  %v253 = vmax.f32 %v189, 0.0
  %v254 = vmax.f32 %v190, 0.0
  %v255 = vmax.f32 %v191, 0.0
  %v256 = vmax.f32 %v192, 0.0
  %v257 = vmax.f32 %v193, 0.0
  %v258 = vmax.f32 %v194, 0.0
  %v259 = vmax.f32 %v195, 0.0
  %v260 = vmax.f32 %v196, 0.0
  %v261 = vmax.f32 %v197, 0.0
  %v262 = vmax.f32 %v198, 0.0
  %v263 = vmax.f32 %v199, 0.0
  %v264 = vmax.f32 %v200, 0.0
  %v265 = vmax.f32 %v201, 0.0
  %v266 = vmax.f32 %v202, 0.0
  %v267 = vmax.f32 %v203, 0.0
  %v268 = vmax.f32 %v204, 0.0
  %v269 = vmax.f32 %v205, 0.0
  %v270 = vmax.f32 %v206, 0.0
  %v271 = vmax.f32 %v207, 0.0
  %v272 = vmax.f32 %v208, 0.0
  %v273 = vmax.f32 %v209, 0.0
  %v274 = vmax.f32 %v210, 0.0
  %v275 = vmax.f32 %v211, 0.0
  %v276 = vmax.f32 %v212, 0.0
  %v277 = vmax.f32 %v213, 0.0
  %v278 = vmax.f32 %v214, 0.0
  %v279 = vmax.f32 %v215, 0.0
  %v280 = vmax.f32 %v216, 0.0
  %v281 = vmax.f32 %v217, 0.0
  %v282 = vmax.f32 %v218, 0.0
  %v283 = vmax.f32 %v219, 0.0
  %v284 = vmax.f32 %v220, 0.0
  %v285 = vmax.f32 %v221, 0.0
  %v286 = vmax.f32 %v222, 0.0
  %v287 = vmax.f32 %v223, 0.0
  %v288 = vmax.f32 %v224, 0.0
  %v289 = vmax.f32 %v225, 0.0
  %v290 = vld [vmem:[%s3] sm:$0xff]
  %v291 = vld [vmem:[%s3 + $0x8] sm:$0xff]
  %v292 = vld [vmem:[%s3 + $0x10] sm:$0xff]
  %v293 = vld [vmem:[%s3 + $0x18] sm:$0xff]
  %v294 = vld [vmem:[%s3 + $0x20] sm:$0xff]
  %v295 = vld [vmem:[%s3 + $0x28] sm:$0xff]
  %v296 = vld [vmem:[%s3 + $0x30] sm:$0xff]
  %v297 = vld [vmem:[%s3 + $0x38] sm:$0xff]
  %v298 = vld [vmem:[%s3 + $0x40] sm:$0xff]
  %v299 = vld [vmem:[%s3 + $0x48] sm:$0xff]
  %v300 = vld [vmem:[%s3 + $0x50] sm:$0xff]
  %v301 = vld [vmem:[%s3 + $0x58] sm:$0xff]
  %v302 = vld [vmem:[%s3 + $0x60] sm:$0xff]
  %v303 = vld [vmem:[%s3 + $0x68] sm:$0xff]
  %v304 = vld [vmem:[%s3 + $0x70] sm:$0xff]
  %v305 = vld [vmem:[%s3 + $0x78] sm:$0xff]
  %v306 = vld [vmem:[%s4] sm:$0x1]
  %v308 = vlaneseq
  %v309 = vshrl.u32 %v308, 7
  %v310 = vsub.s32 0, %v309
  %v311 = vrot.slane %v306, %v310
  %313 = vmatprep.subr.mxu0 0.0
  %314 = vmatpush1.msra.mxu0 %v305
  %315 = vmatprep.subr.mxu0 0.0
  %316 = vmatpush1.msra.mxu0 %v304
  %317 = vmatprep.subr.mxu0 0.0
  %318 = vmatpush1.msra.mxu0 %v303
  %319 = vmatprep.subr.mxu0 0.0
  %320 = vmatpush1.msra.mxu0 %v302
  %321 = vmatprep.subr.mxu0 0.0
  %322 = vmatpush1.msra.mxu0 %v301
  %323 = vmatprep.subr.mxu0 0.0
  %324 = vmatpush1.msra.mxu0 %v300
  %325 = vmatprep.subr.mxu0 0.0
  %326 = vmatpush1.msra.mxu0 %v299
  %327 = vmatprep.subr.mxu0 0.0
  %328 = vmatpush1.msra.mxu0 %v298
  %329 = vmatprep.subr.mxu0 0.0
  %330 = vmatpush1.msra.mxu0 %v297
  %331 = vmatprep.subr.mxu0 0.0
  %332 = vmatpush1.msra.mxu0 %v296
  %333 = vmatprep.subr.mxu0 0.0
  %334 = vmatpush1.msra.mxu0 %v295
  %335 = vmatprep.subr.mxu0 0.0
  %336 = vmatpush1.msra.mxu0 %v294
  %337 = vmatprep.subr.mxu0 0.0
  %338 = vmatpush1.msra.mxu0 %v293
  %339 = vmatprep.subr.mxu0 0.0
  %340 = vmatpush1.msra.mxu0 %v292
  %341 = vmatprep.subr.mxu0 0.0
  %342 = vmatpush1.msra.mxu0 %v291
  %343 = vmatprep.subr.mxu0 0.0
  %344 = vmatpush1.msra.mxu0 %v290
  %345 = vmatprep.subr.mxu0 0.0
  %346 = vmatpush2.msra.mxu0 0.0
  %347 = vmatprep.subr.mxu0 0.0
  %348 = vmatpush2.msra.mxu0 0.0
  %349 = vmatprep.subr.mxu0 0.0
  %350 = vmatpush2.msra.mxu0 0.0
  %351 = vmatprep.subr.mxu0 0.0
  %352 = vmatpush2.msra.mxu0 0.0
  %353 = vmatprep.subr.mxu0 0.0
  %354 = vmatpush2.msra.mxu0 0.0
  %355 = vmatprep.subr.mxu0 0.0
  %356 = vmatpush2.msra.mxu0 0.0
  %357 = vmatprep.subr.mxu0 0.0
  %358 = vmatpush2.msra.mxu0 0.0
  %359 = vmatprep.subr.mxu0 0.0
  %360 = vmatpush2.msra.mxu0 0.0
  %361 = vmatprep.subr.mxu0 0.0
  %362 = vmatpush2.msra.mxu0 0.0
  %363 = vmatprep.subr.mxu0 0.0
  %364 = vmatpush2.msra.mxu0 0.0
  %365 = vmatprep.subr.mxu0 0.0
  %366 = vmatpush2.msra.mxu0 0.0
  %367 = vmatprep.subr.mxu0 0.0
  %368 = vmatpush2.msra.mxu0 0.0
  %369 = vmatprep.subr.mxu0 0.0
  %370 = vmatpush2.msra.mxu0 0.0
  %371 = vmatprep.subr.mxu0 0.0
  %372 = vmatpush2.msra.mxu0 0.0
  %373 = vmatprep.subr.mxu0 0.0
  %374 = vmatpush2.msra.mxu0 0.0
  %375 = vmatprep.subr.mxu0 0.0
  %376 = vmatpush2.msra.mxu0 0.0
  %377 = vmatprep.mubr.f32.mxu0 0.0
  %378 = vmatmul.mubr.f32.gmra.mxu0 %v226
  %v379 = vpop.f32.mrf.mxu0
  %v380 = vadd.f32 %v311, %v379
  %v381 = vpop.f32.mrf.mxu0
  %382 = vmatprep.mubr.f32.mxu0 0.0
  %383 = vmatmul.mubr.f32.gmra.mxu0 %v227
  %v384 = vpop.f32.mrf.mxu0
  %v385 = vadd.f32 %v311, %v384
  %v386 = vpop.f32.mrf.mxu0
  %387 = vmatprep.mubr.f32.mxu0 0.0
  %388 = vmatmul.mubr.f32.gmra.mxu0 %v228
  %v389 = vpop.f32.mrf.mxu0
  %v390 = vadd.f32 %v311, %v389
  %v391 = vpop.f32.mrf.mxu0
  %392 = vmatprep.mubr.f32.mxu0 0.0
  %393 = vmatmul.mubr.f32.gmra.mxu0 %v229
  %v394 = vpop.f32.mrf.mxu0
  %v395 = vadd.f32 %v311, %v394
  %v396 = vpop.f32.mrf.mxu0
  %397 = vmatprep.mubr.f32.mxu0 0.0
  %398 = vmatmul.mubr.f32.gmra.mxu0 %v230
  %v399 = vpop.f32.mrf.mxu0
  %v400 = vadd.f32 %v311, %v399
  %v401 = vpop.f32.mrf.mxu0
  %402 = vmatprep.mubr.f32.mxu0 0.0
  %403 = vmatmul.mubr.f32.gmra.mxu0 %v231
  %v404 = vpop.f32.mrf.mxu0
  %v405 = vadd.f32 %v311, %v404
  %v406 = vpop.f32.mrf.mxu0
  %407 = vmatprep.mubr.f32.mxu0 0.0
  %408 = vmatmul.mubr.f32.gmra.mxu0 %v232
  %v409 = vpop.f32.mrf.mxu0
  %v410 = vadd.f32 %v311, %v409
  %v411 = vpop.f32.mrf.mxu0
  %412 = vmatprep.mubr.f32.mxu0 0.0
  %413 = vmatmul.mubr.f32.gmra.mxu0 %v233
  %v414 = vpop.f32.mrf.mxu0
  %v415 = vadd.f32 %v311, %v414
  %v416 = vpop.f32.mrf.mxu0
  %417 = vmatprep.mubr.f32.mxu0 0.0
  %418 = vmatmul.mubr.f32.gmra.mxu0 %v234
  %v419 = vpop.f32.mrf.mxu0
  %v420 = vadd.f32 %v311, %v419
  %v421 = vpop.f32.mrf.mxu0
  %422 = vmatprep.mubr.f32.mxu0 0.0
  %423 = vmatmul.mubr.f32.gmra.mxu0 %v235
  %v424 = vpop.f32.mrf.mxu0
  %v425 = vadd.f32 %v311, %v424
  %v426 = vpop.f32.mrf.mxu0
  %427 = vmatprep.mubr.f32.mxu0 0.0
  %428 = vmatmul.mubr.f32.gmra.mxu0 %v236
  %v429 = vpop.f32.mrf.mxu0
  %v430 = vadd.f32 %v311, %v429
  %v431 = vpop.f32.mrf.mxu0
  %432 = vmatprep.mubr.f32.mxu0 0.0
  %433 = vmatmul.mubr.f32.gmra.mxu0 %v237
  %v434 = vpop.f32.mrf.mxu0
  %v435 = vadd.f32 %v311, %v434
  %v436 = vpop.f32.mrf.mxu0
  %437 = vmatprep.mubr.f32.mxu0 0.0
  %438 = vmatmul.mubr.f32.gmra.mxu0 %v238
  %v439 = vpop.f32.mrf.mxu0
  %v440 = vadd.f32 %v311, %v439
  %v441 = vpop.f32.mrf.mxu0
  %442 = vmatprep.mubr.f32.mxu0 0.0
  %443 = vmatmul.mubr.f32.gmra.mxu0 %v239
  %v444 = vpop.f32.mrf.mxu0
  %v445 = vadd.f32 %v311, %v444
  %v446 = vpop.f32.mrf.mxu0
  %447 = vmatprep.mubr.f32.mxu0 0.0
  %448 = vmatmul.mubr.f32.gmra.mxu0 %v240
  %v449 = vpop.f32.mrf.mxu0
  %v450 = vadd.f32 %v311, %v449
  %v451 = vpop.f32.mrf.mxu0
  %452 = vmatprep.mubr.f32.mxu0 0.0
  %453 = vmatmul.mubr.f32.gmra.mxu0 %v241
  %v454 = vpop.f32.mrf.mxu0
  %v455 = vadd.f32 %v311, %v454
  %v456 = vpop.f32.mrf.mxu0
  %457 = vmatprep.mubr.f32.mxu0 0.0
  %458 = vmatmul.mubr.f32.gmra.mxu0 %v242
  %v459 = vpop.f32.mrf.mxu0
  %v460 = vadd.f32 %v311, %v459
  %v461 = vpop.f32.mrf.mxu0
  %462 = vmatprep.mubr.f32.mxu0 0.0
  %463 = vmatmul.mubr.f32.gmra.mxu0 %v243
  %v464 = vpop.f32.mrf.mxu0
  %v465 = vadd.f32 %v311, %v464
  %v466 = vpop.f32.mrf.mxu0
  %467 = vmatprep.mubr.f32.mxu0 0.0
  %468 = vmatmul.mubr.f32.gmra.mxu0 %v244
  %v469 = vpop.f32.mrf.mxu0
  %v470 = vadd.f32 %v311, %v469
  %v471 = vpop.f32.mrf.mxu0
  %472 = vmatprep.mubr.f32.mxu0 0.0
  %473 = vmatmul.mubr.f32.gmra.mxu0 %v245
  %v474 = vpop.f32.mrf.mxu0
  %v475 = vadd.f32 %v311, %v474
  %v476 = vpop.f32.mrf.mxu0
  %477 = vmatprep.mubr.f32.mxu0 0.0
  %478 = vmatmul.mubr.f32.gmra.mxu0 %v246
  %v479 = vpop.f32.mrf.mxu0
  %v480 = vadd.f32 %v311, %v479
  %v481 = vpop.f32.mrf.mxu0
  %482 = vmatprep.mubr.f32.mxu0 0.0
  %483 = vmatmul.mubr.f32.gmra.mxu0 %v247
  %v484 = vpop.f32.mrf.mxu0
  %v485 = vadd.f32 %v311, %v484
  %v486 = vpop.f32.mrf.mxu0
  %487 = vmatprep.mubr.f32.mxu0 0.0
  %488 = vmatmul.mubr.f32.gmra.mxu0 %v248
  %v489 = vpop.f32.mrf.mxu0
  %v490 = vadd.f32 %v311, %v489
  %v491 = vpop.f32.mrf.mxu0
  %492 = vmatprep.mubr.f32.mxu0 0.0
  %493 = vmatmul.mubr.f32.gmra.mxu0 %v249
  %v494 = vpop.f32.mrf.mxu0
  %v495 = vadd.f32 %v311, %v494
  %v496 = vpop.f32.mrf.mxu0
  %497 = vmatprep.mubr.f32.mxu0 0.0
  %498 = vmatmul.mubr.f32.gmra.mxu0 %v250
  %v499 = vpop.f32.mrf.mxu0
  %v500 = vadd.f32 %v311, %v499
  %v501 = vpop.f32.mrf.mxu0
  %502 = vmatprep.mubr.f32.mxu0 0.0
  %503 = vmatmul.mubr.f32.gmra.mxu0 %v251
  %v504 = vpop.f32.mrf.mxu0
  %v505 = vadd.f32 %v311, %v504
  %v506 = vpop.f32.mrf.mxu0
  %507 = vmatprep.mubr.f32.mxu0 0.0
  %508 = vmatmul.mubr.f32.gmra.mxu0 %v252
  %v509 = vpop.f32.mrf.mxu0
  %v510 = vadd.f32 %v311, %v509
  %v511 = vpop.f32.mrf.mxu0
  %512 = vmatprep.mubr.f32.mxu0 0.0
  %513 = vmatmul.mubr.f32.gmra.mxu0 %v253
  %v514 = vpop.f32.mrf.mxu0
  %v515 = vadd.f32 %v311, %v514
  %v516 = vpop.f32.mrf.mxu0
  %517 = vmatprep.mubr.f32.mxu0 0.0
  %518 = vmatmul.mubr.f32.gmra.mxu0 %v254
  %v519 = vpop.f32.mrf.mxu0
  %v520 = vadd.f32 %v311, %v519
  %v521 = vpop.f32.mrf.mxu0
  %522 = vmatprep.mubr.f32.mxu0 0.0
  %523 = vmatmul.mubr.f32.gmra.mxu0 %v255
  %v524 = vpop.f32.mrf.mxu0
  %v525 = vadd.f32 %v311, %v524
  %v526 = vpop.f32.mrf.mxu0
  %527 = vmatprep.mubr.f32.mxu0 0.0
  %528 = vmatmul.mubr.f32.gmra.mxu0 %v256
  %v529 = vpop.f32.mrf.mxu0
  %v530 = vadd.f32 %v311, %v529
  %v531 = vpop.f32.mrf.mxu0
  %532 = vmatprep.mubr.f32.mxu0 0.0
  %533 = vmatmul.mubr.f32.gmra.mxu0 %v257
  %v534 = vpop.f32.mrf.mxu0
  %v535 = vadd.f32 %v311, %v534
  %v536 = vpop.f32.mrf.mxu0
  %537 = vmatprep.mubr.f32.mxu0 0.0
  %538 = vmatmul.mubr.f32.gmra.mxu0 %v258
  %v539 = vpop.f32.mrf.mxu0
  %v540 = vadd.f32 %v311, %v539
  %v541 = vpop.f32.mrf.mxu0
  %542 = vmatprep.mubr.f32.mxu0 0.0
  %543 = vmatmul.mubr.f32.gmra.mxu0 %v259
  %v544 = vpop.f32.mrf.mxu0
  %v545 = vadd.f32 %v311, %v544
  %v546 = vpop.f32.mrf.mxu0
  %547 = vmatprep.mubr.f32.mxu0 0.0
  %548 = vmatmul.mubr.f32.gmra.mxu0 %v260
  %v549 = vpop.f32.mrf.mxu0
  %v550 = vadd.f32 %v311, %v549
  %v551 = vpop.f32.mrf.mxu0
  %552 = vmatprep.mubr.f32.mxu0 0.0
  %553 = vmatmul.mubr.f32.gmra.mxu0 %v261
  %v554 = vpop.f32.mrf.mxu0
  %v555 = vadd.f32 %v311, %v554
  %v556 = vpop.f32.mrf.mxu0
  %557 = vmatprep.mubr.f32.mxu0 0.0
  %558 = vmatmul.mubr.f32.gmra.mxu0 %v262
  %v559 = vpop.f32.mrf.mxu0
  %v560 = vadd.f32 %v311, %v559
  %v561 = vpop.f32.mrf.mxu0
  %562 = vmatprep.mubr.f32.mxu0 0.0
  %563 = vmatmul.mubr.f32.gmra.mxu0 %v263
  %v564 = vpop.f32.mrf.mxu0
  %v565 = vadd.f32 %v311, %v564
  %v566 = vpop.f32.mrf.mxu0
  %567 = vmatprep.mubr.f32.mxu0 0.0
  %568 = vmatmul.mubr.f32.gmra.mxu0 %v264
  %v569 = vpop.f32.mrf.mxu0
  %v570 = vadd.f32 %v311, %v569
  %v571 = vpop.f32.mrf.mxu0
  %572 = vmatprep.mubr.f32.mxu0 0.0
  %573 = vmatmul.mubr.f32.gmra.mxu0 %v265
  %v574 = vpop.f32.mrf.mxu0
  %v575 = vadd.f32 %v311, %v574
  %v576 = vpop.f32.mrf.mxu0
  %577 = vmatprep.mubr.f32.mxu0 0.0
  %578 = vmatmul.mubr.f32.gmra.mxu0 %v266
  %v579 = vpop.f32.mrf.mxu0
  %v580 = vadd.f32 %v311, %v579
  %v581 = vpop.f32.mrf.mxu0
  %582 = vmatprep.mubr.f32.mxu0 0.0
  %583 = vmatmul.mubr.f32.gmra.mxu0 %v267
  %v584 = vpop.f32.mrf.mxu0
  %v585 = vadd.f32 %v311, %v584
  %v586 = vpop.f32.mrf.mxu0
  %587 = vmatprep.mubr.f32.mxu0 0.0
  %588 = vmatmul.mubr.f32.gmra.mxu0 %v268
  %v589 = vpop.f32.mrf.mxu0
  %v590 = vadd.f32 %v311, %v589
  %v591 = vpop.f32.mrf.mxu0
  %592 = vmatprep.mubr.f32.mxu0 0.0
  %593 = vmatmul.mubr.f32.gmra.mxu0 %v269
  %v594 = vpop.f32.mrf.mxu0
  %v595 = vadd.f32 %v311, %v594
  %v596 = vpop.f32.mrf.mxu0
  %597 = vmatprep.mubr.f32.mxu0 0.0
  %598 = vmatmul.mubr.f32.gmra.mxu0 %v270
  %v599 = vpop.f32.mrf.mxu0
  %v600 = vadd.f32 %v311, %v599
  %v601 = vpop.f32.mrf.mxu0
  %602 = vmatprep.mubr.f32.mxu0 0.0
  %603 = vmatmul.mubr.f32.gmra.mxu0 %v271
  %v604 = vpop.f32.mrf.mxu0
  %v605 = vadd.f32 %v311, %v604
  %v606 = vpop.f32.mrf.mxu0
  %607 = vmatprep.mubr.f32.mxu0 0.0
  %608 = vmatmul.mubr.f32.gmra.mxu0 %v272
  %v609 = vpop.f32.mrf.mxu0
  %v610 = vadd.f32 %v311, %v609
  %v611 = vpop.f32.mrf.mxu0
  %612 = vmatprep.mubr.f32.mxu0 0.0
  %613 = vmatmul.mubr.f32.gmra.mxu0 %v273
  %v614 = vpop.f32.mrf.mxu0
  %v615 = vadd.f32 %v311, %v614
  %v616 = vpop.f32.mrf.mxu0
  %617 = vmatprep.mubr.f32.mxu0 0.0
  %618 = vmatmul.mubr.f32.gmra.mxu0 %v274
  %v619 = vpop.f32.mrf.mxu0
  %v620 = vadd.f32 %v311, %v619
  %v621 = vpop.f32.mrf.mxu0
  %622 = vmatprep.mubr.f32.mxu0 0.0
  %623 = vmatmul.mubr.f32.gmra.mxu0 %v275
  %v624 = vpop.f32.mrf.mxu0
  %v625 = vadd.f32 %v311, %v624
  %v626 = vpop.f32.mrf.mxu0
  %627 = vmatprep.mubr.f32.mxu0 0.0
  %628 = vmatmul.mubr.f32.gmra.mxu0 %v276
  %v629 = vpop.f32.mrf.mxu0
  %v630 = vadd.f32 %v311, %v629
  %v631 = vpop.f32.mrf.mxu0
  %632 = vmatprep.mubr.f32.mxu0 0.0
  %633 = vmatmul.mubr.f32.gmra.mxu0 %v277
  %v634 = vpop.f32.mrf.mxu0
  %v635 = vadd.f32 %v311, %v634
  %v636 = vpop.f32.mrf.mxu0
  %637 = vmatprep.mubr.f32.mxu0 0.0
  %638 = vmatmul.mubr.f32.gmra.mxu0 %v278
  %v639 = vpop.f32.mrf.mxu0
  %v640 = vadd.f32 %v311, %v639
  %v641 = vpop.f32.mrf.mxu0
  %642 = vmatprep.mubr.f32.mxu0 0.0
  %643 = vmatmul.mubr.f32.gmra.mxu0 %v279
  %v644 = vpop.f32.mrf.mxu0
  %v645 = vadd.f32 %v311, %v644
  %v646 = vpop.f32.mrf.mxu0
  %647 = vmatprep.mubr.f32.mxu0 0.0
  %648 = vmatmul.mubr.f32.gmra.mxu0 %v280
  %v649 = vpop.f32.mrf.mxu0
  %v650 = vadd.f32 %v311, %v649
  %v651 = vpop.f32.mrf.mxu0
  %652 = vmatprep.mubr.f32.mxu0 0.0
  %653 = vmatmul.mubr.f32.gmra.mxu0 %v281
  %v654 = vpop.f32.mrf.mxu0
  %v655 = vadd.f32 %v311, %v654
  %v656 = vpop.f32.mrf.mxu0
  %657 = vmatprep.mubr.f32.mxu0 0.0
  %658 = vmatmul.mubr.f32.gmra.mxu0 %v282
  %v659 = vpop.f32.mrf.mxu0
  %v660 = vadd.f32 %v311, %v659
  %v661 = vpop.f32.mrf.mxu0
  %662 = vmatprep.mubr.f32.mxu0 0.0
  %663 = vmatmul.mubr.f32.gmra.mxu0 %v283
  %v664 = vpop.f32.mrf.mxu0
  %v665 = vadd.f32 %v311, %v664
  %v666 = vpop.f32.mrf.mxu0
  %667 = vmatprep.mubr.f32.mxu0 0.0
  %668 = vmatmul.mubr.f32.gmra.mxu0 %v284
  %v669 = vpop.f32.mrf.mxu0
  %v670 = vadd.f32 %v311, %v669
  %v671 = vpop.f32.mrf.mxu0
  %672 = vmatprep.mubr.f32.mxu0 0.0
  %673 = vmatmul.mubr.f32.gmra.mxu0 %v285
  %v674 = vpop.f32.mrf.mxu0
  %v675 = vadd.f32 %v311, %v674
  %v676 = vpop.f32.mrf.mxu0
  %677 = vmatprep.mubr.f32.mxu0 0.0
  %678 = vmatmul.mubr.f32.gmra.mxu0 %v286
  %v679 = vpop.f32.mrf.mxu0
  %v680 = vadd.f32 %v311, %v679
  %v681 = vpop.f32.mrf.mxu0
  %682 = vmatprep.mubr.f32.mxu0 0.0
  %683 = vmatmul.mubr.f32.gmra.mxu0 %v287
  %v684 = vpop.f32.mrf.mxu0
  %v685 = vadd.f32 %v311, %v684
  %v686 = vpop.f32.mrf.mxu0
  %687 = vmatprep.mubr.f32.mxu0 0.0
  %688 = vmatmul.mubr.f32.gmra.mxu0 %v288
  %v689 = vpop.f32.mrf.mxu0
  %v690 = vadd.f32 %v311, %v689
  %v691 = vpop.f32.mrf.mxu0
  %692 = vmatprep.mubr.f32.mxu0 0.0
  %693 = vmatmul.mubr.f32.gmra.mxu0 %v289
  %v694 = vpop.f32.mrf.mxu0
  %v695 = vadd.f32 %v311, %v694
  %v696 = vpop.f32.mrf.mxu0
  %697 = vdwg.mxu0
  %v698 = vmul.f32 %v380, %v380
  %v699 = vmul.f32 %v385, %v385
  %v700 = vmul.f32 %v390, %v390
  %v701 = vmul.f32 %v395, %v395
  %v702 = vmul.f32 %v400, %v400
  %v703 = vmul.f32 %v405, %v405
  %v704 = vmul.f32 %v410, %v410
  %v705 = vmul.f32 %v415, %v415
  %v706 = vmul.f32 %v420, %v420
  %v707 = vmul.f32 %v425, %v425
  %v708 = vmul.f32 %v430, %v430
  %v709 = vmul.f32 %v435, %v435
  %v710 = vmul.f32 %v440, %v440
  %v711 = vmul.f32 %v445, %v445
  %v712 = vmul.f32 %v450, %v450
  %v713 = vmul.f32 %v455, %v455
  %v714 = vmul.f32 %v460, %v460
  %v715 = vmul.f32 %v465, %v465
  %v716 = vmul.f32 %v470, %v470
  %v717 = vmul.f32 %v475, %v475
  %v718 = vmul.f32 %v480, %v480
  %v719 = vmul.f32 %v485, %v485
  %v720 = vmul.f32 %v490, %v490
  %v721 = vmul.f32 %v495, %v495
  %v722 = vmul.f32 %v500, %v500
  %v723 = vmul.f32 %v505, %v505
  %v724 = vmul.f32 %v510, %v510
  %v725 = vmul.f32 %v515, %v515
  %v726 = vmul.f32 %v520, %v520
  %v727 = vmul.f32 %v525, %v525
  %v728 = vmul.f32 %v530, %v530
  %v729 = vmul.f32 %v535, %v535
  %v730 = vmul.f32 %v540, %v540
  %v731 = vmul.f32 %v545, %v545
  %v732 = vmul.f32 %v550, %v550
  %v733 = vmul.f32 %v555, %v555
  %v734 = vmul.f32 %v560, %v560
  %v735 = vmul.f32 %v565, %v565
  %v736 = vmul.f32 %v570, %v570
  %v737 = vmul.f32 %v575, %v575
  %v738 = vmul.f32 %v580, %v580
  %v739 = vmul.f32 %v585, %v585
  %v740 = vmul.f32 %v590, %v590
  %v741 = vmul.f32 %v595, %v595
  %v742 = vmul.f32 %v600, %v600
  %v743 = vmul.f32 %v605, %v605
  %v744 = vmul.f32 %v610, %v610
  %v745 = vmul.f32 %v615, %v615
  %v746 = vmul.f32 %v620, %v620
  %v747 = vmul.f32 %v625, %v625
  %v748 = vmul.f32 %v630, %v630
  %v749 = vmul.f32 %v635, %v635
  %v750 = vmul.f32 %v640, %v640
  %v751 = vmul.f32 %v645, %v645
  %v752 = vmul.f32 %v650, %v650
  %v753 = vmul.f32 %v655, %v655
  %v754 = vmul.f32 %v660, %v660
  %v755 = vmul.f32 %v665, %v665
  %v756 = vmul.f32 %v670, %v670
  %v757 = vmul.f32 %v675, %v675
  %v758 = vmul.f32 %v680, %v680
  %v759 = vmul.f32 %v685, %v685
  %v760 = vmul.f32 %v690, %v690
  %v761 = vmul.f32 %v695, %v695
  %762 = vadd.xlane.f32.xlu0 %v698
  %v763 = vpop.xlane.xlu0 %762
  %764 = vadd.xlane.f32.xlu0 %v699
  %v765 = vpop.xlane.xlu0 %764
  %766 = vadd.xlane.f32.xlu0 %v700
  %v767 = vpop.xlane.xlu0 %766
  %768 = vadd.xlane.f32.xlu0 %v701
  %v769 = vpop.xlane.xlu0 %768
  %770 = vadd.xlane.f32.xlu0 %v702
  %v771 = vpop.xlane.xlu0 %770
  %772 = vadd.xlane.f32.xlu0 %v703
  %v773 = vpop.xlane.xlu0 %772
  %774 = vadd.xlane.f32.xlu0 %v704
  %v775 = vpop.xlane.xlu0 %774
  %776 = vadd.xlane.f32.xlu0 %v705
  %v777 = vpop.xlane.xlu0 %776
  %778 = vadd.xlane.f32.xlu0 %v706
  %v779 = vpop.xlane.xlu0 %778
  %780 = vadd.xlane.f32.xlu0 %v707
  %v781 = vpop.xlane.xlu0 %780
  %782 = vadd.xlane.f32.xlu0 %v708
  %v783 = vpop.xlane.xlu0 %782
  %784 = vadd.xlane.f32.xlu0 %v709
  %v785 = vpop.xlane.xlu0 %784
  %786 = vadd.xlane.f32.xlu0 %v710
  %v787 = vpop.xlane.xlu0 %786
  %788 = vadd.xlane.f32.xlu0 %v711
  %v789 = vpop.xlane.xlu0 %788
  %790 = vadd.xlane.f32.xlu0 %v712
  %v791 = vpop.xlane.xlu0 %790
  %792 = vadd.xlane.f32.xlu0 %v713
  %v793 = vpop.xlane.xlu0 %792
  %794 = vadd.xlane.f32.xlu0 %v714
  %v795 = vpop.xlane.xlu0 %794
  %796 = vadd.xlane.f32.xlu0 %v715
  %v797 = vpop.xlane.xlu0 %796
  %798 = vadd.xlane.f32.xlu0 %v716
  %v799 = vpop.xlane.xlu0 %798
  %800 = vadd.xlane.f32.xlu0 %v717
  %v801 = vpop.xlane.xlu0 %800
  %802 = vadd.xlane.f32.xlu0 %v718
  %v803 = vpop.xlane.xlu0 %802
  %804 = vadd.xlane.f32.xlu0 %v719
  %v805 = vpop.xlane.xlu0 %804
  %806 = vadd.xlane.f32.xlu0 %v720
  %v807 = vpop.xlane.xlu0 %806
  %808 = vadd.xlane.f32.xlu0 %v721
  %v809 = vpop.xlane.xlu0 %808
  %810 = vadd.xlane.f32.xlu0 %v722
  %v811 = vpop.xlane.xlu0 %810
  %812 = vadd.xlane.f32.xlu0 %v723
  %v813 = vpop.xlane.xlu0 %812
  %814 = vadd.xlane.f32.xlu0 %v724
  %v815 = vpop.xlane.xlu0 %814
  %816 = vadd.xlane.f32.xlu0 %v725
  %v817 = vpop.xlane.xlu0 %816
  %818 = vadd.xlane.f32.xlu0 %v726
  %v819 = vpop.xlane.xlu0 %818
  %820 = vadd.xlane.f32.xlu0 %v727
  %v821 = vpop.xlane.xlu0 %820
  %822 = vadd.xlane.f32.xlu0 %v728
  %v823 = vpop.xlane.xlu0 %822
  %824 = vadd.xlane.f32.xlu0 %v729
  %v825 = vpop.xlane.xlu0 %824
  %826 = vadd.xlane.f32.xlu0 %v730
  %v827 = vpop.xlane.xlu0 %826
  %828 = vadd.xlane.f32.xlu0 %v731
  %v829 = vpop.xlane.xlu0 %828
  %830 = vadd.xlane.f32.xlu0 %v732
  %v831 = vpop.xlane.xlu0 %830
  %832 = vadd.xlane.f32.xlu0 %v733
  %v833 = vpop.xlane.xlu0 %832
  %834 = vadd.xlane.f32.xlu0 %v734
  %v835 = vpop.xlane.xlu0 %834
  %836 = vadd.xlane.f32.xlu0 %v735
  %v837 = vpop.xlane.xlu0 %836
  %838 = vadd.xlane.f32.xlu0 %v736
  %v839 = vpop.xlane.xlu0 %838
  %840 = vadd.xlane.f32.xlu0 %v737
  %v841 = vpop.xlane.xlu0 %840
  %842 = vadd.xlane.f32.xlu0 %v738
  %v843 = vpop.xlane.xlu0 %842
  %844 = vadd.xlane.f32.xlu0 %v739
  %v845 = vpop.xlane.xlu0 %844
  %846 = vadd.xlane.f32.xlu0 %v740
  %v847 = vpop.xlane.xlu0 %846
  %848 = vadd.xlane.f32.xlu0 %v741
  %v849 = vpop.xlane.xlu0 %848
  %850 = vadd.xlane.f32.xlu0 %v742
  %v851 = vpop.xlane.xlu0 %850
  %852 = vadd.xlane.f32.xlu0 %v743
  %v853 = vpop.xlane.xlu0 %852
  %854 = vadd.xlane.f32.xlu0 %v744
  %v855 = vpop.xlane.xlu0 %854
  %856 = vadd.xlane.f32.xlu0 %v745
  %v857 = vpop.xlane.xlu0 %856
  %858 = vadd.xlane.f32.xlu0 %v746
  %v859 = vpop.xlane.xlu0 %858
  %860 = vadd.xlane.f32.xlu0 %v747
  %v861 = vpop.xlane.xlu0 %860
  %862 = vadd.xlane.f32.xlu0 %v748
  %v863 = vpop.xlane.xlu0 %862
  %864 = vadd.xlane.f32.xlu0 %v749
  %v865 = vpop.xlane.xlu0 %864
  %866 = vadd.xlane.f32.xlu0 %v750
  %v867 = vpop.xlane.xlu0 %866
  %868 = vadd.xlane.f32.xlu0 %v751
  %v869 = vpop.xlane.xlu0 %868
  %870 = vadd.xlane.f32.xlu0 %v752
  %v871 = vpop.xlane.xlu0 %870
  %872 = vadd.xlane.f32.xlu0 %v753
  %v873 = vpop.xlane.xlu0 %872
  %874 = vadd.xlane.f32.xlu0 %v754
  %v875 = vpop.xlane.xlu0 %874
  %876 = vadd.xlane.f32.xlu0 %v755
  %v877 = vpop.xlane.xlu0 %876
  %878 = vadd.xlane.f32.xlu0 %v756
  %v879 = vpop.xlane.xlu0 %878
  %880 = vadd.xlane.f32.xlu0 %v757
  %v881 = vpop.xlane.xlu0 %880
  %882 = vadd.xlane.f32.xlu0 %v758
  %v883 = vpop.xlane.xlu0 %882
  %884 = vadd.xlane.f32.xlu0 %v759
  %v885 = vpop.xlane.xlu0 %884
  %886 = vadd.xlane.f32.xlu0 %v760
  %v887 = vpop.xlane.xlu0 %886
  %888 = vadd.xlane.f32.xlu0 %v761
  %v889 = vpop.xlane.xlu0 %888
  %v890 = vrsqrt.pop %v763
  %v891 = vrsqrt.pop %v765
  %v892 = vrsqrt.pop %v767
  %v893 = vrsqrt.pop %v769
  %v894 = vrsqrt.pop %v771
  %v895 = vrsqrt.pop %v773
  %v896 = vrsqrt.pop %v775
  %v897 = vrsqrt.pop %v777
  %v898 = vrsqrt.pop %v779
  %v899 = vrsqrt.pop %v781
  %v900 = vrsqrt.pop %v783
  %v901 = vrsqrt.pop %v785
  %v902 = vrsqrt.pop %v787
  %v903 = vrsqrt.pop %v789
  %v904 = vrsqrt.pop %v791
  %v905 = vrsqrt.pop %v793
  %v906 = vrsqrt.pop %v795
  %v907 = vrsqrt.pop %v797
  %v908 = vrsqrt.pop %v799
  %v909 = vrsqrt.pop %v801
  %v910 = vrsqrt.pop %v803
  %v911 = vrsqrt.pop %v805
  %v912 = vrsqrt.pop %v807
  %v913 = vrsqrt.pop %v809
  %v914 = vrsqrt.pop %v811
  %v915 = vrsqrt.pop %v813
  %v916 = vrsqrt.pop %v815
  %v917 = vrsqrt.pop %v817
  %v918 = vrsqrt.pop %v819
  %v919 = vrsqrt.pop %v821
  %v920 = vrsqrt.pop %v823
  %v921 = vrsqrt.pop %v825
  %v922 = vrsqrt.pop %v827
  %v923 = vrsqrt.pop %v829
  %v924 = vrsqrt.pop %v831
  %v925 = vrsqrt.pop %v833
  %v926 = vrsqrt.pop %v835
  %v927 = vrsqrt.pop %v837
  %v928 = vrsqrt.pop %v839
  %v929 = vrsqrt.pop %v841
  %v930 = vrsqrt.pop %v843
  %v931 = vrsqrt.pop %v845
  %v932 = vrsqrt.pop %v847
  %v933 = vrsqrt.pop %v849
  %v934 = vrsqrt.pop %v851
  %v935 = vrsqrt.pop %v853
  %v936 = vrsqrt.pop %v855
  %v937 = vrsqrt.pop %v857
  %v938 = vrsqrt.pop %v859
  %v939 = vrsqrt.pop %v861
  %v940 = vrsqrt.pop %v863
  %v941 = vrsqrt.pop %v865
  %v942 = vrsqrt.pop %v867
  %v943 = vrsqrt.pop %v869
  %v944 = vrsqrt.pop %v871
  %v945 = vrsqrt.pop %v873
  %v946 = vrsqrt.pop %v875
  %v947 = vrsqrt.pop %v877
  %v948 = vrsqrt.pop %v879
  %v949 = vrsqrt.pop %v881
  %v950 = vrsqrt.pop %v883
  %v951 = vrsqrt.pop %v885
  %v952 = vrsqrt.pop %v887
  %v953 = vrsqrt.pop %v889
  %v954 = vmin.f32 %v890, 1e+12
  %v955 = vmin.f32 %v891, 1e+12
  %v956 = vmin.f32 %v892, 1e+12
  %v957 = vmin.f32 %v893, 1e+12
  %v958 = vmin.f32 %v894, 1e+12
  %v959 = vmin.f32 %v895, 1e+12
  %v960 = vmin.f32 %v896, 1e+12
  %v961 = vmin.f32 %v897, 1e+12
  %v962 = vmin.f32 %v898, 1e+12
  %v963 = vmin.f32 %v899, 1e+12
  %v964 = vmin.f32 %v900, 1e+12
  %v965 = vmin.f32 %v901, 1e+12
  %v966 = vmin.f32 %v902, 1e+12
  %v967 = vmin.f32 %v903, 1e+12
  %v968 = vmin.f32 %v904, 1e+12
  %v969 = vmin.f32 %v905, 1e+12
  %v970 = vmin.f32 %v906, 1e+12
  %v971 = vmin.f32 %v907, 1e+12
  %v972 = vmin.f32 %v908, 1e+12
  %v973 = vmin.f32 %v909, 1e+12
  %v974 = vmin.f32 %v910, 1e+12
  %v975 = vmin.f32 %v911, 1e+12
  %v976 = vmin.f32 %v912, 1e+12
  %v977 = vmin.f32 %v913, 1e+12
  %v978 = vmin.f32 %v914, 1e+12
  %v979 = vmin.f32 %v915, 1e+12
  %v980 = vmin.f32 %v916, 1e+12
  %v981 = vmin.f32 %v917, 1e+12
  %v982 = vmin.f32 %v918, 1e+12
  %v983 = vmin.f32 %v919, 1e+12
  %v984 = vmin.f32 %v920, 1e+12
  %v985 = vmin.f32 %v921, 1e+12
  %v986 = vmin.f32 %v922, 1e+12
  %v987 = vmin.f32 %v923, 1e+12
  %v988 = vmin.f32 %v924, 1e+12
  %v989 = vmin.f32 %v925, 1e+12
  %v990 = vmin.f32 %v926, 1e+12
  %v991 = vmin.f32 %v927, 1e+12
  %v992 = vmin.f32 %v928, 1e+12
  %v993 = vmin.f32 %v929, 1e+12
  %v994 = vmin.f32 %v930, 1e+12
  %v995 = vmin.f32 %v931, 1e+12
  %v996 = vmin.f32 %v932, 1e+12
  %v997 = vmin.f32 %v933, 1e+12
  %v998 = vmin.f32 %v934, 1e+12
  %v999 = vmin.f32 %v935, 1e+12
  %v1000 = vmin.f32 %v936, 1e+12
  %v1001 = vmin.f32 %v937, 1e+12
  %v1002 = vmin.f32 %v938, 1e+12
  %v1003 = vmin.f32 %v939, 1e+12
  %v1004 = vmin.f32 %v940, 1e+12
  %v1005 = vmin.f32 %v941, 1e+12
  %v1006 = vmin.f32 %v942, 1e+12
  %v1007 = vmin.f32 %v943, 1e+12
  %v1008 = vmin.f32 %v944, 1e+12
  %v1009 = vmin.f32 %v945, 1e+12
  %v1010 = vmin.f32 %v946, 1e+12
  %v1011 = vmin.f32 %v947, 1e+12
  %v1012 = vmin.f32 %v948, 1e+12
  %v1013 = vmin.f32 %v949, 1e+12
  %v1014 = vmin.f32 %v950, 1e+12
  %v1015 = vmin.f32 %v951, 1e+12
  %v1016 = vmin.f32 %v952, 1e+12
  %v1017 = vmin.f32 %v953, 1e+12
  %v1018 = vmul.f32 %v380, %v954
  %v1019 = vmul.f32 %v385, %v955
  %v1020 = vmul.f32 %v390, %v956
  %v1021 = vmul.f32 %v395, %v957
  %v1022 = vmul.f32 %v400, %v958
  %v1023 = vmul.f32 %v405, %v959
  %v1024 = vmul.f32 %v410, %v960
  %v1025 = vmul.f32 %v415, %v961
  %v1026 = vmul.f32 %v420, %v962
  %v1027 = vmul.f32 %v425, %v963
  %v1028 = vmul.f32 %v430, %v964
  %v1029 = vmul.f32 %v435, %v965
  %v1030 = vmul.f32 %v440, %v966
  %v1031 = vmul.f32 %v445, %v967
  %v1032 = vmul.f32 %v450, %v968
  %v1033 = vmul.f32 %v455, %v969
  %v1034 = vmul.f32 %v460, %v970
  %v1035 = vmul.f32 %v465, %v971
  %v1036 = vmul.f32 %v470, %v972
  %v1037 = vmul.f32 %v475, %v973
  %v1038 = vmul.f32 %v480, %v974
  %v1039 = vmul.f32 %v485, %v975
  %v1040 = vmul.f32 %v490, %v976
  %v1041 = vmul.f32 %v495, %v977
  %v1042 = vmul.f32 %v500, %v978
  %v1043 = vmul.f32 %v505, %v979
  %v1044 = vmul.f32 %v510, %v980
  %v1045 = vmul.f32 %v515, %v981
  %v1046 = vmul.f32 %v520, %v982
  %v1047 = vmul.f32 %v525, %v983
  %v1048 = vmul.f32 %v530, %v984
  %v1049 = vmul.f32 %v535, %v985
  %v1050 = vmul.f32 %v540, %v986
  %v1051 = vmul.f32 %v545, %v987
  %v1052 = vmul.f32 %v550, %v988
  %v1053 = vmul.f32 %v555, %v989
  %v1054 = vmul.f32 %v560, %v990
  %v1055 = vmul.f32 %v565, %v991
  %v1056 = vmul.f32 %v570, %v992
  %v1057 = vmul.f32 %v575, %v993
  %v1058 = vmul.f32 %v580, %v994
  %v1059 = vmul.f32 %v585, %v995
  %v1060 = vmul.f32 %v590, %v996
  %v1061 = vmul.f32 %v595, %v997
  %v1062 = vmul.f32 %v600, %v998
  %v1063 = vmul.f32 %v605, %v999
  %v1064 = vmul.f32 %v610, %v1000
  %v1065 = vmul.f32 %v615, %v1001
  %v1066 = vmul.f32 %v620, %v1002
  %v1067 = vmul.f32 %v625, %v1003
  %v1068 = vmul.f32 %v630, %v1004
  %v1069 = vmul.f32 %v635, %v1005
  %v1070 = vmul.f32 %v640, %v1006
  %v1071 = vmul.f32 %v645, %v1007
  %v1072 = vmul.f32 %v650, %v1008
  %v1073 = vmul.f32 %v655, %v1009
  %v1074 = vmul.f32 %v660, %v1010
  %v1075 = vmul.f32 %v665, %v1011
  %v1076 = vmul.f32 %v670, %v1012
  %v1077 = vmul.f32 %v675, %v1013
  %v1078 = vmul.f32 %v680, %v1014
  %v1079 = vmul.f32 %v685, %v1015
  %v1080 = vmul.f32 %v690, %v1016
  %v1081 = vmul.f32 %v695, %v1017
  %1082 = vst [vmem:[%s5] sm:$0xff] %v1018
  %1083 = vst [vmem:[%s5 + $0x8] sm:$0xff] %v1019
  %1084 = vst [vmem:[%s5 + $0x10] sm:$0xff] %v1020
  %1085 = vst [vmem:[%s5 + $0x18] sm:$0xff] %v1021
  %1086 = vst [vmem:[%s5 + $0x20] sm:$0xff] %v1022
  %1087 = vst [vmem:[%s5 + $0x28] sm:$0xff] %v1023
  %1088 = vst [vmem:[%s5 + $0x30] sm:$0xff] %v1024
  %1089 = vst [vmem:[%s5 + $0x38] sm:$0xff] %v1025
  %1090 = vst [vmem:[%s5 + $0x40] sm:$0xff] %v1026
  %1091 = vst [vmem:[%s5 + $0x48] sm:$0xff] %v1027
  %1092 = vst [vmem:[%s5 + $0x50] sm:$0xff] %v1028
  %1093 = vst [vmem:[%s5 + $0x58] sm:$0xff] %v1029
  %1094 = vst [vmem:[%s5 + $0x60] sm:$0xff] %v1030
  %1095 = vst [vmem:[%s5 + $0x68] sm:$0xff] %v1031
  %1096 = vst [vmem:[%s5 + $0x70] sm:$0xff] %v1032
  %1097 = vst [vmem:[%s5 + $0x78] sm:$0xff] %v1033
  %1098 = vst [vmem:[%s5 + $0x80] sm:$0xff] %v1034
  %1099 = vst [vmem:[%s5 + $0x88] sm:$0xff] %v1035
  %1100 = vst [vmem:[%s5 + $0x90] sm:$0xff] %v1036
  %1101 = vst [vmem:[%s5 + $0x98] sm:$0xff] %v1037
  %1102 = vst [vmem:[%s5 + $0xa0] sm:$0xff] %v1038
  %1103 = vst [vmem:[%s5 + $0xa8] sm:$0xff] %v1039
  %1104 = vst [vmem:[%s5 + $0xb0] sm:$0xff] %v1040
  %1105 = vst [vmem:[%s5 + $0xb8] sm:$0xff] %v1041
  %1106 = vst [vmem:[%s5 + $0xc0] sm:$0xff] %v1042
  %1107 = vst [vmem:[%s5 + $0xc8] sm:$0xff] %v1043
  %1108 = vst [vmem:[%s5 + $0xd0] sm:$0xff] %v1044
  %1109 = vst [vmem:[%s5 + $0xd8] sm:$0xff] %v1045
  %1110 = vst [vmem:[%s5 + $0xe0] sm:$0xff] %v1046
  %1111 = vst [vmem:[%s5 + $0xe8] sm:$0xff] %v1047
  %1112 = vst [vmem:[%s5 + $0xf0] sm:$0xff] %v1048
  %1113 = vst [vmem:[%s5 + $0xf8] sm:$0xff] %v1049
  %1114 = vst [vmem:[%s5 + $0x100] sm:$0xff] %v1050
  %1115 = vst [vmem:[%s5 + $0x108] sm:$0xff] %v1051
  %1116 = vst [vmem:[%s5 + $0x110] sm:$0xff] %v1052
  %1117 = vst [vmem:[%s5 + $0x118] sm:$0xff] %v1053
  %1118 = vst [vmem:[%s5 + $0x120] sm:$0xff] %v1054
  %1119 = vst [vmem:[%s5 + $0x128] sm:$0xff] %v1055
  %1120 = vst [vmem:[%s5 + $0x130] sm:$0xff] %v1056
  %1121 = vst [vmem:[%s5 + $0x138] sm:$0xff] %v1057
  %1122 = vst [vmem:[%s5 + $0x140] sm:$0xff] %v1058
  %1123 = vst [vmem:[%s5 + $0x148] sm:$0xff] %v1059
  %1124 = vst [vmem:[%s5 + $0x150] sm:$0xff] %v1060
  %1125 = vst [vmem:[%s5 + $0x158] sm:$0xff] %v1061
  %1126 = vst [vmem:[%s5 + $0x160] sm:$0xff] %v1062
  %1127 = vst [vmem:[%s5 + $0x168] sm:$0xff] %v1063
  %1128 = vst [vmem:[%s5 + $0x170] sm:$0xff] %v1064
  %1129 = vst [vmem:[%s5 + $0x178] sm:$0xff] %v1065
  %1130 = vst [vmem:[%s5 + $0x180] sm:$0xff] %v1066
  %1131 = vst [vmem:[%s5 + $0x188] sm:$0xff] %v1067
  %1132 = vst [vmem:[%s5 + $0x190] sm:$0xff] %v1068
  %1133 = vst [vmem:[%s5 + $0x198] sm:$0xff] %v1069
  %1134 = vst [vmem:[%s5 + $0x1a0] sm:$0xff] %v1070
  %1135 = vst [vmem:[%s5 + $0x1a8] sm:$0xff] %v1071
  %1136 = vst [vmem:[%s5 + $0x1b0] sm:$0xff] %v1072
  %1137 = vst [vmem:[%s5 + $0x1b8] sm:$0xff] %v1073
  %1138 = vst [vmem:[%s5 + $0x1c0] sm:$0xff] %v1074
  %1139 = vst [vmem:[%s5 + $0x1c8] sm:$0xff] %v1075
  %1140 = vst [vmem:[%s5 + $0x1d0] sm:$0xff] %v1076
  %1141 = vst [vmem:[%s5 + $0x1d8] sm:$0xff] %v1077
  %1142 = vst [vmem:[%s5 + $0x1e0] sm:$0xff] %v1078
  %1143 = vst [vmem:[%s5 + $0x1e8] sm:$0xff] %v1079
  %1144 = vst [vmem:[%s5 + $0x1f0] sm:$0xff] %v1080
  %1145 = vst [vmem:[%s5 + $0x1f8] sm:$0xff] %v1081
  // Predicated region
  $region22: #{pixel_contrastive_loss.4} parent=0 // pred_check
    _
  $region23: #{pixel_contrastive_loss.4} parent=0 // pred_check_branch
    %1147 = sbr.rel (0) target = $region25
  $region24: #{pixel_contrastive_loss.4} parent=0 // pred_region
    _
  $region25: #{pixel_contrastive_loss.4} parent=0 // pred_fallthru
    _
  // Predicated region
  $region26: #{pixel_contrastive_loss.4} parent=0 // pred_check
    _
  $region27: #{pixel_contrastive_loss.4} parent=0 // pred_check_branch
    %1149 = sbr.rel (0) target = $region29
  $region28: #{pixel_contrastive_loss.4} parent=0 // pred_region
    _
  $region29: #{pixel_contrastive_loss.4} parent=0 // pred_fallthru
    _

// kernel: pixel_contrastive_loss.3
$region0: #{pixel_contrastive_loss.3}
  #allocation0 [shape = 'u32[]', space=smem, size = 0x4, offset = 0x4, fixed_abs, tag = 'smem constant byte address 0x4 - core index']
  #allocation1 [shape = 'u32[144,128]{1,0:T(1,128)}', space=vmem, size = 0x12000, scoped, tag = 'internal scratch']
  #allocation2 [shape = 'f32[1,1]{1,0:T(1,128)S(1)}', space=vmem, size = 0x200, scoped, tag = 'scoped memory for pixel_contrastive_loss.3']
  %s0 = inlined_call_operand.vmem [shape: f32[512,64], index: 0, kind: input, shape index: {}]
  %s1 = inlined_call_operand.vmem [shape: f32[64,128], index: 1, kind: input, shape index: {}]
  %s2 = inlined_call_operand.vmem [shape: f32[1,128], index: 2, kind: input, shape index: {}]
  %s3 = inlined_call_operand.vmem [shape: f32[64,64], index: 3, kind: input, shape index: {}]
  %s4 = inlined_call_operand.vmem [shape: f32[1,64], index: 4, kind: input, shape index: {}]
  %s5 = inlined_call_operand.vmem [shape: f32[1,64], index: 5, kind: input, shape index: {}]
  %s6 = inlined_call_operand.<no memory space> [shape: f32[1,1], index: 6, kind: input, shape index: {}]
  %s7 = inlined_call_operand.vmem [shape: f32[512,128], index: 7, kind: output, shape index: {0}]
  %s8 = inlined_call_operand.vmem [shape: f32[512,1], index: 8, kind: output, shape index: {1}]
  %s9 = inlined_call_operand.vmem [shape: f32[1,8,128], index: 9, kind: output, shape index: {2}]
  %10 = xla_tuple %s7, %s8, %s9
  %s11 = sld [smem:[#allocation0]]
  $region54: #{pixel_contrastive_loss.3} parent=0
    _
  %s13 = ssub.s32 1, %s11
  %s14 = scalar_select 0, %s13, %s11
  %v15 = vstv %s6
  %16 = vst [vmem:[#allocation2] sm:$0x1] %v15
  // Predicated region
  $region2: #{pixel_contrastive_loss.3} parent=0 // pred_check
    _
  $region3: #{pixel_contrastive_loss.3} parent=0 // pred_check_branch
    %18 = sbr.rel (0) target = $region5
  $region4: #{pixel_contrastive_loss.3} parent=0 // pred_region
    _
  $region5: #{pixel_contrastive_loss.3} parent=0 // pred_fallthru
    _
  // Predicated region
  $region6: #{pixel_contrastive_loss.3} parent=0 // pred_check
    _
  $region7: #{pixel_contrastive_loss.3} parent=0 // pred_check_branch
    %20 = sbr.rel (0) target = $region9
  $region8: #{pixel_contrastive_loss.3} parent=0 // pred_region
    _
  $region9: #{pixel_contrastive_loss.3} parent=0 // pred_fallthru
    _
  // Predicated region
  $region10: #{pixel_contrastive_loss.3} parent=0 // pred_check
    _
  $region11: #{pixel_contrastive_loss.3} parent=0 // pred_check_branch
    %22 = sbr.rel (0) target = $region13
  $region12: #{pixel_contrastive_loss.3} parent=0 // pred_region
    _
  $region13: #{pixel_contrastive_loss.3} parent=0 // pred_fallthru
    _
  // Predicated region
  $region14: #{pixel_contrastive_loss.3} parent=0 // pred_check
    _
  $region15: #{pixel_contrastive_loss.3} parent=0 // pred_check_branch
    %24 = sbr.rel (0) target = $region17
  $region16: #{pixel_contrastive_loss.3} parent=0 // pred_region
    _
  $region17: #{pixel_contrastive_loss.3} parent=0 // pred_fallthru
    _
  // Predicated region
  $region18: #{pixel_contrastive_loss.3} parent=0 // pred_check
    _
  $region19: #{pixel_contrastive_loss.3} parent=0 // pred_check_branch
    %26 = sbr.rel (0) target = $region21
  $region20: #{pixel_contrastive_loss.3} parent=0 // pred_region
    _
  $region21: #{pixel_contrastive_loss.3} parent=0 // pred_fallthru
    _
  // Predicated region
  $region22: #{pixel_contrastive_loss.3} parent=0 // pred_check
    _
  $region23: #{pixel_contrastive_loss.3} parent=0 // pred_check_branch
    %28 = sbr.rel (0) target = $region25
  $region24: #{pixel_contrastive_loss.3} parent=0 // pred_region
    _
  $region25: #{pixel_contrastive_loss.3} parent=0 // pred_fallthru
    _
  // Predicated region
  $region26: #{pixel_contrastive_loss.3} parent=0 // pred_check
    _
  $region27: #{pixel_contrastive_loss.3} parent=0 // pred_check_branch
    %30 = sbr.rel (0) target = $region29
  $region28: #{pixel_contrastive_loss.3} parent=0 // pred_region
    _
  $region29: #{pixel_contrastive_loss.3} parent=0 // pred_fallthru
    _
  %v31 = vld [vmem:[%s0] sm:$0xff]
  %v32 = vld [vmem:[%s0 + $0x8] sm:$0xff]
  %v33 = vld [vmem:[%s0 + $0x10] sm:$0xff]
  %v34 = vld [vmem:[%s0 + $0x18] sm:$0xff]
  %v35 = vld [vmem:[%s0 + $0x20] sm:$0xff]
  %v36 = vld [vmem:[%s0 + $0x28] sm:$0xff]
  %v37 = vld [vmem:[%s0 + $0x30] sm:$0xff]
  %v38 = vld [vmem:[%s0 + $0x38] sm:$0xff]
  %v39 = vld [vmem:[%s0 + $0x40] sm:$0xff]
  %v40 = vld [vmem:[%s0 + $0x48] sm:$0xff]
  %v41 = vld [vmem:[%s0 + $0x50] sm:$0xff]
  %v42 = vld [vmem:[%s0 + $0x58] sm:$0xff]
  %v43 = vld [vmem:[%s0 + $0x60] sm:$0xff]
  %v44 = vld [vmem:[%s0 + $0x68] sm:$0xff]
  %v45 = vld [vmem:[%s0 + $0x70] sm:$0xff]
  %v46 = vld [vmem:[%s0 + $0x78] sm:$0xff]
  %v47 = vld [vmem:[%s0 + $0x80] sm:$0xff]
  %v48 = vld [vmem:[%s0 + $0x88] sm:$0xff]
  %v49 = vld [vmem:[%s0 + $0x90] sm:$0xff]
  %v50 = vld [vmem:[%s0 + $0x98] sm:$0xff]
  %v51 = vld [vmem:[%s0 + $0xa0] sm:$0xff]
  %v52 = vld [vmem:[%s0 + $0xa8] sm:$0xff]
  %v53 = vld [vmem:[%s0 + $0xb0] sm:$0xff]
  %v54 = vld [vmem:[%s0 + $0xb8] sm:$0xff]
  %v55 = vld [vmem:[%s0 + $0xc0] sm:$0xff]
  %v56 = vld [vmem:[%s0 + $0xc8] sm:$0xff]
  %v57 = vld [vmem:[%s0 + $0xd0] sm:$0xff]
  %v58 = vld [vmem:[%s0 + $0xd8] sm:$0xff]
  %v59 = vld [vmem:[%s0 + $0xe0] sm:$0xff]
  %v60 = vld [vmem:[%s0 + $0xe8] sm:$0xff]
  %v61 = vld [vmem:[%s0 + $0xf0] sm:$0xff]
  %v62 = vld [vmem:[%s0 + $0xf8] sm:$0xff]
  %v63 = vld [vmem:[%s0 + $0x100] sm:$0xff]
  %v64 = vld [vmem:[%s0 + $0x108] sm:$0xff]
  %v65 = vld [vmem:[%s0 + $0x110] sm:$0xff]
  %v66 = vld [vmem:[%s0 + $0x118] sm:$0xff]
  %v67 = vld [vmem:[%s0 + $0x120] sm:$0xff]
  %v68 = vld [vmem:[%s0 + $0x128] sm:$0xff]
  %v69 = vld [vmem:[%s0 + $0x130] sm:$0xff]
  %v70 = vld [vmem:[%s0 + $0x138] sm:$0xff]
  %v71 = vld [vmem:[%s0 + $0x140] sm:$0xff]
  %v72 = vld [vmem:[%s0 + $0x148] sm:$0xff]
  %v73 = vld [vmem:[%s0 + $0x150] sm:$0xff]
  %v74 = vld [vmem:[%s0 + $0x158] sm:$0xff]
  %v75 = vld [vmem:[%s0 + $0x160] sm:$0xff]
  %v76 = vld [vmem:[%s0 + $0x168] sm:$0xff]
  %v77 = vld [vmem:[%s0 + $0x170] sm:$0xff]
  %v78 = vld [vmem:[%s0 + $0x178] sm:$0xff]
  %v79 = vld [vmem:[%s0 + $0x180] sm:$0xff]
  %v80 = vld [vmem:[%s0 + $0x188] sm:$0xff]
  %v81 = vld [vmem:[%s0 + $0x190] sm:$0xff]
  %v82 = vld [vmem:[%s0 + $0x198] sm:$0xff]
  %v83 = vld [vmem:[%s0 + $0x1a0] sm:$0xff]
  %v84 = vld [vmem:[%s0 + $0x1a8] sm:$0xff]
  %v85 = vld [vmem:[%s0 + $0x1b0] sm:$0xff]
  %v86 = vld [vmem:[%s0 + $0x1b8] sm:$0xff]
  %v87 = vld [vmem:[%s0 + $0x1c0] sm:$0xff]
  %v88 = vld [vmem:[%s0 + $0x1c8] sm:$0xff]
  %v89 = vld [vmem:[%s0 + $0x1d0] sm:$0xff]
  %v90 = vld [vmem:[%s0 + $0x1d8] sm:$0xff]
  %v91 = vld [vmem:[%s0 + $0x1e0] sm:$0xff]
  %v92 = vld [vmem:[%s0 + $0x1e8] sm:$0xff]
  %v93 = vld [vmem:[%s0 + $0x1f0] sm:$0xff]
  %v94 = vld [vmem:[%s0 + $0x1f8] sm:$0xff]
  %v95 = vld [vmem:[%s1] sm:$0xff]
  %v96 = vld [vmem:[%s1 + $0x8] sm:$0xff]
  %v97 = vld [vmem:[%s1 + $0x10] sm:$0xff]
  %v98 = vld [vmem:[%s1 + $0x18] sm:$0xff]
  %v99 = vld [vmem:[%s1 + $0x20] sm:$0xff]
  %v100 = vld [vmem:[%s1 + $0x28] sm:$0xff]
  %v101 = vld [vmem:[%s1 + $0x30] sm:$0xff]
  %v102 = vld [vmem:[%s1 + $0x38] sm:$0xff]
  %v103 = vld [vmem:[%s2] sm:$0x1]
  %v105 = vlaneseq
  %v106 = vshrl.u32 %v105, 7
  %v107 = vsub.s32 0, %v106
  %v108 = vrot.slane %v103, %v107
  %vm110 = vcmask 523264
  %v112 = vsel %vm110, %v31, 0
  %v115 = vsel %vm110, %v32, 0
  %v118 = vsel %vm110, %v33, 0
  %v121 = vsel %vm110, %v34, 0
  %v124 = vsel %vm110, %v35, 0
  %v127 = vsel %vm110, %v36, 0
  %v130 = vsel %vm110, %v37, 0
  %v133 = vsel %vm110, %v38, 0
  %v136 = vsel %vm110, %v39, 0
  %v139 = vsel %vm110, %v40, 0
  %v142 = vsel %vm110, %v41, 0
  %v145 = vsel %vm110, %v42, 0
  %v148 = vsel %vm110, %v43, 0
  %v151 = vsel %vm110, %v44, 0
  %v154 = vsel %vm110, %v45, 0
  %v157 = vsel %vm110, %v46, 0
  %v160 = vsel %vm110, %v47, 0
  %v163 = vsel %vm110, %v48, 0
  %v166 = vsel %vm110, %v49, 0
  %v169 = vsel %vm110, %v50, 0
  %v172 = vsel %vm110, %v51, 0
  %v175 = vsel %vm110, %v52, 0
  %v178 = vsel %vm110, %v53, 0
  %v181 = vsel %vm110, %v54, 0
  %v184 = vsel %vm110, %v55, 0
  %v187 = vsel %vm110, %v56, 0
  %v190 = vsel %vm110, %v57, 0
  %v193 = vsel %vm110, %v58, 0
  %v196 = vsel %vm110, %v59, 0
  %v199 = vsel %vm110, %v60, 0
  %v202 = vsel %vm110, %v61, 0
  %v205 = vsel %vm110, %v62, 0
  %v208 = vsel %vm110, %v63, 0
  %v211 = vsel %vm110, %v64, 0
  %v214 = vsel %vm110, %v65, 0
  %v217 = vsel %vm110, %v66, 0
  %v220 = vsel %vm110, %v67, 0
  %v223 = vsel %vm110, %v68, 0
  %v226 = vsel %vm110, %v69, 0
  %v229 = vsel %vm110, %v70, 0
  %v232 = vsel %vm110, %v71, 0
  %v235 = vsel %vm110, %v72, 0
  %v238 = vsel %vm110, %v73, 0
  %v241 = vsel %vm110, %v74, 0
  %v244 = vsel %vm110, %v75, 0
  %v247 = vsel %vm110, %v76, 0
  %v250 = vsel %vm110, %v77, 0
  %v253 = vsel %vm110, %v78, 0
  %v256 = vsel %vm110, %v79, 0
  %v259 = vsel %vm110, %v80, 0
  %v262 = vsel %vm110, %v81, 0
  %v265 = vsel %vm110, %v82, 0
  %v268 = vsel %vm110, %v83, 0
  %v271 = vsel %vm110, %v84, 0
  %v274 = vsel %vm110, %v85, 0
  %v277 = vsel %vm110, %v86, 0
  %v280 = vsel %vm110, %v87, 0
  %v283 = vsel %vm110, %v88, 0
  %v286 = vsel %vm110, %v89, 0
  %v289 = vsel %vm110, %v90, 0
  %v292 = vsel %vm110, %v91, 0
  %v295 = vsel %vm110, %v92, 0
  %v298 = vsel %vm110, %v93, 0
  %v301 = vsel %vm110, %v94, 0
  %303 = vmatprep.subr.mxu0 0.0
  %304 = vmatpush1.msra.mxu0 0.0
  %305 = vmatprep.subr.mxu0 0.0
  %306 = vmatpush1.msra.mxu0 0.0
  %307 = vmatprep.subr.mxu0 0.0
  %308 = vmatpush1.msra.mxu0 0.0
  %309 = vmatprep.subr.mxu0 0.0
  %310 = vmatpush1.msra.mxu0 0.0
  %311 = vmatprep.subr.mxu0 0.0
  %312 = vmatpush1.msra.mxu0 0.0
  %313 = vmatprep.subr.mxu0 0.0
  %314 = vmatpush1.msra.mxu0 0.0
  %315 = vmatprep.subr.mxu0 0.0
  %316 = vmatpush1.msra.mxu0 0.0
  %317 = vmatprep.subr.mxu0 0.0
  %318 = vmatpush1.msra.mxu0 0.0
  %319 = vmatprep.subr.mxu0 0.0
  %320 = vmatpush1.msra.mxu0 %v102
  %321 = vmatprep.subr.mxu0 0.0
  %322 = vmatpush1.msra.mxu0 %v101
  %323 = vmatprep.subr.mxu0 0.0
  %324 = vmatpush1.msra.mxu0 %v100
  %325 = vmatprep.subr.mxu0 0.0
  %326 = vmatpush1.msra.mxu0 %v99
  %327 = vmatprep.subr.mxu0 0.0
  %328 = vmatpush1.msra.mxu0 %v98
  %329 = vmatprep.subr.mxu0 0.0
  %330 = vmatpush1.msra.mxu0 %v97
  %331 = vmatprep.subr.mxu0 0.0
  %332 = vmatpush1.msra.mxu0 %v96
  %333 = vmatprep.subr.mxu0 0.0
  %334 = vmatpush1.msra.mxu0 %v95
  %335 = vmatprep.subr.mxu0 0.0
  %336 = vmatpush2.msra.mxu0 0.0
  %337 = vmatprep.subr.mxu0 0.0
  %338 = vmatpush2.msra.mxu0 0.0
  %339 = vmatprep.subr.mxu0 0.0
  %340 = vmatpush2.msra.mxu0 0.0
  %341 = vmatprep.subr.mxu0 0.0
  %342 = vmatpush2.msra.mxu0 0.0
  %343 = vmatprep.subr.mxu0 0.0
  %344 = vmatpush2.msra.mxu0 0.0
  %345 = vmatprep.subr.mxu0 0.0
  %346 = vmatpush2.msra.mxu0 0.0
  %347 = vmatprep.subr.mxu0 0.0
  %348 = vmatpush2.msra.mxu0 0.0
  %349 = vmatprep.subr.mxu0 0.0
  %350 = vmatpush2.msra.mxu0 0.0
  %351 = vmatprep.subr.mxu0 0.0
  %352 = vmatpush2.msra.mxu0 0.0
  %353 = vmatprep.subr.mxu0 0.0
  %354 = vmatpush2.msra.mxu0 0.0
  %355 = vmatprep.subr.mxu0 0.0
  %356 = vmatpush2.msra.mxu0 0.0
  %357 = vmatprep.subr.mxu0 0.0
  %358 = vmatpush2.msra.mxu0 0.0
  %359 = vmatprep.subr.mxu0 0.0
  %360 = vmatpush2.msra.mxu0 0.0
  %361 = vmatprep.subr.mxu0 0.0
  %362 = vmatpush2.msra.mxu0 0.0
  %363 = vmatprep.subr.mxu0 0.0
  %364 = vmatpush2.msra.mxu0 0.0
  %365 = vmatprep.subr.mxu0 0.0
  %366 = vmatpush2.msra.mxu0 0.0
  %367 = vmatprep.mubr.f32.mxu0 0.0
  %368 = vmatmul.mubr.f32.gmra.mxu0 %v112
  %v369 = vpop.f32.mrf.mxu0
  %v370 = vadd.f32 %v108, %v369
  %v371 = vpop.f32.mrf.mxu0
  %372 = vmatprep.mubr.f32.mxu0 0.0
  %373 = vmatmul.mubr.f32.gmra.mxu0 %v115
  %v374 = vpop.f32.mrf.mxu0
  %v375 = vadd.f32 %v108, %v374
  %v376 = vpop.f32.mrf.mxu0
  %377 = vmatprep.mubr.f32.mxu0 0.0
  %378 = vmatmul.mubr.f32.gmra.mxu0 %v118
  %v379 = vpop.f32.mrf.mxu0
  %v380 = vadd.f32 %v108, %v379
  %v381 = vpop.f32.mrf.mxu0
  %382 = vmatprep.mubr.f32.mxu0 0.0
  %383 = vmatmul.mubr.f32.gmra.mxu0 %v121
  %v384 = vpop.f32.mrf.mxu0
  %v385 = vadd.f32 %v108, %v384
  %v386 = vpop.f32.mrf.mxu0
  %387 = vmatprep.mubr.f32.mxu0 0.0
  %388 = vmatmul.mubr.f32.gmra.mxu0 %v124
  %v389 = vpop.f32.mrf.mxu0
  %v390 = vadd.f32 %v108, %v389
  %v391 = vpop.f32.mrf.mxu0
  %392 = vmatprep.mubr.f32.mxu0 0.0
  %393 = vmatmul.mubr.f32.gmra.mxu0 %v127
  %v394 = vpop.f32.mrf.mxu0
  %v395 = vadd.f32 %v108, %v394
  %v396 = vpop.f32.mrf.mxu0
  %397 = vmatprep.mubr.f32.mxu0 0.0
  %398 = vmatmul.mubr.f32.gmra.mxu0 %v130
  %v399 = vpop.f32.mrf.mxu0
  %v400 = vadd.f32 %v108, %v399
  %v401 = vpop.f32.mrf.mxu0
  %402 = vmatprep.mubr.f32.mxu0 0.0
  %403 = vmatmul.mubr.f32.gmra.mxu0 %v133
  %v404 = vpop.f32.mrf.mxu0
  %v405 = vadd.f32 %v108, %v404
  %v406 = vpop.f32.mrf.mxu0
  %407 = vmatprep.mubr.f32.mxu0 0.0
  %408 = vmatmul.mubr.f32.gmra.mxu0 %v136
  %v409 = vpop.f32.mrf.mxu0
  %v410 = vadd.f32 %v108, %v409
  %v411 = vpop.f32.mrf.mxu0
  %412 = vmatprep.mubr.f32.mxu0 0.0
  %413 = vmatmul.mubr.f32.gmra.mxu0 %v139
  %v414 = vpop.f32.mrf.mxu0
  %v415 = vadd.f32 %v108, %v414
  %v416 = vpop.f32.mrf.mxu0
  %417 = vmatprep.mubr.f32.mxu0 0.0
  %418 = vmatmul.mubr.f32.gmra.mxu0 %v142
  %v419 = vpop.f32.mrf.mxu0
  %v420 = vadd.f32 %v108, %v419
  %v421 = vpop.f32.mrf.mxu0
  %422 = vmatprep.mubr.f32.mxu0 0.0
  %423 = vmatmul.mubr.f32.gmra.mxu0 %v145
  %v424 = vpop.f32.mrf.mxu0
  %v425 = vadd.f32 %v108, %v424
  %v426 = vpop.f32.mrf.mxu0
  %427 = vmatprep.mubr.f32.mxu0 0.0
  %428 = vmatmul.mubr.f32.gmra.mxu0 %v148
  %v429 = vpop.f32.mrf.mxu0
  %v430 = vadd.f32 %v108, %v429
  %v431 = vpop.f32.mrf.mxu0
  %432 = vmatprep.mubr.f32.mxu0 0.0
  %433 = vmatmul.mubr.f32.gmra.mxu0 %v151
  %v434 = vpop.f32.mrf.mxu0
  %v435 = vadd.f32 %v108, %v434
  %v436 = vpop.f32.mrf.mxu0
  %437 = vmatprep.mubr.f32.mxu0 0.0
  %438 = vmatmul.mubr.f32.gmra.mxu0 %v154
  %v439 = vpop.f32.mrf.mxu0
  %v440 = vadd.f32 %v108, %v439
  %v441 = vpop.f32.mrf.mxu0
  %442 = vmatprep.mubr.f32.mxu0 0.0
  %443 = vmatmul.mubr.f32.gmra.mxu0 %v157
  %v444 = vpop.f32.mrf.mxu0
  %v445 = vadd.f32 %v108, %v444
  %v446 = vpop.f32.mrf.mxu0
  %447 = vmatprep.mubr.f32.mxu0 0.0
  %448 = vmatmul.mubr.f32.gmra.mxu0 %v160
  %v449 = vpop.f32.mrf.mxu0
  %v450 = vadd.f32 %v108, %v449
  %v451 = vpop.f32.mrf.mxu0
  %452 = vmatprep.mubr.f32.mxu0 0.0
  %453 = vmatmul.mubr.f32.gmra.mxu0 %v163
  %v454 = vpop.f32.mrf.mxu0
  %v455 = vadd.f32 %v108, %v454
  %v456 = vpop.f32.mrf.mxu0
  %457 = vmatprep.mubr.f32.mxu0 0.0
  %458 = vmatmul.mubr.f32.gmra.mxu0 %v166
  %v459 = vpop.f32.mrf.mxu0
  %v460 = vadd.f32 %v108, %v459
  %v461 = vpop.f32.mrf.mxu0
  %462 = vmatprep.mubr.f32.mxu0 0.0
  %463 = vmatmul.mubr.f32.gmra.mxu0 %v169
  %v464 = vpop.f32.mrf.mxu0
  %v465 = vadd.f32 %v108, %v464
  %v466 = vpop.f32.mrf.mxu0
  %467 = vmatprep.mubr.f32.mxu0 0.0
  %468 = vmatmul.mubr.f32.gmra.mxu0 %v172
  %v469 = vpop.f32.mrf.mxu0
  %v470 = vadd.f32 %v108, %v469
  %v471 = vpop.f32.mrf.mxu0
  %472 = vmatprep.mubr.f32.mxu0 0.0
  %473 = vmatmul.mubr.f32.gmra.mxu0 %v175
  %v474 = vpop.f32.mrf.mxu0
  %v475 = vadd.f32 %v108, %v474
  %v476 = vpop.f32.mrf.mxu0
  %477 = vmatprep.mubr.f32.mxu0 0.0
  %478 = vmatmul.mubr.f32.gmra.mxu0 %v178
  %v479 = vpop.f32.mrf.mxu0
  %v480 = vadd.f32 %v108, %v479
  %v481 = vpop.f32.mrf.mxu0
  %482 = vmatprep.mubr.f32.mxu0 0.0
  %483 = vmatmul.mubr.f32.gmra.mxu0 %v181
  %v484 = vpop.f32.mrf.mxu0
  %v485 = vadd.f32 %v108, %v484
  %v486 = vpop.f32.mrf.mxu0
  %487 = vmatprep.mubr.f32.mxu0 0.0
  %488 = vmatmul.mubr.f32.gmra.mxu0 %v184
  %v489 = vpop.f32.mrf.mxu0
  %v490 = vadd.f32 %v108, %v489
  %v491 = vpop.f32.mrf.mxu0
  %492 = vmatprep.mubr.f32.mxu0 0.0
  %493 = vmatmul.mubr.f32.gmra.mxu0 %v187
  %v494 = vpop.f32.mrf.mxu0
  %v495 = vadd.f32 %v108, %v494
  %v496 = vpop.f32.mrf.mxu0
  %497 = vmatprep.mubr.f32.mxu0 0.0
  %498 = vmatmul.mubr.f32.gmra.mxu0 %v190
  %v499 = vpop.f32.mrf.mxu0
  %v500 = vadd.f32 %v108, %v499
  %v501 = vpop.f32.mrf.mxu0
  %502 = vmatprep.mubr.f32.mxu0 0.0
  %503 = vmatmul.mubr.f32.gmra.mxu0 %v193
  %v504 = vpop.f32.mrf.mxu0
  %v505 = vadd.f32 %v108, %v504
  %v506 = vpop.f32.mrf.mxu0
  %507 = vmatprep.mubr.f32.mxu0 0.0
  %508 = vmatmul.mubr.f32.gmra.mxu0 %v196
  %v509 = vpop.f32.mrf.mxu0
  %v510 = vadd.f32 %v108, %v509
  %v511 = vpop.f32.mrf.mxu0
  %512 = vmatprep.mubr.f32.mxu0 0.0
  %513 = vmatmul.mubr.f32.gmra.mxu0 %v199
  %v514 = vpop.f32.mrf.mxu0
  %v515 = vadd.f32 %v108, %v514
  %v516 = vpop.f32.mrf.mxu0
  %517 = vmatprep.mubr.f32.mxu0 0.0
  %518 = vmatmul.mubr.f32.gmra.mxu0 %v202
  %v519 = vpop.f32.mrf.mxu0
  %v520 = vadd.f32 %v108, %v519
  %v521 = vpop.f32.mrf.mxu0
  %522 = vmatprep.mubr.f32.mxu0 0.0
  %523 = vmatmul.mubr.f32.gmra.mxu0 %v205
  %v524 = vpop.f32.mrf.mxu0
  %v525 = vadd.f32 %v108, %v524
  %v526 = vpop.f32.mrf.mxu0
  %527 = vmatprep.mubr.f32.mxu0 0.0
  %528 = vmatmul.mubr.f32.gmra.mxu0 %v208
  %v529 = vpop.f32.mrf.mxu0
  %v530 = vadd.f32 %v108, %v529
  %v531 = vpop.f32.mrf.mxu0
  %532 = vmatprep.mubr.f32.mxu0 0.0
  %533 = vmatmul.mubr.f32.gmra.mxu0 %v211
  %v534 = vpop.f32.mrf.mxu0
  %v535 = vadd.f32 %v108, %v534
  %v536 = vpop.f32.mrf.mxu0
  %537 = vmatprep.mubr.f32.mxu0 0.0
  %538 = vmatmul.mubr.f32.gmra.mxu0 %v214
  %v539 = vpop.f32.mrf.mxu0
  %v540 = vadd.f32 %v108, %v539
  %v541 = vpop.f32.mrf.mxu0
  %542 = vmatprep.mubr.f32.mxu0 0.0
  %543 = vmatmul.mubr.f32.gmra.mxu0 %v217
  %v544 = vpop.f32.mrf.mxu0
  %v545 = vadd.f32 %v108, %v544
  %v546 = vpop.f32.mrf.mxu0
  %547 = vmatprep.mubr.f32.mxu0 0.0
  %548 = vmatmul.mubr.f32.gmra.mxu0 %v220
  %v549 = vpop.f32.mrf.mxu0
  %v550 = vadd.f32 %v108, %v549
  %v551 = vpop.f32.mrf.mxu0
  %552 = vmatprep.mubr.f32.mxu0 0.0
  %553 = vmatmul.mubr.f32.gmra.mxu0 %v223
  %v554 = vpop.f32.mrf.mxu0
  %v555 = vadd.f32 %v108, %v554
  %v556 = vpop.f32.mrf.mxu0
  %557 = vmatprep.mubr.f32.mxu0 0.0
  %558 = vmatmul.mubr.f32.gmra.mxu0 %v226
  %v559 = vpop.f32.mrf.mxu0
  %v560 = vadd.f32 %v108, %v559
  %v561 = vpop.f32.mrf.mxu0
  %562 = vmatprep.mubr.f32.mxu0 0.0
  %563 = vmatmul.mubr.f32.gmra.mxu0 %v229
  %v564 = vpop.f32.mrf.mxu0
  %v565 = vadd.f32 %v108, %v564
  %v566 = vpop.f32.mrf.mxu0
  %567 = vmatprep.mubr.f32.mxu0 0.0
  %568 = vmatmul.mubr.f32.gmra.mxu0 %v232
  %v569 = vpop.f32.mrf.mxu0
  %v570 = vadd.f32 %v108, %v569
  %v571 = vpop.f32.mrf.mxu0
  %572 = vmatprep.mubr.f32.mxu0 0.0
  %573 = vmatmul.mubr.f32.gmra.mxu0 %v235
  %v574 = vpop.f32.mrf.mxu0
  %v575 = vadd.f32 %v108, %v574
  %v576 = vpop.f32.mrf.mxu0
  %577 = vmatprep.mubr.f32.mxu0 0.0
  %578 = vmatmul.mubr.f32.gmra.mxu0 %v238
  %v579 = vpop.f32.mrf.mxu0
  %v580 = vadd.f32 %v108, %v579
  %v581 = vpop.f32.mrf.mxu0
  %582 = vmatprep.mubr.f32.mxu0 0.0
  %583 = vmatmul.mubr.f32.gmra.mxu0 %v241
  %v584 = vpop.f32.mrf.mxu0
  %v585 = vadd.f32 %v108, %v584
  %v586 = vpop.f32.mrf.mxu0
  %587 = vmatprep.mubr.f32.mxu0 0.0
  %588 = vmatmul.mubr.f32.gmra.mxu0 %v244
  %v589 = vpop.f32.mrf.mxu0
  %v590 = vadd.f32 %v108, %v589
  %v591 = vpop.f32.mrf.mxu0
  %592 = vmatprep.mubr.f32.mxu0 0.0
  %593 = vmatmul.mubr.f32.gmra.mxu0 %v247
  %v594 = vpop.f32.mrf.mxu0
  %v595 = vadd.f32 %v108, %v594
  %v596 = vpop.f32.mrf.mxu0
  %597 = vmatprep.mubr.f32.mxu0 0.0
  %598 = vmatmul.mubr.f32.gmra.mxu0 %v250
  %v599 = vpop.f32.mrf.mxu0
  %v600 = vadd.f32 %v108, %v599
  %v601 = vpop.f32.mrf.mxu0
  %602 = vmatprep.mubr.f32.mxu0 0.0
  %603 = vmatmul.mubr.f32.gmra.mxu0 %v253
  %v604 = vpop.f32.mrf.mxu0
  %v605 = vadd.f32 %v108, %v604
  %v606 = vpop.f32.mrf.mxu0
  %607 = vmatprep.mubr.f32.mxu0 0.0
  %608 = vmatmul.mubr.f32.gmra.mxu0 %v256
  %v609 = vpop.f32.mrf.mxu0
  %v610 = vadd.f32 %v108, %v609
  %v611 = vpop.f32.mrf.mxu0
  %612 = vmatprep.mubr.f32.mxu0 0.0
  %613 = vmatmul.mubr.f32.gmra.mxu0 %v259
  %v614 = vpop.f32.mrf.mxu0
  %v615 = vadd.f32 %v108, %v614
  %v616 = vpop.f32.mrf.mxu0
  %617 = vmatprep.mubr.f32.mxu0 0.0
  %618 = vmatmul.mubr.f32.gmra.mxu0 %v262
  %v619 = vpop.f32.mrf.mxu0
  %v620 = vadd.f32 %v108, %v619
  %v621 = vpop.f32.mrf.mxu0
  %622 = vmatprep.mubr.f32.mxu0 0.0
  %623 = vmatmul.mubr.f32.gmra.mxu0 %v265
  %v624 = vpop.f32.mrf.mxu0
  %v625 = vadd.f32 %v108, %v624
  %v626 = vpop.f32.mrf.mxu0
  %627 = vmatprep.mubr.f32.mxu0 0.0
  %628 = vmatmul.mubr.f32.gmra.mxu0 %v268
  %v629 = vpop.f32.mrf.mxu0
  %v630 = vadd.f32 %v108, %v629
  %v631 = vpop.f32.mrf.mxu0
  %632 = vmatprep.mubr.f32.mxu0 0.0
  %633 = vmatmul.mubr.f32.gmra.mxu0 %v271
  %v634 = vpop.f32.mrf.mxu0
  %v635 = vadd.f32 %v108, %v634
  %v636 = vpop.f32.mrf.mxu0
  %637 = vmatprep.mubr.f32.mxu0 0.0
  %638 = vmatmul.mubr.f32.gmra.mxu0 %v274
  %v639 = vpop.f32.mrf.mxu0
  %v640 = vadd.f32 %v108, %v639
  %v641 = vpop.f32.mrf.mxu0
  %642 = vmatprep.mubr.f32.mxu0 0.0
  %643 = vmatmul.mubr.f32.gmra.mxu0 %v277
  %v644 = vpop.f32.mrf.mxu0
  %v645 = vadd.f32 %v108, %v644
  %v646 = vpop.f32.mrf.mxu0
  %647 = vmatprep.mubr.f32.mxu0 0.0
  %648 = vmatmul.mubr.f32.gmra.mxu0 %v280
  %v649 = vpop.f32.mrf.mxu0
  %v650 = vadd.f32 %v108, %v649
  %v651 = vpop.f32.mrf.mxu0
  %652 = vmatprep.mubr.f32.mxu0 0.0
  %653 = vmatmul.mubr.f32.gmra.mxu0 %v283
  %v654 = vpop.f32.mrf.mxu0
  %v655 = vadd.f32 %v108, %v654
  %v656 = vpop.f32.mrf.mxu0
  %657 = vmatprep.mubr.f32.mxu0 0.0
  %658 = vmatmul.mubr.f32.gmra.mxu0 %v286
  %v659 = vpop.f32.mrf.mxu0
  %v660 = vadd.f32 %v108, %v659
  %v661 = vpop.f32.mrf.mxu0
  %662 = vmatprep.mubr.f32.mxu0 0.0
  %663 = vmatmul.mubr.f32.gmra.mxu0 %v289
  %v664 = vpop.f32.mrf.mxu0
  %v665 = vadd.f32 %v108, %v664
  %v666 = vpop.f32.mrf.mxu0
  %667 = vmatprep.mubr.f32.mxu0 0.0
  %668 = vmatmul.mubr.f32.gmra.mxu0 %v292
  %v669 = vpop.f32.mrf.mxu0
  %v670 = vadd.f32 %v108, %v669
  %v671 = vpop.f32.mrf.mxu0
  %672 = vmatprep.mubr.f32.mxu0 0.0
  %673 = vmatmul.mubr.f32.gmra.mxu0 %v295
  %v674 = vpop.f32.mrf.mxu0
  %v675 = vadd.f32 %v108, %v674
  %v676 = vpop.f32.mrf.mxu0
  %677 = vmatprep.mubr.f32.mxu0 0.0
  %678 = vmatmul.mubr.f32.gmra.mxu0 %v298
  %v679 = vpop.f32.mrf.mxu0
  %v680 = vadd.f32 %v108, %v679
  %v681 = vpop.f32.mrf.mxu0
  %682 = vmatprep.mubr.f32.mxu0 0.0
  %683 = vmatmul.mubr.f32.gmra.mxu0 %v301
  %v684 = vpop.f32.mrf.mxu0
  %v685 = vadd.f32 %v108, %v684
  %v686 = vpop.f32.mrf.mxu0
  %687 = vdwg.mxu0
  %688 = vst [vmem:[%s7] sm:$0xff] %v370
  %689 = vst [vmem:[%s7 + $0x8] sm:$0xff] %v375
  %690 = vst [vmem:[%s7 + $0x10] sm:$0xff] %v380
  %691 = vst [vmem:[%s7 + $0x18] sm:$0xff] %v385
  %692 = vst [vmem:[%s7 + $0x20] sm:$0xff] %v390
  %693 = vst [vmem:[%s7 + $0x28] sm:$0xff] %v395
  %694 = vst [vmem:[%s7 + $0x30] sm:$0xff] %v400
  %695 = vst [vmem:[%s7 + $0x38] sm:$0xff] %v405
  %696 = vst [vmem:[%s7 + $0x40] sm:$0xff] %v410
  %697 = vst [vmem:[%s7 + $0x48] sm:$0xff] %v415
  %698 = vst [vmem:[%s7 + $0x50] sm:$0xff] %v420
  %699 = vst [vmem:[%s7 + $0x58] sm:$0xff] %v425
  %700 = vst [vmem:[%s7 + $0x60] sm:$0xff] %v430
  %701 = vst [vmem:[%s7 + $0x68] sm:$0xff] %v435
  %702 = vst [vmem:[%s7 + $0x70] sm:$0xff] %v440
  %703 = vst [vmem:[%s7 + $0x78] sm:$0xff] %v445
  %704 = vst [vmem:[%s7 + $0x80] sm:$0xff] %v450
  %705 = vst [vmem:[%s7 + $0x88] sm:$0xff] %v455
  %706 = vst [vmem:[%s7 + $0x90] sm:$0xff] %v460
  %707 = vst [vmem:[%s7 + $0x98] sm:$0xff] %v465
  %708 = vst [vmem:[%s7 + $0xa0] sm:$0xff] %v470
  %709 = vst [vmem:[%s7 + $0xa8] sm:$0xff] %v475
  %710 = vst [vmem:[%s7 + $0xb0] sm:$0xff] %v480
  %711 = vst [vmem:[%s7 + $0xb8] sm:$0xff] %v485
  %712 = vst [vmem:[%s7 + $0xc0] sm:$0xff] %v490
  %713 = vst [vmem:[%s7 + $0xc8] sm:$0xff] %v495
  %714 = vst [vmem:[%s7 + $0xd0] sm:$0xff] %v500
  %715 = vst [vmem:[%s7 + $0xd8] sm:$0xff] %v505
  %716 = vst [vmem:[%s7 + $0xe0] sm:$0xff] %v510
  %717 = vst [vmem:[%s7 + $0xe8] sm:$0xff] %v515
  %718 = vst [vmem:[%s7 + $0xf0] sm:$0xff] %v520
  %719 = vst [vmem:[%s7 + $0xf8] sm:$0xff] %v525
  %720 = vst [vmem:[%s7 + $0x100] sm:$0xff] %v530
  %721 = vst [vmem:[%s7 + $0x108] sm:$0xff] %v535
  %722 = vst [vmem:[%s7 + $0x110] sm:$0xff] %v540
  %723 = vst [vmem:[%s7 + $0x118] sm:$0xff] %v545
  %724 = vst [vmem:[%s7 + $0x120] sm:$0xff] %v550
  %725 = vst [vmem:[%s7 + $0x128] sm:$0xff] %v555
  %726 = vst [vmem:[%s7 + $0x130] sm:$0xff] %v560
  %727 = vst [vmem:[%s7 + $0x138] sm:$0xff] %v565
  %728 = vst [vmem:[%s7 + $0x140] sm:$0xff] %v570
  %729 = vst [vmem:[%s7 + $0x148] sm:$0xff] %v575
  %730 = vst [vmem:[%s7 + $0x150] sm:$0xff] %v580
  %731 = vst [vmem:[%s7 + $0x158] sm:$0xff] %v585
  %732 = vst [vmem:[%s7 + $0x160] sm:$0xff] %v590
  %733 = vst [vmem:[%s7 + $0x168] sm:$0xff] %v595
  %734 = vst [vmem:[%s7 + $0x170] sm:$0xff] %v600
  %735 = vst [vmem:[%s7 + $0x178] sm:$0xff] %v605
  %736 = vst [vmem:[%s7 + $0x180] sm:$0xff] %v610
  %737 = vst [vmem:[%s7 + $0x188] sm:$0xff] %v615
  %738 = vst [vmem:[%s7 + $0x190] sm:$0xff] %v620
  %739 = vst [vmem:[%s7 + $0x198] sm:$0xff] %v625
  %740 = vst [vmem:[%s7 + $0x1a0] sm:$0xff] %v630
  %741 = vst [vmem:[%s7 + $0x1a8] sm:$0xff] %v635
  %742 = vst [vmem:[%s7 + $0x1b0] sm:$0xff] %v640
  %743 = vst [vmem:[%s7 + $0x1b8] sm:$0xff] %v645
  %744 = vst [vmem:[%s7 + $0x1c0] sm:$0xff] %v650
  %745 = vst [vmem:[%s7 + $0x1c8] sm:$0xff] %v655
  %746 = vst [vmem:[%s7 + $0x1d0] sm:$0xff] %v660
  %747 = vst [vmem:[%s7 + $0x1d8] sm:$0xff] %v665
  %748 = vst [vmem:[%s7 + $0x1e0] sm:$0xff] %v670
  %749 = vst [vmem:[%s7 + $0x1e8] sm:$0xff] %v675
  %750 = vst [vmem:[%s7 + $0x1f0] sm:$0xff] %v680
  %751 = vst [vmem:[%s7 + $0x1f8] sm:$0xff] %v685
  %v752 = vld [vmem:[%s3] sm:$0xff]
  %v753 = vld [vmem:[%s3 + $0x8] sm:$0xff]
  %v754 = vld [vmem:[%s3 + $0x10] sm:$0xff]
  %v755 = vld [vmem:[%s3 + $0x18] sm:$0xff]
  %v756 = vld [vmem:[%s3 + $0x20] sm:$0xff]
  %v757 = vld [vmem:[%s3 + $0x28] sm:$0xff]
  %v758 = vld [vmem:[%s3 + $0x30] sm:$0xff]
  %v759 = vld [vmem:[%s3 + $0x38] sm:$0xff]
  %v760 = vld [vmem:[%s4] sm:$0x1]
  %v762 = vlaneseq
  %v763 = vshrl.u32 %v762, 7
  %v764 = vsub.s32 0, %v763
  %v765 = vrot.slane %v760, %v764
  %767 = vmatprep.subr.mxu0 0.0
  %768 = vmatpush1.msra.mxu0 0.0
  %769 = vmatprep.subr.mxu0 0.0
  %770 = vmatpush1.msra.mxu0 0.0
  %771 = vmatprep.subr.mxu0 0.0
  %772 = vmatpush1.msra.mxu0 0.0
  %773 = vmatprep.subr.mxu0 0.0
  %774 = vmatpush1.msra.mxu0 0.0
  %775 = vmatprep.subr.mxu0 0.0
  %776 = vmatpush1.msra.mxu0 0.0
  %777 = vmatprep.subr.mxu0 0.0
  %778 = vmatpush1.msra.mxu0 0.0
  %779 = vmatprep.subr.mxu0 0.0
  %780 = vmatpush1.msra.mxu0 0.0
  %781 = vmatprep.subr.mxu0 0.0
  %782 = vmatpush1.msra.mxu0 0.0
  %783 = vmatprep.subr.mxu0 0.0
  %784 = vmatpush1.msra.mxu0 %v759
  %785 = vmatprep.subr.mxu0 0.0
  %786 = vmatpush1.msra.mxu0 %v758
  %787 = vmatprep.subr.mxu0 0.0
  %788 = vmatpush1.msra.mxu0 %v757
  %789 = vmatprep.subr.mxu0 0.0
  %790 = vmatpush1.msra.mxu0 %v756
  %791 = vmatprep.subr.mxu0 0.0
  %792 = vmatpush1.msra.mxu0 %v755
  %793 = vmatprep.subr.mxu0 0.0
  %794 = vmatpush1.msra.mxu0 %v754
  %795 = vmatprep.subr.mxu0 0.0
  %796 = vmatpush1.msra.mxu0 %v753
  %797 = vmatprep.subr.mxu0 0.0
  %798 = vmatpush1.msra.mxu0 %v752
  %799 = vmatprep.subr.mxu0 0.0
  %800 = vmatpush2.msra.mxu0 0.0
  %801 = vmatprep.subr.mxu0 0.0
  %802 = vmatpush2.msra.mxu0 0.0
  %803 = vmatprep.subr.mxu0 0.0
  %804 = vmatpush2.msra.mxu0 0.0
  %805 = vmatprep.subr.mxu0 0.0
  %806 = vmatpush2.msra.mxu0 0.0
  %807 = vmatprep.subr.mxu0 0.0
  %808 = vmatpush2.msra.mxu0 0.0
  %809 = vmatprep.subr.mxu0 0.0
  %810 = vmatpush2.msra.mxu0 0.0
  %811 = vmatprep.subr.mxu0 0.0
  %812 = vmatpush2.msra.mxu0 0.0
  %813 = vmatprep.subr.mxu0 0.0
  %814 = vmatpush2.msra.mxu0 0.0
  %815 = vmatprep.subr.mxu0 0.0
  %816 = vmatpush2.msra.mxu0 0.0
  %817 = vmatprep.subr.mxu0 0.0
  %818 = vmatpush2.msra.mxu0 0.0
  %819 = vmatprep.subr.mxu0 0.0
  %820 = vmatpush2.msra.mxu0 0.0
  %821 = vmatprep.subr.mxu0 0.0
  %822 = vmatpush2.msra.mxu0 0.0
  %823 = vmatprep.subr.mxu0 0.0
  %824 = vmatpush2.msra.mxu0 0.0
  %825 = vmatprep.subr.mxu0 0.0
  %826 = vmatpush2.msra.mxu0 0.0
  %827 = vmatprep.subr.mxu0 0.0
  %828 = vmatpush2.msra.mxu0 0.0
  %829 = vmatprep.subr.mxu0 0.0
  %830 = vmatpush2.msra.mxu0 0.0
  %831 = vmatprep.mubr.f32.mxu0 0.0
  %832 = vmatmul.mubr.f32.gmra.mxu0 %v112
  %v833 = vpop.f32.mrf.mxu0
  %v834 = vadd.f32 %v765, %v833
  %v835 = vpop.f32.mrf.mxu0
  %836 = vmatprep.mubr.f32.mxu0 0.0
  %837 = vmatmul.mubr.f32.gmra.mxu0 %v115
  %v838 = vpop.f32.mrf.mxu0
  %v839 = vadd.f32 %v765, %v838
  %v840 = vpop.f32.mrf.mxu0
  %841 = vmatprep.mubr.f32.mxu0 0.0
  %842 = vmatmul.mubr.f32.gmra.mxu0 %v118
  %v843 = vpop.f32.mrf.mxu0
  %v844 = vadd.f32 %v765, %v843
  %v845 = vpop.f32.mrf.mxu0
  %846 = vmatprep.mubr.f32.mxu0 0.0
  %847 = vmatmul.mubr.f32.gmra.mxu0 %v121
  %v848 = vpop.f32.mrf.mxu0
  %v849 = vadd.f32 %v765, %v848
  %v850 = vpop.f32.mrf.mxu0
  %851 = vmatprep.mubr.f32.mxu0 0.0
  %852 = vmatmul.mubr.f32.gmra.mxu0 %v124
  %v853 = vpop.f32.mrf.mxu0
  %v854 = vadd.f32 %v765, %v853
  %v855 = vpop.f32.mrf.mxu0
  %856 = vmatprep.mubr.f32.mxu0 0.0
  %857 = vmatmul.mubr.f32.gmra.mxu0 %v127
  %v858 = vpop.f32.mrf.mxu0
  %v859 = vadd.f32 %v765, %v858
  %v860 = vpop.f32.mrf.mxu0
  %861 = vmatprep.mubr.f32.mxu0 0.0
  %862 = vmatmul.mubr.f32.gmra.mxu0 %v130
  %v863 = vpop.f32.mrf.mxu0
  %v864 = vadd.f32 %v765, %v863
  %v865 = vpop.f32.mrf.mxu0
  %866 = vmatprep.mubr.f32.mxu0 0.0
  %867 = vmatmul.mubr.f32.gmra.mxu0 %v133
  %v868 = vpop.f32.mrf.mxu0
  %v869 = vadd.f32 %v765, %v868
  %v870 = vpop.f32.mrf.mxu0
  %871 = vmatprep.mubr.f32.mxu0 0.0
  %872 = vmatmul.mubr.f32.gmra.mxu0 %v136
  %v873 = vpop.f32.mrf.mxu0
  %v874 = vadd.f32 %v765, %v873
  %v875 = vpop.f32.mrf.mxu0
  %876 = vmatprep.mubr.f32.mxu0 0.0
  %877 = vmatmul.mubr.f32.gmra.mxu0 %v139
  %v878 = vpop.f32.mrf.mxu0
  %v879 = vadd.f32 %v765, %v878
  %v880 = vpop.f32.mrf.mxu0
  %881 = vmatprep.mubr.f32.mxu0 0.0
  %882 = vmatmul.mubr.f32.gmra.mxu0 %v142
  %v883 = vpop.f32.mrf.mxu0
  %v884 = vadd.f32 %v765, %v883
  %v885 = vpop.f32.mrf.mxu0
  %886 = vmatprep.mubr.f32.mxu0 0.0
  %887 = vmatmul.mubr.f32.gmra.mxu0 %v145
  %v888 = vpop.f32.mrf.mxu0
  %v889 = vadd.f32 %v765, %v888
  %v890 = vpop.f32.mrf.mxu0
  %891 = vmatprep.mubr.f32.mxu0 0.0
  %892 = vmatmul.mubr.f32.gmra.mxu0 %v148
  %v893 = vpop.f32.mrf.mxu0
  %v894 = vadd.f32 %v765, %v893
  %v895 = vpop.f32.mrf.mxu0
  %896 = vmatprep.mubr.f32.mxu0 0.0
  %897 = vmatmul.mubr.f32.gmra.mxu0 %v151
  %v898 = vpop.f32.mrf.mxu0
  %v899 = vadd.f32 %v765, %v898
  %v900 = vpop.f32.mrf.mxu0
  %901 = vmatprep.mubr.f32.mxu0 0.0
  %902 = vmatmul.mubr.f32.gmra.mxu0 %v154
  %v903 = vpop.f32.mrf.mxu0
  %v904 = vadd.f32 %v765, %v903
  %v905 = vpop.f32.mrf.mxu0
  %906 = vmatprep.mubr.f32.mxu0 0.0
  %907 = vmatmul.mubr.f32.gmra.mxu0 %v157
  %v908 = vpop.f32.mrf.mxu0
  %v909 = vadd.f32 %v765, %v908
  %v910 = vpop.f32.mrf.mxu0
  %911 = vmatprep.mubr.f32.mxu0 0.0
  %912 = vmatmul.mubr.f32.gmra.mxu0 %v160
  %v913 = vpop.f32.mrf.mxu0
  %v914 = vadd.f32 %v765, %v913
  %v915 = vpop.f32.mrf.mxu0
  %916 = vmatprep.mubr.f32.mxu0 0.0
  %917 = vmatmul.mubr.f32.gmra.mxu0 %v163
  %v918 = vpop.f32.mrf.mxu0
  %v919 = vadd.f32 %v765, %v918
  %v920 = vpop.f32.mrf.mxu0
  %921 = vmatprep.mubr.f32.mxu0 0.0
  %922 = vmatmul.mubr.f32.gmra.mxu0 %v166
  %v923 = vpop.f32.mrf.mxu0
  %v924 = vadd.f32 %v765, %v923
  %v925 = vpop.f32.mrf.mxu0
  %926 = vmatprep.mubr.f32.mxu0 0.0
  %927 = vmatmul.mubr.f32.gmra.mxu0 %v169
  %v928 = vpop.f32.mrf.mxu0
  %v929 = vadd.f32 %v765, %v928
  %v930 = vpop.f32.mrf.mxu0
  %931 = vmatprep.mubr.f32.mxu0 0.0
  %932 = vmatmul.mubr.f32.gmra.mxu0 %v172
  %v933 = vpop.f32.mrf.mxu0
  %v934 = vadd.f32 %v765, %v933
  %v935 = vpop.f32.mrf.mxu0
  %936 = vmatprep.mubr.f32.mxu0 0.0
  %937 = vmatmul.mubr.f32.gmra.mxu0 %v175
  %v938 = vpop.f32.mrf.mxu0
  %v939 = vadd.f32 %v765, %v938
  %v940 = vpop.f32.mrf.mxu0
  %941 = vmatprep.mubr.f32.mxu0 0.0
  %942 = vmatmul.mubr.f32.gmra.mxu0 %v178
  %v943 = vpop.f32.mrf.mxu0
  %v944 = vadd.f32 %v765, %v943
  %v945 = vpop.f32.mrf.mxu0
  %946 = vmatprep.mubr.f32.mxu0 0.0
  %947 = vmatmul.mubr.f32.gmra.mxu0 %v181
  %v948 = vpop.f32.mrf.mxu0
  %v949 = vadd.f32 %v765, %v948
  %v950 = vpop.f32.mrf.mxu0
  %951 = vmatprep.mubr.f32.mxu0 0.0
  %952 = vmatmul.mubr.f32.gmra.mxu0 %v184
  %v953 = vpop.f32.mrf.mxu0
  %v954 = vadd.f32 %v765, %v953
  %v955 = vpop.f32.mrf.mxu0
  %956 = vmatprep.mubr.f32.mxu0 0.0
  %957 = vmatmul.mubr.f32.gmra.mxu0 %v187
  %v958 = vpop.f32.mrf.mxu0
  %v959 = vadd.f32 %v765, %v958
  %v960 = vpop.f32.mrf.mxu0
  %961 = vmatprep.mubr.f32.mxu0 0.0
  %962 = vmatmul.mubr.f32.gmra.mxu0 %v190
  %v963 = vpop.f32.mrf.mxu0
  %v964 = vadd.f32 %v765, %v963
  %v965 = vpop.f32.mrf.mxu0
  %966 = vmatprep.mubr.f32.mxu0 0.0
  %967 = vmatmul.mubr.f32.gmra.mxu0 %v193
  %v968 = vpop.f32.mrf.mxu0
  %v969 = vadd.f32 %v765, %v968
  %v970 = vpop.f32.mrf.mxu0
  %971 = vmatprep.mubr.f32.mxu0 0.0
  %972 = vmatmul.mubr.f32.gmra.mxu0 %v196
  %v973 = vpop.f32.mrf.mxu0
  %v974 = vadd.f32 %v765, %v973
  %v975 = vpop.f32.mrf.mxu0
  %976 = vmatprep.mubr.f32.mxu0 0.0
  %977 = vmatmul.mubr.f32.gmra.mxu0 %v199
  %v978 = vpop.f32.mrf.mxu0
  %v979 = vadd.f32 %v765, %v978
  %v980 = vpop.f32.mrf.mxu0
  %981 = vmatprep.mubr.f32.mxu0 0.0
  %982 = vmatmul.mubr.f32.gmra.mxu0 %v202
  %v983 = vpop.f32.mrf.mxu0
  %v984 = vadd.f32 %v765, %v983
  %v985 = vpop.f32.mrf.mxu0
  %986 = vmatprep.mubr.f32.mxu0 0.0
  %987 = vmatmul.mubr.f32.gmra.mxu0 %v205
  %v988 = vpop.f32.mrf.mxu0
  %v989 = vadd.f32 %v765, %v988
  %v990 = vpop.f32.mrf.mxu0
  %991 = vmatprep.mubr.f32.mxu0 0.0
  %992 = vmatmul.mubr.f32.gmra.mxu0 %v208
  %v993 = vpop.f32.mrf.mxu0
  %v994 = vadd.f32 %v765, %v993
  %v995 = vpop.f32.mrf.mxu0
  %996 = vmatprep.mubr.f32.mxu0 0.0
  %997 = vmatmul.mubr.f32.gmra.mxu0 %v211
  %v998 = vpop.f32.mrf.mxu0
  %v999 = vadd.f32 %v765, %v998
  %v1000 = vpop.f32.mrf.mxu0
  %1001 = vmatprep.mubr.f32.mxu0 0.0
  %1002 = vmatmul.mubr.f32.gmra.mxu0 %v214
  %v1003 = vpop.f32.mrf.mxu0
  %v1004 = vadd.f32 %v765, %v1003
  %v1005 = vpop.f32.mrf.mxu0
  %1006 = vmatprep.mubr.f32.mxu0 0.0
  %1007 = vmatmul.mubr.f32.gmra.mxu0 %v217
  %v1008 = vpop.f32.mrf.mxu0
  %v1009 = vadd.f32 %v765, %v1008
  %v1010 = vpop.f32.mrf.mxu0
  %1011 = vmatprep.mubr.f32.mxu0 0.0
  %1012 = vmatmul.mubr.f32.gmra.mxu0 %v220
  %v1013 = vpop.f32.mrf.mxu0
  %v1014 = vadd.f32 %v765, %v1013
  %v1015 = vpop.f32.mrf.mxu0
  %1016 = vmatprep.mubr.f32.mxu0 0.0
  %1017 = vmatmul.mubr.f32.gmra.mxu0 %v223
  %v1018 = vpop.f32.mrf.mxu0
  %v1019 = vadd.f32 %v765, %v1018
  %v1020 = vpop.f32.mrf.mxu0
  %1021 = vmatprep.mubr.f32.mxu0 0.0
  %1022 = vmatmul.mubr.f32.gmra.mxu0 %v226
  %v1023 = vpop.f32.mrf.mxu0
  %v1024 = vadd.f32 %v765, %v1023
  %v1025 = vpop.f32.mrf.mxu0
  %1026 = vmatprep.mubr.f32.mxu0 0.0
  %1027 = vmatmul.mubr.f32.gmra.mxu0 %v229
  %v1028 = vpop.f32.mrf.mxu0
  %v1029 = vadd.f32 %v765, %v1028
  %v1030 = vpop.f32.mrf.mxu0
  %1031 = vmatprep.mubr.f32.mxu0 0.0
  %1032 = vmatmul.mubr.f32.gmra.mxu0 %v232
  %v1033 = vpop.f32.mrf.mxu0
  %v1034 = vadd.f32 %v765, %v1033
  %v1035 = vpop.f32.mrf.mxu0
  %1036 = vmatprep.mubr.f32.mxu0 0.0
  %1037 = vmatmul.mubr.f32.gmra.mxu0 %v235
  %v1038 = vpop.f32.mrf.mxu0
  %v1039 = vadd.f32 %v765, %v1038
  %v1040 = vpop.f32.mrf.mxu0
  %1041 = vmatprep.mubr.f32.mxu0 0.0
  %1042 = vmatmul.mubr.f32.gmra.mxu0 %v238
  %v1043 = vpop.f32.mrf.mxu0
  %v1044 = vadd.f32 %v765, %v1043
  %v1045 = vpop.f32.mrf.mxu0
  %1046 = vmatprep.mubr.f32.mxu0 0.0
  %1047 = vmatmul.mubr.f32.gmra.mxu0 %v241
  %v1048 = vpop.f32.mrf.mxu0
  %v1049 = vadd.f32 %v765, %v1048
  %v1050 = vpop.f32.mrf.mxu0
  %1051 = vmatprep.mubr.f32.mxu0 0.0
  %1052 = vmatmul.mubr.f32.gmra.mxu0 %v244
  %v1053 = vpop.f32.mrf.mxu0
  %v1054 = vadd.f32 %v765, %v1053
  %v1055 = vpop.f32.mrf.mxu0
  %1056 = vmatprep.mubr.f32.mxu0 0.0
  %1057 = vmatmul.mubr.f32.gmra.mxu0 %v247
  %v1058 = vpop.f32.mrf.mxu0
  %v1059 = vadd.f32 %v765, %v1058
  %v1060 = vpop.f32.mrf.mxu0
  %1061 = vmatprep.mubr.f32.mxu0 0.0
  %1062 = vmatmul.mubr.f32.gmra.mxu0 %v250
  %v1063 = vpop.f32.mrf.mxu0
  %v1064 = vadd.f32 %v765, %v1063
  %v1065 = vpop.f32.mrf.mxu0
  %1066 = vmatprep.mubr.f32.mxu0 0.0
  %1067 = vmatmul.mubr.f32.gmra.mxu0 %v253
  %v1068 = vpop.f32.mrf.mxu0
  %v1069 = vadd.f32 %v765, %v1068
  %v1070 = vpop.f32.mrf.mxu0
  %1071 = vmatprep.mubr.f32.mxu0 0.0
  %1072 = vmatmul.mubr.f32.gmra.mxu0 %v256
  %v1073 = vpop.f32.mrf.mxu0
  %v1074 = vadd.f32 %v765, %v1073
  %v1075 = vpop.f32.mrf.mxu0
  %1076 = vmatprep.mubr.f32.mxu0 0.0
  %1077 = vmatmul.mubr.f32.gmra.mxu0 %v259
  %v1078 = vpop.f32.mrf.mxu0
  %v1079 = vadd.f32 %v765, %v1078
  %v1080 = vpop.f32.mrf.mxu0
  %1081 = vmatprep.mubr.f32.mxu0 0.0
  %1082 = vmatmul.mubr.f32.gmra.mxu0 %v262
  %v1083 = vpop.f32.mrf.mxu0
  %v1084 = vadd.f32 %v765, %v1083
  %v1085 = vpop.f32.mrf.mxu0
  %1086 = vmatprep.mubr.f32.mxu0 0.0
  %1087 = vmatmul.mubr.f32.gmra.mxu0 %v265
  %v1088 = vpop.f32.mrf.mxu0
  %v1089 = vadd.f32 %v765, %v1088
  %v1090 = vpop.f32.mrf.mxu0
  %1091 = vmatprep.mubr.f32.mxu0 0.0
  %1092 = vmatmul.mubr.f32.gmra.mxu0 %v268
  %v1093 = vpop.f32.mrf.mxu0
  %v1094 = vadd.f32 %v765, %v1093
  %v1095 = vpop.f32.mrf.mxu0
  %1096 = vmatprep.mubr.f32.mxu0 0.0
  %1097 = vmatmul.mubr.f32.gmra.mxu0 %v271
  %v1098 = vpop.f32.mrf.mxu0
  %v1099 = vadd.f32 %v765, %v1098
  %v1100 = vpop.f32.mrf.mxu0
  %1101 = vmatprep.mubr.f32.mxu0 0.0
  %1102 = vmatmul.mubr.f32.gmra.mxu0 %v274
  %v1103 = vpop.f32.mrf.mxu0
  %v1104 = vadd.f32 %v765, %v1103
  %v1105 = vpop.f32.mrf.mxu0
  %1106 = vmatprep.mubr.f32.mxu0 0.0
  %1107 = vmatmul.mubr.f32.gmra.mxu0 %v277
  %v1108 = vpop.f32.mrf.mxu0
  %v1109 = vadd.f32 %v765, %v1108
  %v1110 = vpop.f32.mrf.mxu0
  %1111 = vmatprep.mubr.f32.mxu0 0.0
  %1112 = vmatmul.mubr.f32.gmra.mxu0 %v280
  %v1113 = vpop.f32.mrf.mxu0
  %v1114 = vadd.f32 %v765, %v1113
  %v1115 = vpop.f32.mrf.mxu0
  %1116 = vmatprep.mubr.f32.mxu0 0.0
  %1117 = vmatmul.mubr.f32.gmra.mxu0 %v283
  %v1118 = vpop.f32.mrf.mxu0
  %v1119 = vadd.f32 %v765, %v1118
  %v1120 = vpop.f32.mrf.mxu0
  %1121 = vmatprep.mubr.f32.mxu0 0.0
  %1122 = vmatmul.mubr.f32.gmra.mxu0 %v286
  %v1123 = vpop.f32.mrf.mxu0
  %v1124 = vadd.f32 %v765, %v1123
  %v1125 = vpop.f32.mrf.mxu0
  %1126 = vmatprep.mubr.f32.mxu0 0.0
  %1127 = vmatmul.mubr.f32.gmra.mxu0 %v289
  %v1128 = vpop.f32.mrf.mxu0
  %v1129 = vadd.f32 %v765, %v1128
  %v1130 = vpop.f32.mrf.mxu0
  %1131 = vmatprep.mubr.f32.mxu0 0.0
  %1132 = vmatmul.mubr.f32.gmra.mxu0 %v292
  %v1133 = vpop.f32.mrf.mxu0
  %v1134 = vadd.f32 %v765, %v1133
  %v1135 = vpop.f32.mrf.mxu0
  %1136 = vmatprep.mubr.f32.mxu0 0.0
  %1137 = vmatmul.mubr.f32.gmra.mxu0 %v295
  %v1138 = vpop.f32.mrf.mxu0
  %v1139 = vadd.f32 %v765, %v1138
  %v1140 = vpop.f32.mrf.mxu0
  %1141 = vmatprep.mubr.f32.mxu0 0.0
  %1142 = vmatmul.mubr.f32.gmra.mxu0 %v298
  %v1143 = vpop.f32.mrf.mxu0
  %v1144 = vadd.f32 %v765, %v1143
  %v1145 = vpop.f32.mrf.mxu0
  %1146 = vmatprep.mubr.f32.mxu0 0.0
  %1147 = vmatmul.mubr.f32.gmra.mxu0 %v301
  %v1148 = vpop.f32.mrf.mxu0
  %v1149 = vadd.f32 %v765, %v1148
  %v1150 = vpop.f32.mrf.mxu0
  %1151 = vdwg.mxu0
  %v1152 = vmax.f32 %v834, 0.0
  %v1153 = vmax.f32 %v839, 0.0
  %v1154 = vmax.f32 %v844, 0.0
  %v1155 = vmax.f32 %v849, 0.0
  %v1156 = vmax.f32 %v854, 0.0
  %v1157 = vmax.f32 %v859, 0.0
  %v1158 = vmax.f32 %v864, 0.0
  %v1159 = vmax.f32 %v869, 0.0
  %v1160 = vmax.f32 %v874, 0.0
  %v1161 = vmax.f32 %v879, 0.0
  %v1162 = vmax.f32 %v884, 0.0
  %v1163 = vmax.f32 %v889, 0.0
  %v1164 = vmax.f32 %v894, 0.0
  %v1165 = vmax.f32 %v899, 0.0
  %v1166 = vmax.f32 %v904, 0.0
  %v1167 = vmax.f32 %v909, 0.0
  %v1168 = vmax.f32 %v914, 0.0
  %v1169 = vmax.f32 %v919, 0.0
  %v1170 = vmax.f32 %v924, 0.0
  %v1171 = vmax.f32 %v929, 0.0
  %v1172 = vmax.f32 %v934, 0.0
  %v1173 = vmax.f32 %v939, 0.0
  %v1174 = vmax.f32 %v944, 0.0
  %v1175 = vmax.f32 %v949, 0.0
  %v1176 = vmax.f32 %v954, 0.0
  %v1177 = vmax.f32 %v959, 0.0
  %v1178 = vmax.f32 %v964, 0.0
  %v1179 = vmax.f32 %v969, 0.0
  %v1180 = vmax.f32 %v974, 0.0
  %v1181 = vmax.f32 %v979, 0.0
  %v1182 = vmax.f32 %v984, 0.0
  %v1183 = vmax.f32 %v989, 0.0
  %v1184 = vmax.f32 %v994, 0.0
  %v1185 = vmax.f32 %v999, 0.0
  %v1186 = vmax.f32 %v1004, 0.0
  %v1187 = vmax.f32 %v1009, 0.0
  %v1188 = vmax.f32 %v1014, 0.0
  %v1189 = vmax.f32 %v1019, 0.0
  %v1190 = vmax.f32 %v1024, 0.0
  %v1191 = vmax.f32 %v1029, 0.0
  %v1192 = vmax.f32 %v1034, 0.0
  %v1193 = vmax.f32 %v1039, 0.0
  %v1194 = vmax.f32 %v1044, 0.0
  %v1195 = vmax.f32 %v1049, 0.0
  %v1196 = vmax.f32 %v1054, 0.0
  %v1197 = vmax.f32 %v1059, 0.0
  %v1198 = vmax.f32 %v1064, 0.0
  %v1199 = vmax.f32 %v1069, 0.0
  %v1200 = vmax.f32 %v1074, 0.0
  %v1201 = vmax.f32 %v1079, 0.0
  %v1202 = vmax.f32 %v1084, 0.0
  %v1203 = vmax.f32 %v1089, 0.0
  %v1204 = vmax.f32 %v1094, 0.0
  %v1205 = vmax.f32 %v1099, 0.0
  %v1206 = vmax.f32 %v1104, 0.0
  %v1207 = vmax.f32 %v1109, 0.0
  %v1208 = vmax.f32 %v1114, 0.0
  %v1209 = vmax.f32 %v1119, 0.0
  %v1210 = vmax.f32 %v1124, 0.0
  %v1211 = vmax.f32 %v1129, 0.0
  %v1212 = vmax.f32 %v1134, 0.0
  %v1213 = vmax.f32 %v1139, 0.0
  %v1214 = vmax.f32 %v1144, 0.0
  %v1215 = vmax.f32 %v1149, 0.0
  %v1216 = vld [vmem:[%s5] sm:$0x1]
  %v1218 = vlaneseq
  %v1219 = vshrl.u32 %v1218, 7
  %v1220 = vsub.s32 0, %v1219
  %v1221 = vrot.slane %v1216, %v1220
  %v1223 = vmul.f32 %v1152, %v1221
  %v1224 = vmul.f32 %v1153, %v1221
  %v1225 = vmul.f32 %v1154, %v1221
  %v1226 = vmul.f32 %v1155, %v1221
  %v1227 = vmul.f32 %v1156, %v1221
  %v1228 = vmul.f32 %v1157, %v1221
  %v1229 = vmul.f32 %v1158, %v1221
  %v1230 = vmul.f32 %v1159, %v1221
  %v1231 = vmul.f32 %v1160, %v1221
  %v1232 = vmul.f32 %v1161, %v1221
  %v1233 = vmul.f32 %v1162, %v1221
  %v1234 = vmul.f32 %v1163, %v1221
  %v1235 = vmul.f32 %v1164, %v1221
  %v1236 = vmul.f32 %v1165, %v1221
  %v1237 = vmul.f32 %v1166, %v1221
  %v1238 = vmul.f32 %v1167, %v1221
  %v1239 = vmul.f32 %v1168, %v1221
  %v1240 = vmul.f32 %v1169, %v1221
  %v1241 = vmul.f32 %v1170, %v1221
  %v1242 = vmul.f32 %v1171, %v1221
  %v1243 = vmul.f32 %v1172, %v1221
  %v1244 = vmul.f32 %v1173, %v1221
  %v1245 = vmul.f32 %v1174, %v1221
  %v1246 = vmul.f32 %v1175, %v1221
  %v1247 = vmul.f32 %v1176, %v1221
  %v1248 = vmul.f32 %v1177, %v1221
  %v1249 = vmul.f32 %v1178, %v1221
  %v1250 = vmul.f32 %v1179, %v1221
  %v1251 = vmul.f32 %v1180, %v1221
  %v1252 = vmul.f32 %v1181, %v1221
  %v1253 = vmul.f32 %v1182, %v1221
  %v1254 = vmul.f32 %v1183, %v1221
  %v1255 = vmul.f32 %v1184, %v1221
  %v1256 = vmul.f32 %v1185, %v1221
  %v1257 = vmul.f32 %v1186, %v1221
  %v1258 = vmul.f32 %v1187, %v1221
  %v1259 = vmul.f32 %v1188, %v1221
  %v1260 = vmul.f32 %v1189, %v1221
  %v1261 = vmul.f32 %v1190, %v1221
  %v1262 = vmul.f32 %v1191, %v1221
  %v1263 = vmul.f32 %v1192, %v1221
  %v1264 = vmul.f32 %v1193, %v1221
  %v1265 = vmul.f32 %v1194, %v1221
  %v1266 = vmul.f32 %v1195, %v1221
  %v1267 = vmul.f32 %v1196, %v1221
  %v1268 = vmul.f32 %v1197, %v1221
  %v1269 = vmul.f32 %v1198, %v1221
  %v1270 = vmul.f32 %v1199, %v1221
  %v1271 = vmul.f32 %v1200, %v1221
  %v1272 = vmul.f32 %v1201, %v1221
  %v1273 = vmul.f32 %v1202, %v1221
  %v1274 = vmul.f32 %v1203, %v1221
  %v1275 = vmul.f32 %v1204, %v1221
  %v1276 = vmul.f32 %v1205, %v1221
  %v1277 = vmul.f32 %v1206, %v1221
  %v1278 = vmul.f32 %v1207, %v1221
  %v1279 = vmul.f32 %v1208, %v1221
  %v1280 = vmul.f32 %v1209, %v1221
  %v1281 = vmul.f32 %v1210, %v1221
  %v1282 = vmul.f32 %v1211, %v1221
  %v1283 = vmul.f32 %v1212, %v1221
  %v1284 = vmul.f32 %v1213, %v1221
  %v1285 = vmul.f32 %v1214, %v1221
  %v1286 = vmul.f32 %v1215, %v1221
  %v1287 = vsel %vm110, %v1223, 0.0
  %1288 = vadd.xlane.f32.xlu0 %v1287
  %v1289 = vpop.xlane.xlu0 %1288
  %v1290 = vsel %vm110, %v1224, 0.0
  %1291 = vadd.xlane.f32.xlu0 %v1290
  %v1292 = vpop.xlane.xlu0 %1291
  %v1293 = vsel %vm110, %v1225, 0.0
  %1294 = vadd.xlane.f32.xlu0 %v1293
  %v1295 = vpop.xlane.xlu0 %1294
  %v1296 = vsel %vm110, %v1226, 0.0
  %1297 = vadd.xlane.f32.xlu0 %v1296
  %v1298 = vpop.xlane.xlu0 %1297
  %v1299 = vsel %vm110, %v1227, 0.0
  %1300 = vadd.xlane.f32.xlu0 %v1299
  %v1301 = vpop.xlane.xlu0 %1300
  %v1302 = vsel %vm110, %v1228, 0.0
  %1303 = vadd.xlane.f32.xlu0 %v1302
  %v1304 = vpop.xlane.xlu0 %1303
  %v1305 = vsel %vm110, %v1229, 0.0
  %1306 = vadd.xlane.f32.xlu0 %v1305
  %v1307 = vpop.xlane.xlu0 %1306
  %v1308 = vsel %vm110, %v1230, 0.0
  %1309 = vadd.xlane.f32.xlu0 %v1308
  %v1310 = vpop.xlane.xlu0 %1309
  %v1311 = vsel %vm110, %v1231, 0.0
  %1312 = vadd.xlane.f32.xlu0 %v1311
  %v1313 = vpop.xlane.xlu0 %1312
  %v1314 = vsel %vm110, %v1232, 0.0
  %1315 = vadd.xlane.f32.xlu0 %v1314
  %v1316 = vpop.xlane.xlu0 %1315
  %v1317 = vsel %vm110, %v1233, 0.0
  %1318 = vadd.xlane.f32.xlu0 %v1317
  %v1319 = vpop.xlane.xlu0 %1318
  %v1320 = vsel %vm110, %v1234, 0.0
  %1321 = vadd.xlane.f32.xlu0 %v1320
  %v1322 = vpop.xlane.xlu0 %1321
  %v1323 = vsel %vm110, %v1235, 0.0
  %1324 = vadd.xlane.f32.xlu0 %v1323
  %v1325 = vpop.xlane.xlu0 %1324
  %v1326 = vsel %vm110, %v1236, 0.0
  %1327 = vadd.xlane.f32.xlu0 %v1326
  %v1328 = vpop.xlane.xlu0 %1327
  %v1329 = vsel %vm110, %v1237, 0.0
  %1330 = vadd.xlane.f32.xlu0 %v1329
  %v1331 = vpop.xlane.xlu0 %1330
  %v1332 = vsel %vm110, %v1238, 0.0
  %1333 = vadd.xlane.f32.xlu0 %v1332
  %v1334 = vpop.xlane.xlu0 %1333
  %v1335 = vsel %vm110, %v1239, 0.0
  %1336 = vadd.xlane.f32.xlu0 %v1335
  %v1337 = vpop.xlane.xlu0 %1336
  %v1338 = vsel %vm110, %v1240, 0.0
  %1339 = vadd.xlane.f32.xlu0 %v1338
  %v1340 = vpop.xlane.xlu0 %1339
  %v1341 = vsel %vm110, %v1241, 0.0
  %1342 = vadd.xlane.f32.xlu0 %v1341
  %v1343 = vpop.xlane.xlu0 %1342
  %v1344 = vsel %vm110, %v1242, 0.0
  %1345 = vadd.xlane.f32.xlu0 %v1344
  %v1346 = vpop.xlane.xlu0 %1345
  %v1347 = vsel %vm110, %v1243, 0.0
  %1348 = vadd.xlane.f32.xlu0 %v1347
  %v1349 = vpop.xlane.xlu0 %1348
  %v1350 = vsel %vm110, %v1244, 0.0
  %1351 = vadd.xlane.f32.xlu0 %v1350
  %v1352 = vpop.xlane.xlu0 %1351
  %v1353 = vsel %vm110, %v1245, 0.0
  %1354 = vadd.xlane.f32.xlu0 %v1353
  %v1355 = vpop.xlane.xlu0 %1354
  %v1356 = vsel %vm110, %v1246, 0.0
  %1357 = vadd.xlane.f32.xlu0 %v1356
  %v1358 = vpop.xlane.xlu0 %1357
  %v1359 = vsel %vm110, %v1247, 0.0
  %1360 = vadd.xlane.f32.xlu0 %v1359
  %v1361 = vpop.xlane.xlu0 %1360
  %v1362 = vsel %vm110, %v1248, 0.0
  %1363 = vadd.xlane.f32.xlu0 %v1362
  %v1364 = vpop.xlane.xlu0 %1363
  %v1365 = vsel %vm110, %v1249, 0.0
  %1366 = vadd.xlane.f32.xlu0 %v1365
  %v1367 = vpop.xlane.xlu0 %1366
  %v1368 = vsel %vm110, %v1250, 0.0
  %1369 = vadd.xlane.f32.xlu0 %v1368
  %v1370 = vpop.xlane.xlu0 %1369
  %v1371 = vsel %vm110, %v1251, 0.0
  %1372 = vadd.xlane.f32.xlu0 %v1371
  %v1373 = vpop.xlane.xlu0 %1372
  %v1374 = vsel %vm110, %v1252, 0.0
  %1375 = vadd.xlane.f32.xlu0 %v1374
  %v1376 = vpop.xlane.xlu0 %1375
  %v1377 = vsel %vm110, %v1253, 0.0
  %1378 = vadd.xlane.f32.xlu0 %v1377
  %v1379 = vpop.xlane.xlu0 %1378
  %v1380 = vsel %vm110, %v1254, 0.0
  %1381 = vadd.xlane.f32.xlu0 %v1380
  %v1382 = vpop.xlane.xlu0 %1381
  %v1383 = vsel %vm110, %v1255, 0.0
  %1384 = vadd.xlane.f32.xlu0 %v1383
  %v1385 = vpop.xlane.xlu0 %1384
  %v1386 = vsel %vm110, %v1256, 0.0
  %1387 = vadd.xlane.f32.xlu0 %v1386
  %v1388 = vpop.xlane.xlu0 %1387
  %v1389 = vsel %vm110, %v1257, 0.0
  %1390 = vadd.xlane.f32.xlu0 %v1389
  %v1391 = vpop.xlane.xlu0 %1390
  %v1392 = vsel %vm110, %v1258, 0.0
  %1393 = vadd.xlane.f32.xlu0 %v1392
  %v1394 = vpop.xlane.xlu0 %1393
  %v1395 = vsel %vm110, %v1259, 0.0
  %1396 = vadd.xlane.f32.xlu0 %v1395
  %v1397 = vpop.xlane.xlu0 %1396
  %v1398 = vsel %vm110, %v1260, 0.0
  %1399 = vadd.xlane.f32.xlu0 %v1398
  %v1400 = vpop.xlane.xlu0 %1399
  %v1401 = vsel %vm110, %v1261, 0.0
  %1402 = vadd.xlane.f32.xlu0 %v1401
  %v1403 = vpop.xlane.xlu0 %1402
  %v1404 = vsel %vm110, %v1262, 0.0
  %1405 = vadd.xlane.f32.xlu0 %v1404
  %v1406 = vpop.xlane.xlu0 %1405
  %v1407 = vsel %vm110, %v1263, 0.0
  %1408 = vadd.xlane.f32.xlu0 %v1407
  %v1409 = vpop.xlane.xlu0 %1408
  %v1410 = vsel %vm110, %v1264, 0.0
  %1411 = vadd.xlane.f32.xlu0 %v1410
  %v1412 = vpop.xlane.xlu0 %1411
  %v1413 = vsel %vm110, %v1265, 0.0
  %1414 = vadd.xlane.f32.xlu0 %v1413
  %v1415 = vpop.xlane.xlu0 %1414
  %v1416 = vsel %vm110, %v1266, 0.0
  %1417 = vadd.xlane.f32.xlu0 %v1416
  %v1418 = vpop.xlane.xlu0 %1417
  %v1419 = vsel %vm110, %v1267, 0.0
  %1420 = vadd.xlane.f32.xlu0 %v1419
  %v1421 = vpop.xlane.xlu0 %1420
  %v1422 = vsel %vm110, %v1268, 0.0
  %1423 = vadd.xlane.f32.xlu0 %v1422
  %v1424 = vpop.xlane.xlu0 %1423
  %v1425 = vsel %vm110, %v1269, 0.0
  %1426 = vadd.xlane.f32.xlu0 %v1425
  %v1427 = vpop.xlane.xlu0 %1426
  %v1428 = vsel %vm110, %v1270, 0.0
  %1429 = vadd.xlane.f32.xlu0 %v1428
  %v1430 = vpop.xlane.xlu0 %1429
  %v1431 = vsel %vm110, %v1271, 0.0
  %1432 = vadd.xlane.f32.xlu0 %v1431
  %v1433 = vpop.xlane.xlu0 %1432
  %v1434 = vsel %vm110, %v1272, 0.0
  %1435 = vadd.xlane.f32.xlu0 %v1434
  %v1436 = vpop.xlane.xlu0 %1435
  %v1437 = vsel %vm110, %v1273, 0.0
  %1438 = vadd.xlane.f32.xlu0 %v1437
  %v1439 = vpop.xlane.xlu0 %1438
  %v1440 = vsel %vm110, %v1274, 0.0
  %1441 = vadd.xlane.f32.xlu0 %v1440
  %v1442 = vpop.xlane.xlu0 %1441
  %v1443 = vsel %vm110, %v1275, 0.0
  %1444 = vadd.xlane.f32.xlu0 %v1443
  %v1445 = vpop.xlane.xlu0 %1444
  %v1446 = vsel %vm110, %v1276, 0.0
  %1447 = vadd.xlane.f32.xlu0 %v1446
  %v1448 = vpop.xlane.xlu0 %1447
  %v1449 = vsel %vm110, %v1277, 0.0
  %1450 = vadd.xlane.f32.xlu0 %v1449
  %v1451 = vpop.xlane.xlu0 %1450
  %v1452 = vsel %vm110, %v1278, 0.0
  %1453 = vadd.xlane.f32.xlu0 %v1452
  %v1454 = vpop.xlane.xlu0 %1453
  %v1455 = vsel %vm110, %v1279, 0.0
  %1456 = vadd.xlane.f32.xlu0 %v1455
  %v1457 = vpop.xlane.xlu0 %1456
  %v1458 = vsel %vm110, %v1280, 0.0
  %1459 = vadd.xlane.f32.xlu0 %v1458
  %v1460 = vpop.xlane.xlu0 %1459
  %v1461 = vsel %vm110, %v1281, 0.0
  %1462 = vadd.xlane.f32.xlu0 %v1461
  %v1463 = vpop.xlane.xlu0 %1462
  %v1464 = vsel %vm110, %v1282, 0.0
  %1465 = vadd.xlane.f32.xlu0 %v1464
  %v1466 = vpop.xlane.xlu0 %1465
  %v1467 = vsel %vm110, %v1283, 0.0
  %1468 = vadd.xlane.f32.xlu0 %v1467
  %v1469 = vpop.xlane.xlu0 %1468
  %v1470 = vsel %vm110, %v1284, 0.0
  %1471 = vadd.xlane.f32.xlu0 %v1470
  %v1472 = vpop.xlane.xlu0 %1471
  %v1473 = vsel %vm110, %v1285, 0.0
  %1474 = vadd.xlane.f32.xlu0 %v1473
  %v1475 = vpop.xlane.xlu0 %1474
  %v1476 = vsel %vm110, %v1286, 0.0
  %1477 = vadd.xlane.f32.xlu0 %v1476
  %v1478 = vpop.xlane.xlu0 %1477
  %v1479 = vld [vmem:[#allocation2] sm:$0x1]
  %v1481 = vlaneseq
  %v1482 = vshrl.u32 %v1481, 7
  %v1483 = vsub.s32 0, %v1482
  %v1484 = vrot.slane %v1479, %v1483
  %v1486 = vadd.f32 %v1289, %v1484
  %v1487 = vadd.f32 %v1292, %v1484
  %v1488 = vadd.f32 %v1295, %v1484
  %v1489 = vadd.f32 %v1298, %v1484
  %v1490 = vadd.f32 %v1301, %v1484
  %v1491 = vadd.f32 %v1304, %v1484
  %v1492 = vadd.f32 %v1307, %v1484
  %v1493 = vadd.f32 %v1310, %v1484
  %v1494 = vadd.f32 %v1313, %v1484
  %v1495 = vadd.f32 %v1316, %v1484
  %v1496 = vadd.f32 %v1319, %v1484
  %v1497 = vadd.f32 %v1322, %v1484
  %v1498 = vadd.f32 %v1325, %v1484
  %v1499 = vadd.f32 %v1328, %v1484
  %v1500 = vadd.f32 %v1331, %v1484
  %v1501 = vadd.f32 %v1334, %v1484
  %v1502 = vadd.f32 %v1337, %v1484
  %v1503 = vadd.f32 %v1340, %v1484
  %v1504 = vadd.f32 %v1343, %v1484
  %v1505 = vadd.f32 %v1346, %v1484
  %v1506 = vadd.f32 %v1349, %v1484
  %v1507 = vadd.f32 %v1352, %v1484
  %v1508 = vadd.f32 %v1355, %v1484
  %v1509 = vadd.f32 %v1358, %v1484
  %v1510 = vadd.f32 %v1361, %v1484
  %v1511 = vadd.f32 %v1364, %v1484
  %v1512 = vadd.f32 %v1367, %v1484
  %v1513 = vadd.f32 %v1370, %v1484
  %v1514 = vadd.f32 %v1373, %v1484
  %v1515 = vadd.f32 %v1376, %v1484
  %v1516 = vadd.f32 %v1379, %v1484
  %v1517 = vadd.f32 %v1382, %v1484
  %v1518 = vadd.f32 %v1385, %v1484
  %v1519 = vadd.f32 %v1388, %v1484
  %v1520 = vadd.f32 %v1391, %v1484
  %v1521 = vadd.f32 %v1394, %v1484
  %v1522 = vadd.f32 %v1397, %v1484
  %v1523 = vadd.f32 %v1400, %v1484
  %v1524 = vadd.f32 %v1403, %v1484
  %v1525 = vadd.f32 %v1406, %v1484
  %v1526 = vadd.f32 %v1409, %v1484
  %v1527 = vadd.f32 %v1412, %v1484
  %v1528 = vadd.f32 %v1415, %v1484
  %v1529 = vadd.f32 %v1418, %v1484
  %v1530 = vadd.f32 %v1421, %v1484
  %v1531 = vadd.f32 %v1424, %v1484
  %v1532 = vadd.f32 %v1427, %v1484
  %v1533 = vadd.f32 %v1430, %v1484
  %v1534 = vadd.f32 %v1433, %v1484
  %v1535 = vadd.f32 %v1436, %v1484
  %v1536 = vadd.f32 %v1439, %v1484
  %v1537 = vadd.f32 %v1442, %v1484
  %v1538 = vadd.f32 %v1445, %v1484
  %v1539 = vadd.f32 %v1448, %v1484
  %v1540 = vadd.f32 %v1451, %v1484
  %v1541 = vadd.f32 %v1454, %v1484
  %v1542 = vadd.f32 %v1457, %v1484
  %v1543 = vadd.f32 %v1460, %v1484
  %v1544 = vadd.f32 %v1463, %v1484
  %v1545 = vadd.f32 %v1466, %v1484
  %v1546 = vadd.f32 %v1469, %v1484
  %v1547 = vadd.f32 %v1472, %v1484
  %v1548 = vadd.f32 %v1475, %v1484
  %v1549 = vadd.f32 %v1478, %v1484
  %v1550 = vxor.u32 %v1486, 2147483648
  %v1551 = vxor.u32 %v1487, 2147483648
  %v1552 = vxor.u32 %v1488, 2147483648
  %v1553 = vxor.u32 %v1489, 2147483648
  %v1554 = vxor.u32 %v1490, 2147483648
  %v1555 = vxor.u32 %v1491, 2147483648
  %v1556 = vxor.u32 %v1492, 2147483648
  %v1557 = vxor.u32 %v1493, 2147483648
  %v1558 = vxor.u32 %v1494, 2147483648
  %v1559 = vxor.u32 %v1495, 2147483648
  %v1560 = vxor.u32 %v1496, 2147483648
  %v1561 = vxor.u32 %v1497, 2147483648
  %v1562 = vxor.u32 %v1498, 2147483648
  %v1563 = vxor.u32 %v1499, 2147483648
  %v1564 = vxor.u32 %v1500, 2147483648
  %v1565 = vxor.u32 %v1501, 2147483648
  %v1566 = vxor.u32 %v1502, 2147483648
  %v1567 = vxor.u32 %v1503, 2147483648
  %v1568 = vxor.u32 %v1504, 2147483648
  %v1569 = vxor.u32 %v1505, 2147483648
  %v1570 = vxor.u32 %v1506, 2147483648
  %v1571 = vxor.u32 %v1507, 2147483648
  %v1572 = vxor.u32 %v1508, 2147483648
  %v1573 = vxor.u32 %v1509, 2147483648
  %v1574 = vxor.u32 %v1510, 2147483648
  %v1575 = vxor.u32 %v1511, 2147483648
  %v1576 = vxor.u32 %v1512, 2147483648
  %v1577 = vxor.u32 %v1513, 2147483648
  %v1578 = vxor.u32 %v1514, 2147483648
  %v1579 = vxor.u32 %v1515, 2147483648
  %v1580 = vxor.u32 %v1516, 2147483648
  %v1581 = vxor.u32 %v1517, 2147483648
  %v1582 = vxor.u32 %v1518, 2147483648
  %v1583 = vxor.u32 %v1519, 2147483648
  %v1584 = vxor.u32 %v1520, 2147483648
  %v1585 = vxor.u32 %v1521, 2147483648
  %v1586 = vxor.u32 %v1522, 2147483648
  %v1587 = vxor.u32 %v1523, 2147483648
  %v1588 = vxor.u32 %v1524, 2147483648
  %v1589 = vxor.u32 %v1525, 2147483648
  %v1590 = vxor.u32 %v1526, 2147483648
  %v1591 = vxor.u32 %v1527, 2147483648
  %v1592 = vxor.u32 %v1528, 2147483648
  %v1593 = vxor.u32 %v1529, 2147483648
  %v1594 = vxor.u32 %v1530, 2147483648
  %v1595 = vxor.u32 %v1531, 2147483648
  %v1596 = vxor.u32 %v1532, 2147483648
  %v1597 = vxor.u32 %v1533, 2147483648
  %v1598 = vxor.u32 %v1534, 2147483648
  %v1599 = vxor.u32 %v1535, 2147483648
  %v1600 = vxor.u32 %v1536, 2147483648
  %v1601 = vxor.u32 %v1537, 2147483648
  %v1602 = vxor.u32 %v1538, 2147483648
  %v1603 = vxor.u32 %v1539, 2147483648
  %v1604 = vxor.u32 %v1540, 2147483648
  %v1605 = vxor.u32 %v1541, 2147483648
  %v1606 = vxor.u32 %v1542, 2147483648
  %v1607 = vxor.u32 %v1543, 2147483648
  %v1608 = vxor.u32 %v1544, 2147483648
  %v1609 = vxor.u32 %v1545, 2147483648
  %v1610 = vxor.u32 %v1546, 2147483648
  %v1611 = vxor.u32 %v1547, 2147483648
  %v1612 = vxor.u32 %v1548, 2147483648
  %v1613 = vxor.u32 %v1549, 2147483648
  %v1614 = vmul.f32 %v1550, 1.442695
  %v1615 = vpow.pop %v1614
  %v1616 = vmul.f32 %v1551, 1.442695
  %v1617 = vpow.pop %v1616
  %v1618 = vmul.f32 %v1552, 1.442695
  %v1619 = vpow.pop %v1618
  %v1620 = vmul.f32 %v1553, 1.442695
  %v1621 = vpow.pop %v1620
  %v1622 = vmul.f32 %v1554, 1.442695
  %v1623 = vpow.pop %v1622
  %v1624 = vmul.f32 %v1555, 1.442695
  %v1625 = vpow.pop %v1624
  %v1626 = vmul.f32 %v1556, 1.442695
  %v1627 = vpow.pop %v1626
  %v1628 = vmul.f32 %v1557, 1.442695
  %v1629 = vpow.pop %v1628
  %v1630 = vmul.f32 %v1558, 1.442695
  %v1631 = vpow.pop %v1630
  %v1632 = vmul.f32 %v1559, 1.442695
  %v1633 = vpow.pop %v1632
  %v1634 = vmul.f32 %v1560, 1.442695
  %v1635 = vpow.pop %v1634
  %v1636 = vmul.f32 %v1561, 1.442695
  %v1637 = vpow.pop %v1636
  %v1638 = vmul.f32 %v1562, 1.442695
  %v1639 = vpow.pop %v1638
  %v1640 = vmul.f32 %v1563, 1.442695
  %v1641 = vpow.pop %v1640
  %v1642 = vmul.f32 %v1564, 1.442695
  %v1643 = vpow.pop %v1642
  %v1644 = vmul.f32 %v1565, 1.442695
  %v1645 = vpow.pop %v1644
  %v1646 = vmul.f32 %v1566, 1.442695
  %v1647 = vpow.pop %v1646
  %v1648 = vmul.f32 %v1567, 1.442695
  %v1649 = vpow.pop %v1648
  %v1650 = vmul.f32 %v1568, 1.442695
  %v1651 = vpow.pop %v1650
  %v1652 = vmul.f32 %v1569, 1.442695
  %v1653 = vpow.pop %v1652
  %v1654 = vmul.f32 %v1570, 1.442695
  %v1655 = vpow.pop %v1654
  %v1656 = vmul.f32 %v1571, 1.442695
  %v1657 = vpow.pop %v1656
  %v1658 = vmul.f32 %v1572, 1.442695
  %v1659 = vpow.pop %v1658
  %v1660 = vmul.f32 %v1573, 1.442695
  %v1661 = vpow.pop %v1660
  %v1662 = vmul.f32 %v1574, 1.442695
  %v1663 = vpow.pop %v1662
  %v1664 = vmul.f32 %v1575, 1.442695
  %v1665 = vpow.pop %v1664
  %v1666 = vmul.f32 %v1576, 1.442695
  %v1667 = vpow.pop %v1666
  %v1668 = vmul.f32 %v1577, 1.442695
  %v1669 = vpow.pop %v1668
  %v1670 = vmul.f32 %v1578, 1.442695
  %v1671 = vpow.pop %v1670
  %v1672 = vmul.f32 %v1579, 1.442695
  %v1673 = vpow.pop %v1672
  %v1674 = vmul.f32 %v1580, 1.442695
  %v1675 = vpow.pop %v1674
  %v1676 = vmul.f32 %v1581, 1.442695
  %v1677 = vpow.pop %v1676
  %v1678 = vmul.f32 %v1582, 1.442695
  %v1679 = vpow.pop %v1678
  %v1680 = vmul.f32 %v1583, 1.442695
  %v1681 = vpow.pop %v1680
  %v1682 = vmul.f32 %v1584, 1.442695
  %v1683 = vpow.pop %v1682
  %v1684 = vmul.f32 %v1585, 1.442695
  %v1685 = vpow.pop %v1684
  %v1686 = vmul.f32 %v1586, 1.442695
  %v1687 = vpow.pop %v1686
  %v1688 = vmul.f32 %v1587, 1.442695
  %v1689 = vpow.pop %v1688
  %v1690 = vmul.f32 %v1588, 1.442695
  %v1691 = vpow.pop %v1690
  %v1692 = vmul.f32 %v1589, 1.442695
  %v1693 = vpow.pop %v1692
  %v1694 = vmul.f32 %v1590, 1.442695
  %v1695 = vpow.pop %v1694
  %v1696 = vmul.f32 %v1591, 1.442695
  %v1697 = vpow.pop %v1696
  %v1698 = vmul.f32 %v1592, 1.442695
  %v1699 = vpow.pop %v1698
  %v1700 = vmul.f32 %v1593, 1.442695
  %v1701 = vpow.pop %v1700
  %v1702 = vmul.f32 %v1594, 1.442695
  %v1703 = vpow.pop %v1702
  %v1704 = vmul.f32 %v1595, 1.442695
  %v1705 = vpow.pop %v1704
  %v1706 = vmul.f32 %v1596, 1.442695
  %v1707 = vpow.pop %v1706
  %v1708 = vmul.f32 %v1597, 1.442695
  %v1709 = vpow.pop %v1708
  %v1710 = vmul.f32 %v1598, 1.442695
  %v1711 = vpow.pop %v1710
  %v1712 = vmul.f32 %v1599, 1.442695
  %v1713 = vpow.pop %v1712
  %v1714 = vmul.f32 %v1600, 1.442695
  %v1715 = vpow.pop %v1714
  %v1716 = vmul.f32 %v1601, 1.442695
  %v1717 = vpow.pop %v1716
  %v1718 = vmul.f32 %v1602, 1.442695
  %v1719 = vpow.pop %v1718
  %v1720 = vmul.f32 %v1603, 1.442695
  %v1721 = vpow.pop %v1720
  %v1722 = vmul.f32 %v1604, 1.442695
  %v1723 = vpow.pop %v1722
  %v1724 = vmul.f32 %v1605, 1.442695
  %v1725 = vpow.pop %v1724
  %v1726 = vmul.f32 %v1606, 1.442695
  %v1727 = vpow.pop %v1726
  %v1728 = vmul.f32 %v1607, 1.442695
  %v1729 = vpow.pop %v1728
  %v1730 = vmul.f32 %v1608, 1.442695
  %v1731 = vpow.pop %v1730
  %v1732 = vmul.f32 %v1609, 1.442695
  %v1733 = vpow.pop %v1732
  %v1734 = vmul.f32 %v1610, 1.442695
  %v1735 = vpow.pop %v1734
  %v1736 = vmul.f32 %v1611, 1.442695
  %v1737 = vpow.pop %v1736
  %v1738 = vmul.f32 %v1612, 1.442695
  %v1739 = vpow.pop %v1738
  %v1740 = vmul.f32 %v1613, 1.442695
  %v1741 = vpow.pop %v1740
  %v1742 = vadd.f32 %v1615, 1.0
  %v1743 = vadd.f32 %v1617, 1.0
  %v1744 = vadd.f32 %v1619, 1.0
  %v1745 = vadd.f32 %v1621, 1.0
  %v1746 = vadd.f32 %v1623, 1.0
  %v1747 = vadd.f32 %v1625, 1.0
  %v1748 = vadd.f32 %v1627, 1.0
  %v1749 = vadd.f32 %v1629, 1.0
  %v1750 = vadd.f32 %v1631, 1.0
  %v1751 = vadd.f32 %v1633, 1.0
  %v1752 = vadd.f32 %v1635, 1.0
  %v1753 = vadd.f32 %v1637, 1.0
  %v1754 = vadd.f32 %v1639, 1.0
  %v1755 = vadd.f32 %v1641, 1.0
  %v1756 = vadd.f32 %v1643, 1.0
  %v1757 = vadd.f32 %v1645, 1.0
  %v1758 = vadd.f32 %v1647, 1.0
  %v1759 = vadd.f32 %v1649, 1.0
  %v1760 = vadd.f32 %v1651, 1.0
  %v1761 = vadd.f32 %v1653, 1.0
  %v1762 = vadd.f32 %v1655, 1.0
  %v1763 = vadd.f32 %v1657, 1.0
  %v1764 = vadd.f32 %v1659, 1.0
  %v1765 = vadd.f32 %v1661, 1.0
  %v1766 = vadd.f32 %v1663, 1.0
  %v1767 = vadd.f32 %v1665, 1.0
  %v1768 = vadd.f32 %v1667, 1.0
  %v1769 = vadd.f32 %v1669, 1.0
  %v1770 = vadd.f32 %v1671, 1.0
  %v1771 = vadd.f32 %v1673, 1.0
  %v1772 = vadd.f32 %v1675, 1.0
  %v1773 = vadd.f32 %v1677, 1.0
  %v1774 = vadd.f32 %v1679, 1.0
  %v1775 = vadd.f32 %v1681, 1.0
  %v1776 = vadd.f32 %v1683, 1.0
  %v1777 = vadd.f32 %v1685, 1.0
  %v1778 = vadd.f32 %v1687, 1.0
  %v1779 = vadd.f32 %v1689, 1.0
  %v1780 = vadd.f32 %v1691, 1.0
  %v1781 = vadd.f32 %v1693, 1.0
  %v1782 = vadd.f32 %v1695, 1.0
  %v1783 = vadd.f32 %v1697, 1.0
  %v1784 = vadd.f32 %v1699, 1.0
  %v1785 = vadd.f32 %v1701, 1.0
  %v1786 = vadd.f32 %v1703, 1.0
  %v1787 = vadd.f32 %v1705, 1.0
  %v1788 = vadd.f32 %v1707, 1.0
  %v1789 = vadd.f32 %v1709, 1.0
  %v1790 = vadd.f32 %v1711, 1.0
  %v1791 = vadd.f32 %v1713, 1.0
  %v1792 = vadd.f32 %v1715, 1.0
  %v1793 = vadd.f32 %v1717, 1.0
  %v1794 = vadd.f32 %v1719, 1.0
  %v1795 = vadd.f32 %v1721, 1.0
  %v1796 = vadd.f32 %v1723, 1.0
  %v1797 = vadd.f32 %v1725, 1.0
  %v1798 = vadd.f32 %v1727, 1.0
  %v1799 = vadd.f32 %v1729, 1.0
  %v1800 = vadd.f32 %v1731, 1.0
  %v1801 = vadd.f32 %v1733, 1.0
  %v1802 = vadd.f32 %v1735, 1.0
  %v1803 = vadd.f32 %v1737, 1.0
  %v1804 = vadd.f32 %v1739, 1.0
  %v1805 = vadd.f32 %v1741, 1.0
  %v1806 = vrcp.pop %v1742
  %v1807 = vmul.f32 1.0, %v1806
  %v1808 = vrcp.pop %v1743
  %v1809 = vmul.f32 1.0, %v1808
  %v1810 = vrcp.pop %v1744
  %v1811 = vmul.f32 1.0, %v1810
  %v1812 = vrcp.pop %v1745
  %v1813 = vmul.f32 1.0, %v1812
  %v1814 = vrcp.pop %v1746
  %v1815 = vmul.f32 1.0, %v1814
  %v1816 = vrcp.pop %v1747
  %v1817 = vmul.f32 1.0, %v1816
  %v1818 = vrcp.pop %v1748
  %v1819 = vmul.f32 1.0, %v1818
  %v1820 = vrcp.pop %v1749
  %v1821 = vmul.f32 1.0, %v1820
  %v1822 = vrcp.pop %v1750
  %v1823 = vmul.f32 1.0, %v1822
  %v1824 = vrcp.pop %v1751
  %v1825 = vmul.f32 1.0, %v1824
  %v1826 = vrcp.pop %v1752
  %v1827 = vmul.f32 1.0, %v1826
  %v1828 = vrcp.pop %v1753
  %v1829 = vmul.f32 1.0, %v1828
  %v1830 = vrcp.pop %v1754
  %v1831 = vmul.f32 1.0, %v1830
  %v1832 = vrcp.pop %v1755
  %v1833 = vmul.f32 1.0, %v1832
  %v1834 = vrcp.pop %v1756
  %v1835 = vmul.f32 1.0, %v1834
  %v1836 = vrcp.pop %v1757
  %v1837 = vmul.f32 1.0, %v1836
  %v1838 = vrcp.pop %v1758
  %v1839 = vmul.f32 1.0, %v1838
  %v1840 = vrcp.pop %v1759
  %v1841 = vmul.f32 1.0, %v1840
  %v1842 = vrcp.pop %v1760
  %v1843 = vmul.f32 1.0, %v1842
  %v1844 = vrcp.pop %v1761
  %v1845 = vmul.f32 1.0, %v1844
  %v1846 = vrcp.pop %v1762
  %v1847 = vmul.f32 1.0, %v1846
  %v1848 = vrcp.pop %v1763
  %v1849 = vmul.f32 1.0, %v1848
  %v1850 = vrcp.pop %v1764
  %v1851 = vmul.f32 1.0, %v1850
  %v1852 = vrcp.pop %v1765
  %v1853 = vmul.f32 1.0, %v1852
  %v1854 = vrcp.pop %v1766
  %v1855 = vmul.f32 1.0, %v1854
  %v1856 = vrcp.pop %v1767
  %v1857 = vmul.f32 1.0, %v1856
  %v1858 = vrcp.pop %v1768
  %v1859 = vmul.f32 1.0, %v1858
  %v1860 = vrcp.pop %v1769
  %v1861 = vmul.f32 1.0, %v1860
  %v1862 = vrcp.pop %v1770
  %v1863 = vmul.f32 1.0, %v1862
  %v1864 = vrcp.pop %v1771
  %v1865 = vmul.f32 1.0, %v1864
  %v1866 = vrcp.pop %v1772
  %v1867 = vmul.f32 1.0, %v1866
  %v1868 = vrcp.pop %v1773
  %v1869 = vmul.f32 1.0, %v1868
  %v1870 = vrcp.pop %v1774
  %v1871 = vmul.f32 1.0, %v1870
  %v1872 = vrcp.pop %v1775
  %v1873 = vmul.f32 1.0, %v1872
  %v1874 = vrcp.pop %v1776
  %v1875 = vmul.f32 1.0, %v1874
  %v1876 = vrcp.pop %v1777
  %v1877 = vmul.f32 1.0, %v1876
  %v1878 = vrcp.pop %v1778
  %v1879 = vmul.f32 1.0, %v1878
  %v1880 = vrcp.pop %v1779
  %v1881 = vmul.f32 1.0, %v1880
  %v1882 = vrcp.pop %v1780
  %v1883 = vmul.f32 1.0, %v1882
  %v1884 = vrcp.pop %v1781
  %v1885 = vmul.f32 1.0, %v1884
  %v1886 = vrcp.pop %v1782
  %v1887 = vmul.f32 1.0, %v1886
  %v1888 = vrcp.pop %v1783
  %v1889 = vmul.f32 1.0, %v1888
  %v1890 = vrcp.pop %v1784
  %v1891 = vmul.f32 1.0, %v1890
  %v1892 = vrcp.pop %v1785
  %v1893 = vmul.f32 1.0, %v1892
  %v1894 = vrcp.pop %v1786
  %v1895 = vmul.f32 1.0, %v1894
  %v1896 = vrcp.pop %v1787
  %v1897 = vmul.f32 1.0, %v1896
  %v1898 = vrcp.pop %v1788
  %v1899 = vmul.f32 1.0, %v1898
  %v1900 = vrcp.pop %v1789
  %v1901 = vmul.f32 1.0, %v1900
  %v1902 = vrcp.pop %v1790
  %v1903 = vmul.f32 1.0, %v1902
  %v1904 = vrcp.pop %v1791
  %v1905 = vmul.f32 1.0, %v1904
  %v1906 = vrcp.pop %v1792
  %v1907 = vmul.f32 1.0, %v1906
  %v1908 = vrcp.pop %v1793
  %v1909 = vmul.f32 1.0, %v1908
  %v1910 = vrcp.pop %v1794
  %v1911 = vmul.f32 1.0, %v1910
  %v1912 = vrcp.pop %v1795
  %v1913 = vmul.f32 1.0, %v1912
  %v1914 = vrcp.pop %v1796
  %v1915 = vmul.f32 1.0, %v1914
  %v1916 = vrcp.pop %v1797
  %v1917 = vmul.f32 1.0, %v1916
  %v1918 = vrcp.pop %v1798
  %v1919 = vmul.f32 1.0, %v1918
  %v1920 = vrcp.pop %v1799
  %v1921 = vmul.f32 1.0, %v1920
  %v1922 = vrcp.pop %v1800
  %v1923 = vmul.f32 1.0, %v1922
  %v1924 = vrcp.pop %v1801
  %v1925 = vmul.f32 1.0, %v1924
  %v1926 = vrcp.pop %v1802
  %v1927 = vmul.f32 1.0, %v1926
  %v1928 = vrcp.pop %v1803
  %v1929 = vmul.f32 1.0, %v1928
  %v1930 = vrcp.pop %v1804
  %v1931 = vmul.f32 1.0, %v1930
  %v1932 = vrcp.pop %v1805
  %v1933 = vmul.f32 1.0, %v1932
  %vm1934 = vcmask 7168
  %1935 = vst.msk [vmem:[%s8] sm:$0xff] %vm1934, %v1807
  %1936 = vst.msk [vmem:[%s8 + $0x8] sm:$0xff] %vm1934, %v1809
  %1937 = vst.msk [vmem:[%s8 + $0x10] sm:$0xff] %vm1934, %v1811
  %1938 = vst.msk [vmem:[%s8 + $0x18] sm:$0xff] %vm1934, %v1813
  %1939 = vst.msk [vmem:[%s8 + $0x20] sm:$0xff] %vm1934, %v1815
  %1940 = vst.msk [vmem:[%s8 + $0x28] sm:$0xff] %vm1934, %v1817
  %1941 = vst.msk [vmem:[%s8 + $0x30] sm:$0xff] %vm1934, %v1819
  %1942 = vst.msk [vmem:[%s8 + $0x38] sm:$0xff] %vm1934, %v1821
  %1943 = vst.msk [vmem:[%s8 + $0x40] sm:$0xff] %vm1934, %v1823
  %1944 = vst.msk [vmem:[%s8 + $0x48] sm:$0xff] %vm1934, %v1825
  %1945 = vst.msk [vmem:[%s8 + $0x50] sm:$0xff] %vm1934, %v1827
  %1946 = vst.msk [vmem:[%s8 + $0x58] sm:$0xff] %vm1934, %v1829
  %1947 = vst.msk [vmem:[%s8 + $0x60] sm:$0xff] %vm1934, %v1831
  %1948 = vst.msk [vmem:[%s8 + $0x68] sm:$0xff] %vm1934, %v1833
  %1949 = vst.msk [vmem:[%s8 + $0x70] sm:$0xff] %vm1934, %v1835
  %1950 = vst.msk [vmem:[%s8 + $0x78] sm:$0xff] %vm1934, %v1837
  %1951 = vst.msk [vmem:[%s8 + $0x80] sm:$0xff] %vm1934, %v1839
  %1952 = vst.msk [vmem:[%s8 + $0x88] sm:$0xff] %vm1934, %v1841
  %1953 = vst.msk [vmem:[%s8 + $0x90] sm:$0xff] %vm1934, %v1843
  %1954 = vst.msk [vmem:[%s8 + $0x98] sm:$0xff] %vm1934, %v1845
  %1955 = vst.msk [vmem:[%s8 + $0xa0] sm:$0xff] %vm1934, %v1847
  %1956 = vst.msk [vmem:[%s8 + $0xa8] sm:$0xff] %vm1934, %v1849
  %1957 = vst.msk [vmem:[%s8 + $0xb0] sm:$0xff] %vm1934, %v1851
  %1958 = vst.msk [vmem:[%s8 + $0xb8] sm:$0xff] %vm1934, %v1853
  %1959 = vst.msk [vmem:[%s8 + $0xc0] sm:$0xff] %vm1934, %v1855
  %1960 = vst.msk [vmem:[%s8 + $0xc8] sm:$0xff] %vm1934, %v1857
  %1961 = vst.msk [vmem:[%s8 + $0xd0] sm:$0xff] %vm1934, %v1859
  %1962 = vst.msk [vmem:[%s8 + $0xd8] sm:$0xff] %vm1934, %v1861
  %1963 = vst.msk [vmem:[%s8 + $0xe0] sm:$0xff] %vm1934, %v1863
  %1964 = vst.msk [vmem:[%s8 + $0xe8] sm:$0xff] %vm1934, %v1865
  %1965 = vst.msk [vmem:[%s8 + $0xf0] sm:$0xff] %vm1934, %v1867
  %1966 = vst.msk [vmem:[%s8 + $0xf8] sm:$0xff] %vm1934, %v1869
  %1967 = vst.msk [vmem:[%s8 + $0x100] sm:$0xff] %vm1934, %v1871
  %1968 = vst.msk [vmem:[%s8 + $0x108] sm:$0xff] %vm1934, %v1873
  %1969 = vst.msk [vmem:[%s8 + $0x110] sm:$0xff] %vm1934, %v1875
  %1970 = vst.msk [vmem:[%s8 + $0x118] sm:$0xff] %vm1934, %v1877
  %1971 = vst.msk [vmem:[%s8 + $0x120] sm:$0xff] %vm1934, %v1879
  %1972 = vst.msk [vmem:[%s8 + $0x128] sm:$0xff] %vm1934, %v1881
  %1973 = vst.msk [vmem:[%s8 + $0x130] sm:$0xff] %vm1934, %v1883
  %1974 = vst.msk [vmem:[%s8 + $0x138] sm:$0xff] %vm1934, %v1885
  %1975 = vst.msk [vmem:[%s8 + $0x140] sm:$0xff] %vm1934, %v1887
  %1976 = vst.msk [vmem:[%s8 + $0x148] sm:$0xff] %vm1934, %v1889
  %1977 = vst.msk [vmem:[%s8 + $0x150] sm:$0xff] %vm1934, %v1891
  %1978 = vst.msk [vmem:[%s8 + $0x158] sm:$0xff] %vm1934, %v1893
  %1979 = vst.msk [vmem:[%s8 + $0x160] sm:$0xff] %vm1934, %v1895
  %1980 = vst.msk [vmem:[%s8 + $0x168] sm:$0xff] %vm1934, %v1897
  %1981 = vst.msk [vmem:[%s8 + $0x170] sm:$0xff] %vm1934, %v1899
  %1982 = vst.msk [vmem:[%s8 + $0x178] sm:$0xff] %vm1934, %v1901
  %1983 = vst.msk [vmem:[%s8 + $0x180] sm:$0xff] %vm1934, %v1903
  %1984 = vst.msk [vmem:[%s8 + $0x188] sm:$0xff] %vm1934, %v1905
  %1985 = vst.msk [vmem:[%s8 + $0x190] sm:$0xff] %vm1934, %v1907
  %1986 = vst.msk [vmem:[%s8 + $0x198] sm:$0xff] %vm1934, %v1909
  %1987 = vst.msk [vmem:[%s8 + $0x1a0] sm:$0xff] %vm1934, %v1911
  %1988 = vst.msk [vmem:[%s8 + $0x1a8] sm:$0xff] %vm1934, %v1913
  %1989 = vst.msk [vmem:[%s8 + $0x1b0] sm:$0xff] %vm1934, %v1915
  %1990 = vst.msk [vmem:[%s8 + $0x1b8] sm:$0xff] %vm1934, %v1917
  %1991 = vst.msk [vmem:[%s8 + $0x1c0] sm:$0xff] %vm1934, %v1919
  %1992 = vst.msk [vmem:[%s8 + $0x1c8] sm:$0xff] %vm1934, %v1921
  %1993 = vst.msk [vmem:[%s8 + $0x1d0] sm:$0xff] %vm1934, %v1923
  %1994 = vst.msk [vmem:[%s8 + $0x1d8] sm:$0xff] %vm1934, %v1925
  %1995 = vst.msk [vmem:[%s8 + $0x1e0] sm:$0xff] %vm1934, %v1927
  %1996 = vst.msk [vmem:[%s8 + $0x1e8] sm:$0xff] %vm1934, %v1929
  %1997 = vst.msk [vmem:[%s8 + $0x1f0] sm:$0xff] %vm1934, %v1931
  %1998 = vst.msk [vmem:[%s8 + $0x1f8] sm:$0xff] %vm1934, %v1933
  %s1999 = smul.u32 0, 512
  %v2000 = vlaneseq
  %v2001 = vshrl.u32 %v2000, 7
  %v2002 = vadd.s32 %v2001, 8
  %v2003 = vadd.s32 %v2001, 16
  %v2004 = vadd.s32 %v2001, 24
  %v2005 = vadd.s32 %v2001, 32
  %v2006 = vadd.s32 %v2001, 40
  %v2007 = vadd.s32 %v2001, 48
  %v2008 = vadd.s32 %v2001, 56
  %v2009 = vadd.s32 %v2001, 64
  %v2010 = vadd.s32 %v2001, 72
  %v2011 = vadd.s32 %v2001, 80
  %v2012 = vadd.s32 %v2001, 88
  %v2013 = vadd.s32 %v2001, 96
  %v2014 = vadd.s32 %v2001, 104
  %v2015 = vadd.s32 %v2001, 112
  %v2016 = vadd.s32 %v2001, 120
  %v2017 = vadd.s32 %v2001, 128
  %v2018 = vadd.s32 %v2001, 136
  %v2019 = vadd.s32 %v2001, 144
  %v2020 = vadd.s32 %v2001, 152
  %v2021 = vadd.s32 %v2001, 160
  %v2022 = vadd.s32 %v2001, 168
  %v2023 = vadd.s32 %v2001, 176
  %v2024 = vadd.s32 %v2001, 184
  %v2025 = vadd.s32 %v2001, 192
  %v2026 = vadd.s32 %v2001, 200
  %v2027 = vadd.s32 %v2001, 208
  %v2028 = vadd.s32 %v2001, 216
  %v2029 = vadd.s32 %v2001, 224
  %v2030 = vadd.s32 %v2001, 232
  %v2031 = vadd.s32 %v2001, 240
  %v2032 = vadd.s32 %v2001, 248
  %v2033 = vadd.s32 %v2001, 256
  %v2034 = vadd.s32 %v2001, 264
  %v2035 = vadd.s32 %v2001, 272
  %v2036 = vadd.s32 %v2001, 280
  %v2037 = vadd.s32 %v2001, 288
  %v2038 = vadd.s32 %v2001, 296
  %v2039 = vadd.s32 %v2001, 304
  %v2040 = vadd.s32 %v2001, 312
  %v2041 = vadd.s32 %v2001, 320
  %v2042 = vadd.s32 %v2001, 328
  %v2043 = vadd.s32 %v2001, 336
  %v2044 = vadd.s32 %v2001, 344
  %v2045 = vadd.s32 %v2001, 352
  %v2046 = vadd.s32 %v2001, 360
  %v2047 = vadd.s32 %v2001, 368
  %v2048 = vadd.s32 %v2001, 376
  %v2049 = vadd.s32 %v2001, 384
  %v2050 = vadd.s32 %v2001, 392
  %v2051 = vadd.s32 %v2001, 400
  %v2052 = vadd.s32 %v2001, 408
  %v2053 = vadd.s32 %v2001, 416
  %v2054 = vadd.s32 %v2001, 424
  %v2055 = vadd.s32 %v2001, 432
  %v2056 = vadd.s32 %v2001, 440
  %v2057 = vadd.s32 %v2001, 448
  %v2058 = vadd.s32 %v2001, 456
  %v2059 = vadd.s32 %v2001, 464
  %v2060 = vadd.s32 %v2001, 472
  %v2061 = vadd.s32 %v2001, 480
  %v2062 = vadd.s32 %v2001, 488
  %v2063 = vadd.s32 %v2001, 496
  %v2064 = vadd.s32 %v2001, 504
  %v2065 = vstv %s1999
  %v2066 = vadd.s32 %v2065, %v2001
  %v2067 = vadd.s32 %v2065, %v2002
  %v2068 = vadd.s32 %v2065, %v2003
  %v2069 = vadd.s32 %v2065, %v2004
  %v2070 = vadd.s32 %v2065, %v2005
  %v2071 = vadd.s32 %v2065, %v2006
  %v2072 = vadd.s32 %v2065, %v2007
  %v2073 = vadd.s32 %v2065, %v2008
  %v2074 = vadd.s32 %v2065, %v2009
  %v2075 = vadd.s32 %v2065, %v2010
  %v2076 = vadd.s32 %v2065, %v2011
  %v2077 = vadd.s32 %v2065, %v2012
  %v2078 = vadd.s32 %v2065, %v2013
  %v2079 = vadd.s32 %v2065, %v2014
  %v2080 = vadd.s32 %v2065, %v2015
  %v2081 = vadd.s32 %v2065, %v2016
  %v2082 = vadd.s32 %v2065, %v2017
  %v2083 = vadd.s32 %v2065, %v2018
  %v2084 = vadd.s32 %v2065, %v2019
  %v2085 = vadd.s32 %v2065, %v2020
  %v2086 = vadd.s32 %v2065, %v2021
  %v2087 = vadd.s32 %v2065, %v2022
  %v2088 = vadd.s32 %v2065, %v2023
  %v2089 = vadd.s32 %v2065, %v2024
  %v2090 = vadd.s32 %v2065, %v2025
  %v2091 = vadd.s32 %v2065, %v2026
  %v2092 = vadd.s32 %v2065, %v2027
  %v2093 = vadd.s32 %v2065, %v2028
  %v2094 = vadd.s32 %v2065, %v2029
  %v2095 = vadd.s32 %v2065, %v2030
  %v2096 = vadd.s32 %v2065, %v2031
  %v2097 = vadd.s32 %v2065, %v2032
  %v2098 = vadd.s32 %v2065, %v2033
  %v2099 = vadd.s32 %v2065, %v2034
  %v2100 = vadd.s32 %v2065, %v2035
  %v2101 = vadd.s32 %v2065, %v2036
  %v2102 = vadd.s32 %v2065, %v2037
  %v2103 = vadd.s32 %v2065, %v2038
  %v2104 = vadd.s32 %v2065, %v2039
  %v2105 = vadd.s32 %v2065, %v2040
  %v2106 = vadd.s32 %v2065, %v2041
  %v2107 = vadd.s32 %v2065, %v2042
  %v2108 = vadd.s32 %v2065, %v2043
  %v2109 = vadd.s32 %v2065, %v2044
  %v2110 = vadd.s32 %v2065, %v2045
  %v2111 = vadd.s32 %v2065, %v2046
  %v2112 = vadd.s32 %v2065, %v2047
  %v2113 = vadd.s32 %v2065, %v2048
  %v2114 = vadd.s32 %v2065, %v2049
  %v2115 = vadd.s32 %v2065, %v2050
  %v2116 = vadd.s32 %v2065, %v2051
  %v2117 = vadd.s32 %v2065, %v2052
  %v2118 = vadd.s32 %v2065, %v2053
  %v2119 = vadd.s32 %v2065, %v2054
  %v2120 = vadd.s32 %v2065, %v2055
  %v2121 = vadd.s32 %v2065, %v2056
  %v2122 = vadd.s32 %v2065, %v2057
  %v2123 = vadd.s32 %v2065, %v2058
  %v2124 = vadd.s32 %v2065, %v2059
  %v2125 = vadd.s32 %v2065, %v2060
  %v2126 = vadd.s32 %v2065, %v2061
  %v2127 = vadd.s32 %v2065, %v2062
  %v2128 = vadd.s32 %v2065, %v2063
  %v2129 = vadd.s32 %v2065, %v2064
  %vm2130 = vcmp.lt.s32.totalorder %v2066, 512
  %vm2131 = vcmp.lt.s32.totalorder %v2067, 512
  %vm2132 = vcmp.lt.s32.totalorder %v2068, 512
  %vm2133 = vcmp.lt.s32.totalorder %v2069, 512
  %vm2134 = vcmp.lt.s32.totalorder %v2070, 512
  %vm2135 = vcmp.lt.s32.totalorder %v2071, 512
  %vm2136 = vcmp.lt.s32.totalorder %v2072, 512
  %vm2137 = vcmp.lt.s32.totalorder %v2073, 512
  %vm2138 = vcmp.lt.s32.totalorder %v2074, 512
  %vm2139 = vcmp.lt.s32.totalorder %v2075, 512
  %vm2140 = vcmp.lt.s32.totalorder %v2076, 512
  %vm2141 = vcmp.lt.s32.totalorder %v2077, 512
  %vm2142 = vcmp.lt.s32.totalorder %v2078, 512
  %vm2143 = vcmp.lt.s32.totalorder %v2079, 512
  %vm2144 = vcmp.lt.s32.totalorder %v2080, 512
  %vm2145 = vcmp.lt.s32.totalorder %v2081, 512
  %vm2146 = vcmp.lt.s32.totalorder %v2082, 512
  %vm2147 = vcmp.lt.s32.totalorder %v2083, 512
  %vm2148 = vcmp.lt.s32.totalorder %v2084, 512
  %vm2149 = vcmp.lt.s32.totalorder %v2085, 512
  %vm2150 = vcmp.lt.s32.totalorder %v2086, 512
  %vm2151 = vcmp.lt.s32.totalorder %v2087, 512
  %vm2152 = vcmp.lt.s32.totalorder %v2088, 512
  %vm2153 = vcmp.lt.s32.totalorder %v2089, 512
  %vm2154 = vcmp.lt.s32.totalorder %v2090, 512
  %vm2155 = vcmp.lt.s32.totalorder %v2091, 512
  %vm2156 = vcmp.lt.s32.totalorder %v2092, 512
  %vm2157 = vcmp.lt.s32.totalorder %v2093, 512
  %vm2158 = vcmp.lt.s32.totalorder %v2094, 512
  %vm2159 = vcmp.lt.s32.totalorder %v2095, 512
  %vm2160 = vcmp.lt.s32.totalorder %v2096, 512
  %vm2161 = vcmp.lt.s32.totalorder %v2097, 512
  %vm2162 = vcmp.lt.s32.totalorder %v2098, 512
  %vm2163 = vcmp.lt.s32.totalorder %v2099, 512
  %vm2164 = vcmp.lt.s32.totalorder %v2100, 512
  %vm2165 = vcmp.lt.s32.totalorder %v2101, 512
  %vm2166 = vcmp.lt.s32.totalorder %v2102, 512
  %vm2167 = vcmp.lt.s32.totalorder %v2103, 512
  %vm2168 = vcmp.lt.s32.totalorder %v2104, 512
  %vm2169 = vcmp.lt.s32.totalorder %v2105, 512
  %vm2170 = vcmp.lt.s32.totalorder %v2106, 512
  %vm2171 = vcmp.lt.s32.totalorder %v2107, 512
  %vm2172 = vcmp.lt.s32.totalorder %v2108, 512
  %vm2173 = vcmp.lt.s32.totalorder %v2109, 512
  %vm2174 = vcmp.lt.s32.totalorder %v2110, 512
  %vm2175 = vcmp.lt.s32.totalorder %v2111, 512
  %vm2176 = vcmp.lt.s32.totalorder %v2112, 512
  %vm2177 = vcmp.lt.s32.totalorder %v2113, 512
  %vm2178 = vcmp.lt.s32.totalorder %v2114, 512
  %vm2179 = vcmp.lt.s32.totalorder %v2115, 512
  %vm2180 = vcmp.lt.s32.totalorder %v2116, 512
  %vm2181 = vcmp.lt.s32.totalorder %v2117, 512
  %vm2182 = vcmp.lt.s32.totalorder %v2118, 512
  %vm2183 = vcmp.lt.s32.totalorder %v2119, 512
  %vm2184 = vcmp.lt.s32.totalorder %v2120, 512
  %vm2185 = vcmp.lt.s32.totalorder %v2121, 512
  %vm2186 = vcmp.lt.s32.totalorder %v2122, 512
  %vm2187 = vcmp.lt.s32.totalorder %v2123, 512
  %vm2188 = vcmp.lt.s32.totalorder %v2124, 512
  %vm2189 = vcmp.lt.s32.totalorder %v2125, 512
  %vm2190 = vcmp.lt.s32.totalorder %v2126, 512
  %vm2191 = vcmp.lt.s32.totalorder %v2127, 512
  %vm2192 = vcmp.lt.s32.totalorder %v2128, 512
  %vm2193 = vcmp.lt.s32.totalorder %v2129, 512
  %v2194 = vsel %vm2130, 1, 0
  %v2195 = vsel %vm2131, 1, 0
  %v2196 = vsel %vm2132, 1, 0
  %v2197 = vsel %vm2133, 1, 0
  %v2198 = vsel %vm2134, 1, 0
  %v2199 = vsel %vm2135, 1, 0
  %v2200 = vsel %vm2136, 1, 0
  %v2201 = vsel %vm2137, 1, 0
  %v2202 = vsel %vm2138, 1, 0
  %v2203 = vsel %vm2139, 1, 0
  %v2204 = vsel %vm2140, 1, 0
  %v2205 = vsel %vm2141, 1, 0
  %v2206 = vsel %vm2142, 1, 0
  %v2207 = vsel %vm2143, 1, 0
  %v2208 = vsel %vm2144, 1, 0
  %v2209 = vsel %vm2145, 1, 0
  %v2210 = vsel %vm2146, 1, 0
  %v2211 = vsel %vm2147, 1, 0
  %v2212 = vsel %vm2148, 1, 0
  %v2213 = vsel %vm2149, 1, 0
  %v2214 = vsel %vm2150, 1, 0
  %v2215 = vsel %vm2151, 1, 0
  %v2216 = vsel %vm2152, 1, 0
  %v2217 = vsel %vm2153, 1, 0
  %v2218 = vsel %vm2154, 1, 0
  %v2219 = vsel %vm2155, 1, 0
  %v2220 = vsel %vm2156, 1, 0
  %v2221 = vsel %vm2157, 1, 0
  %v2222 = vsel %vm2158, 1, 0
  %v2223 = vsel %vm2159, 1, 0
  %v2224 = vsel %vm2160, 1, 0
  %v2225 = vsel %vm2161, 1, 0
  %v2226 = vsel %vm2162, 1, 0
  %v2227 = vsel %vm2163, 1, 0
  %v2228 = vsel %vm2164, 1, 0
  %v2229 = vsel %vm2165, 1, 0
  %v2230 = vsel %vm2166, 1, 0
  %v2231 = vsel %vm2167, 1, 0
  %v2232 = vsel %vm2168, 1, 0
  %v2233 = vsel %vm2169, 1, 0
  %v2234 = vsel %vm2170, 1, 0
  %v2235 = vsel %vm2171, 1, 0
  %v2236 = vsel %vm2172, 1, 0
  %v2237 = vsel %vm2173, 1, 0
  %v2238 = vsel %vm2174, 1, 0
  %v2239 = vsel %vm2175, 1, 0
  %v2240 = vsel %vm2176, 1, 0
  %v2241 = vsel %vm2177, 1, 0
  %v2242 = vsel %vm2178, 1, 0
  %v2243 = vsel %vm2179, 1, 0
  %v2244 = vsel %vm2180, 1, 0
  %v2245 = vsel %vm2181, 1, 0
  %v2246 = vsel %vm2182, 1, 0
  %v2247 = vsel %vm2183, 1, 0
  %v2248 = vsel %vm2184, 1, 0
  %v2249 = vsel %vm2185, 1, 0
  %v2250 = vsel %vm2186, 1, 0
  %v2251 = vsel %vm2187, 1, 0
  %v2252 = vsel %vm2188, 1, 0
  %v2253 = vsel %vm2189, 1, 0
  %v2254 = vsel %vm2190, 1, 0
  %v2255 = vsel %vm2191, 1, 0
  %v2256 = vsel %vm2192, 1, 0
  %v2257 = vsel %vm2193, 1, 0
  %v2258 = vcvt.s32.f32 %v2194
  %v2259 = vcvt.s32.f32 %v2195
  %v2260 = vcvt.s32.f32 %v2196
  %v2261 = vcvt.s32.f32 %v2197
  %v2262 = vcvt.s32.f32 %v2198
  %v2263 = vcvt.s32.f32 %v2199
  %v2264 = vcvt.s32.f32 %v2200
  %v2265 = vcvt.s32.f32 %v2201
  %v2266 = vcvt.s32.f32 %v2202
  %v2267 = vcvt.s32.f32 %v2203
  %v2268 = vcvt.s32.f32 %v2204
  %v2269 = vcvt.s32.f32 %v2205
  %v2270 = vcvt.s32.f32 %v2206
  %v2271 = vcvt.s32.f32 %v2207
  %v2272 = vcvt.s32.f32 %v2208
  %v2273 = vcvt.s32.f32 %v2209
  %v2274 = vcvt.s32.f32 %v2210
  %v2275 = vcvt.s32.f32 %v2211
  %v2276 = vcvt.s32.f32 %v2212
  %v2277 = vcvt.s32.f32 %v2213
  %v2278 = vcvt.s32.f32 %v2214
  %v2279 = vcvt.s32.f32 %v2215
  %v2280 = vcvt.s32.f32 %v2216
  %v2281 = vcvt.s32.f32 %v2217
  %v2282 = vcvt.s32.f32 %v2218
  %v2283 = vcvt.s32.f32 %v2219
  %v2284 = vcvt.s32.f32 %v2220
  %v2285 = vcvt.s32.f32 %v2221
  %v2286 = vcvt.s32.f32 %v2222
  %v2287 = vcvt.s32.f32 %v2223
  %v2288 = vcvt.s32.f32 %v2224
  %v2289 = vcvt.s32.f32 %v2225
  %v2290 = vcvt.s32.f32 %v2226
  %v2291 = vcvt.s32.f32 %v2227
  %v2292 = vcvt.s32.f32 %v2228
  %v2293 = vcvt.s32.f32 %v2229
  %v2294 = vcvt.s32.f32 %v2230
  %v2295 = vcvt.s32.f32 %v2231
  %v2296 = vcvt.s32.f32 %v2232
  %v2297 = vcvt.s32.f32 %v2233
  %v2298 = vcvt.s32.f32 %v2234
  %v2299 = vcvt.s32.f32 %v2235
  %v2300 = vcvt.s32.f32 %v2236
  %v2301 = vcvt.s32.f32 %v2237
  %v2302 = vcvt.s32.f32 %v2238
  %v2303 = vcvt.s32.f32 %v2239
  %v2304 = vcvt.s32.f32 %v2240
  %v2305 = vcvt.s32.f32 %v2241
  %v2306 = vcvt.s32.f32 %v2242
  %v2307 = vcvt.s32.f32 %v2243
  %v2308 = vcvt.s32.f32 %v2244
  %v2309 = vcvt.s32.f32 %v2245
  %v2310 = vcvt.s32.f32 %v2246
  %v2311 = vcvt.s32.f32 %v2247
  %v2312 = vcvt.s32.f32 %v2248
  %v2313 = vcvt.s32.f32 %v2249
  %v2314 = vcvt.s32.f32 %v2250
  %v2315 = vcvt.s32.f32 %v2251
  %v2316 = vcvt.s32.f32 %v2252
  %v2317 = vcvt.s32.f32 %v2253
  %v2318 = vcvt.s32.f32 %v2254
  %v2319 = vcvt.s32.f32 %v2255
  %v2320 = vcvt.s32.f32 %v2256
  %v2321 = vcvt.s32.f32 %v2257
  %v2322 = vmul.f32 %v370, %v2258
  %v2323 = vmul.f32 %v375, %v2259
  %v2324 = vmul.f32 %v380, %v2260
  %v2325 = vmul.f32 %v385, %v2261
  %v2326 = vmul.f32 %v390, %v2262
  %v2327 = vmul.f32 %v395, %v2263
  %v2328 = vmul.f32 %v400, %v2264
  %v2329 = vmul.f32 %v405, %v2265
  %v2330 = vmul.f32 %v410, %v2266
  %v2331 = vmul.f32 %v415, %v2267
  %v2332 = vmul.f32 %v420, %v2268
  %v2333 = vmul.f32 %v425, %v2269
  %v2334 = vmul.f32 %v430, %v2270
  %v2335 = vmul.f32 %v435, %v2271
  %v2336 = vmul.f32 %v440, %v2272
  %v2337 = vmul.f32 %v445, %v2273
  %v2338 = vmul.f32 %v450, %v2274
  %v2339 = vmul.f32 %v455, %v2275
  %v2340 = vmul.f32 %v460, %v2276
  %v2341 = vmul.f32 %v465, %v2277
  %v2342 = vmul.f32 %v470, %v2278
  %v2343 = vmul.f32 %v475, %v2279
  %v2344 = vmul.f32 %v480, %v2280
  %v2345 = vmul.f32 %v485, %v2281
  %v2346 = vmul.f32 %v490, %v2282
  %v2347 = vmul.f32 %v495, %v2283
  %v2348 = vmul.f32 %v500, %v2284
  %v2349 = vmul.f32 %v505, %v2285
  %v2350 = vmul.f32 %v510, %v2286
  %v2351 = vmul.f32 %v515, %v2287
  %v2352 = vmul.f32 %v520, %v2288
  %v2353 = vmul.f32 %v525, %v2289
  %v2354 = vmul.f32 %v530, %v2290
  %v2355 = vmul.f32 %v535, %v2291
  %v2356 = vmul.f32 %v540, %v2292
  %v2357 = vmul.f32 %v545, %v2293
  %v2358 = vmul.f32 %v550, %v2294
  %v2359 = vmul.f32 %v555, %v2295
  %v2360 = vmul.f32 %v560, %v2296
  %v2361 = vmul.f32 %v565, %v2297
  %v2362 = vmul.f32 %v570, %v2298
  %v2363 = vmul.f32 %v575, %v2299
  %v2364 = vmul.f32 %v580, %v2300
  %v2365 = vmul.f32 %v585, %v2301
  %v2366 = vmul.f32 %v590, %v2302
  %v2367 = vmul.f32 %v595, %v2303
  %v2368 = vmul.f32 %v600, %v2304
  %v2369 = vmul.f32 %v605, %v2305
  %v2370 = vmul.f32 %v610, %v2306
  %v2371 = vmul.f32 %v615, %v2307
  %v2372 = vmul.f32 %v620, %v2308
  %v2373 = vmul.f32 %v625, %v2309
  %v2374 = vmul.f32 %v630, %v2310
  %v2375 = vmul.f32 %v635, %v2311
  %v2376 = vmul.f32 %v640, %v2312
  %v2377 = vmul.f32 %v645, %v2313
  %v2378 = vmul.f32 %v650, %v2314
  %v2379 = vmul.f32 %v655, %v2315
  %v2380 = vmul.f32 %v660, %v2316
  %v2381 = vmul.f32 %v665, %v2317
  %v2382 = vmul.f32 %v670, %v2318
  %v2383 = vmul.f32 %v675, %v2319
  %v2384 = vmul.f32 %v680, %v2320
  %v2385 = vmul.f32 %v685, %v2321
  %v2386 = vadd.f32 %v2322, %v2323
  %v2387 = vadd.f32 %v2386, %v2324
  %v2388 = vadd.f32 %v2387, %v2325
  %v2389 = vadd.f32 %v2388, %v2326
  %v2390 = vadd.f32 %v2389, %v2327
  %v2391 = vadd.f32 %v2390, %v2328
  %v2392 = vadd.f32 %v2391, %v2329
  %v2393 = vadd.f32 %v2392, %v2330
  %v2394 = vadd.f32 %v2393, %v2331
  %v2395 = vadd.f32 %v2394, %v2332
  %v2396 = vadd.f32 %v2395, %v2333
  %v2397 = vadd.f32 %v2396, %v2334
  %v2398 = vadd.f32 %v2397, %v2335
  %v2399 = vadd.f32 %v2398, %v2336
  %v2400 = vadd.f32 %v2399, %v2337
  %v2401 = vadd.f32 %v2400, %v2338
  %v2402 = vadd.f32 %v2401, %v2339
  %v2403 = vadd.f32 %v2402, %v2340
  %v2404 = vadd.f32 %v2403, %v2341
  %v2405 = vadd.f32 %v2404, %v2342
  %v2406 = vadd.f32 %v2405, %v2343
  %v2407 = vadd.f32 %v2406, %v2344
  %v2408 = vadd.f32 %v2407, %v2345
  %v2409 = vadd.f32 %v2408, %v2346
  %v2410 = vadd.f32 %v2409, %v2347
  %v2411 = vadd.f32 %v2410, %v2348
  %v2412 = vadd.f32 %v2411, %v2349
  %v2413 = vadd.f32 %v2412, %v2350
  %v2414 = vadd.f32 %v2413, %v2351
  %v2415 = vadd.f32 %v2414, %v2352
  %v2416 = vadd.f32 %v2415, %v2353
  %v2417 = vadd.f32 %v2416, %v2354
  %v2418 = vadd.f32 %v2417, %v2355
  %v2419 = vadd.f32 %v2418, %v2356
  %v2420 = vadd.f32 %v2419, %v2357
  %v2421 = vadd.f32 %v2420, %v2358
  %v2422 = vadd.f32 %v2421, %v2359
  %v2423 = vadd.f32 %v2422, %v2360
  %v2424 = vadd.f32 %v2423, %v2361
  %v2425 = vadd.f32 %v2424, %v2362
  %v2426 = vadd.f32 %v2425, %v2363
  %v2427 = vadd.f32 %v2426, %v2364
  %v2428 = vadd.f32 %v2427, %v2365
  %v2429 = vadd.f32 %v2428, %v2366
  %v2430 = vadd.f32 %v2429, %v2367
  %v2431 = vadd.f32 %v2430, %v2368
  %v2432 = vadd.f32 %v2431, %v2369
  %v2433 = vadd.f32 %v2432, %v2370
  %v2434 = vadd.f32 %v2433, %v2371
  %v2435 = vadd.f32 %v2434, %v2372
  %v2436 = vadd.f32 %v2435, %v2373
  %v2437 = vadd.f32 %v2436, %v2374
  %v2438 = vadd.f32 %v2437, %v2375
  %v2439 = vadd.f32 %v2438, %v2376
  %v2440 = vadd.f32 %v2439, %v2377
  %v2441 = vadd.f32 %v2440, %v2378
  %v2442 = vadd.f32 %v2441, %v2379
  %v2443 = vadd.f32 %v2442, %v2380
  %v2444 = vadd.f32 %v2443, %v2381
  %v2445 = vadd.f32 %v2444, %v2382
  %v2446 = vadd.f32 %v2445, %v2383
  %v2447 = vadd.f32 %v2446, %v2384
  %v2448 = vadd.f32 %v2447, %v2385
  %v2449 = vrot.slane %v2448, 4
  %v2450 = vadd.f32 %v2448, %v2449
  %v2451 = vrot.slane %v2450, 2
  %v2452 = vadd.f32 %v2450, %v2451
  %v2453 = vrot.slane %v2452, 1
  %v2454 = vadd.f32 %v2452, %v2453
  %v2455 = vmul.f32 %v2322, %v370
  %v2456 = vmul.f32 %v2323, %v375
  %v2457 = vmul.f32 %v2324, %v380
  %v2458 = vmul.f32 %v2325, %v385
  %v2459 = vmul.f32 %v2326, %v390
  %v2460 = vmul.f32 %v2327, %v395
  %v2461 = vmul.f32 %v2328, %v400
  %v2462 = vmul.f32 %v2329, %v405
  %v2463 = vmul.f32 %v2330, %v410
  %v2464 = vmul.f32 %v2331, %v415
  %v2465 = vmul.f32 %v2332, %v420
  %v2466 = vmul.f32 %v2333, %v425
  %v2467 = vmul.f32 %v2334, %v430
  %v2468 = vmul.f32 %v2335, %v435
  %v2469 = vmul.f32 %v2336, %v440
  %v2470 = vmul.f32 %v2337, %v445
  %v2471 = vmul.f32 %v2338, %v450
  %v2472 = vmul.f32 %v2339, %v455
  %v2473 = vmul.f32 %v2340, %v460
  %v2474 = vmul.f32 %v2341, %v465
  %v2475 = vmul.f32 %v2342, %v470
  %v2476 = vmul.f32 %v2343, %v475
  %v2477 = vmul.f32 %v2344, %v480
  %v2478 = vmul.f32 %v2345, %v485
  %v2479 = vmul.f32 %v2346, %v490
  %v2480 = vmul.f32 %v2347, %v495
  %v2481 = vmul.f32 %v2348, %v500
  %v2482 = vmul.f32 %v2349, %v505
  %v2483 = vmul.f32 %v2350, %v510
  %v2484 = vmul.f32 %v2351, %v515
  %v2485 = vmul.f32 %v2352, %v520
  %v2486 = vmul.f32 %v2353, %v525
  %v2487 = vmul.f32 %v2354, %v530
  %v2488 = vmul.f32 %v2355, %v535
  %v2489 = vmul.f32 %v2356, %v540
  %v2490 = vmul.f32 %v2357, %v545
  %v2491 = vmul.f32 %v2358, %v550
  %v2492 = vmul.f32 %v2359, %v555
  %v2493 = vmul.f32 %v2360, %v560
  %v2494 = vmul.f32 %v2361, %v565
  %v2495 = vmul.f32 %v2362, %v570
  %v2496 = vmul.f32 %v2363, %v575
  %v2497 = vmul.f32 %v2364, %v580
  %v2498 = vmul.f32 %v2365, %v585
  %v2499 = vmul.f32 %v2366, %v590
  %v2500 = vmul.f32 %v2367, %v595
  %v2501 = vmul.f32 %v2368, %v600
  %v2502 = vmul.f32 %v2369, %v605
  %v2503 = vmul.f32 %v2370, %v610
  %v2504 = vmul.f32 %v2371, %v615
  %v2505 = vmul.f32 %v2372, %v620
  %v2506 = vmul.f32 %v2373, %v625
  %v2507 = vmul.f32 %v2374, %v630
  %v2508 = vmul.f32 %v2375, %v635
  %v2509 = vmul.f32 %v2376, %v640
  %v2510 = vmul.f32 %v2377, %v645
  %v2511 = vmul.f32 %v2378, %v650
  %v2512 = vmul.f32 %v2379, %v655
  %v2513 = vmul.f32 %v2380, %v660
  %v2514 = vmul.f32 %v2381, %v665
  %v2515 = vmul.f32 %v2382, %v670
  %v2516 = vmul.f32 %v2383, %v675
  %v2517 = vmul.f32 %v2384, %v680
  %v2518 = vmul.f32 %v2385, %v685
  %v2519 = vadd.f32 %v2455, %v2456
  %v2520 = vadd.f32 %v2519, %v2457
  %v2521 = vadd.f32 %v2520, %v2458
  %v2522 = vadd.f32 %v2521, %v2459
  %v2523 = vadd.f32 %v2522, %v2460
  %v2524 = vadd.f32 %v2523, %v2461
  %v2525 = vadd.f32 %v2524, %v2462
  %v2526 = vadd.f32 %v2525, %v2463
  %v2527 = vadd.f32 %v2526, %v2464
  %v2528 = vadd.f32 %v2527, %v2465
  %v2529 = vadd.f32 %v2528, %v2466
  %v2530 = vadd.f32 %v2529, %v2467
  %v2531 = vadd.f32 %v2530, %v2468
  %v2532 = vadd.f32 %v2531, %v2469
  %v2533 = vadd.f32 %v2532, %v2470
  %v2534 = vadd.f32 %v2533, %v2471
  %v2535 = vadd.f32 %v2534, %v2472
  %v2536 = vadd.f32 %v2535, %v2473
  %v2537 = vadd.f32 %v2536, %v2474
  %v2538 = vadd.f32 %v2537, %v2475
  %v2539 = vadd.f32 %v2538, %v2476
  %v2540 = vadd.f32 %v2539, %v2477
  %v2541 = vadd.f32 %v2540, %v2478
  %v2542 = vadd.f32 %v2541, %v2479
  %v2543 = vadd.f32 %v2542, %v2480
  %v2544 = vadd.f32 %v2543, %v2481
  %v2545 = vadd.f32 %v2544, %v2482
  %v2546 = vadd.f32 %v2545, %v2483
  %v2547 = vadd.f32 %v2546, %v2484
  %v2548 = vadd.f32 %v2547, %v2485
  %v2549 = vadd.f32 %v2548, %v2486
  %v2550 = vadd.f32 %v2549, %v2487
  %v2551 = vadd.f32 %v2550, %v2488
  %v2552 = vadd.f32 %v2551, %v2489
  %v2553 = vadd.f32 %v2552, %v2490
  %v2554 = vadd.f32 %v2553, %v2491
  %v2555 = vadd.f32 %v2554, %v2492
  %v2556 = vadd.f32 %v2555, %v2493
  %v2557 = vadd.f32 %v2556, %v2494
  %v2558 = vadd.f32 %v2557, %v2495
  %v2559 = vadd.f32 %v2558, %v2496
  %v2560 = vadd.f32 %v2559, %v2497
  %v2561 = vadd.f32 %v2560, %v2498
  %v2562 = vadd.f32 %v2561, %v2499
  %v2563 = vadd.f32 %v2562, %v2500
  %v2564 = vadd.f32 %v2563, %v2501
  %v2565 = vadd.f32 %v2564, %v2502
  %v2566 = vadd.f32 %v2565, %v2503
  %v2567 = vadd.f32 %v2566, %v2504
  %v2568 = vadd.f32 %v2567, %v2505
  %v2569 = vadd.f32 %v2568, %v2506
  %v2570 = vadd.f32 %v2569, %v2507
  %v2571 = vadd.f32 %v2570, %v2508
  %v2572 = vadd.f32 %v2571, %v2509
  %v2573 = vadd.f32 %v2572, %v2510
  %v2574 = vadd.f32 %v2573, %v2511
  %v2575 = vadd.f32 %v2574, %v2512
  %v2576 = vadd.f32 %v2575, %v2513
  %v2577 = vadd.f32 %v2576, %v2514
  %v2578 = vadd.f32 %v2577, %v2515
  %v2579 = vadd.f32 %v2578, %v2516
  %v2580 = vadd.f32 %v2579, %v2517
  %v2581 = vadd.f32 %v2580, %v2518
  %v2582 = vrot.slane %v2581, 4
  %v2583 = vadd.f32 %v2581, %v2582
  %v2584 = vrot.slane %v2583, 2
  %v2585 = vadd.f32 %v2583, %v2584
  %v2586 = vrot.slane %v2585, 1
  %v2587 = vadd.f32 %v2585, %v2586
  %vm2588 = vcmp.eq.s32.totalorder %v2001, 0
  %vm2589 = vcmp.eq.s32.totalorder %v2001, 1
  %v2590 = vsel %vm2589, %v2587, 0.0
  %v2591 = vsel %vm2588, %v2454, %v2590
  %2592 = vst [vmem:[%s9] sm:$0xff] %v2591
  // Predicated region
  $region30: #{pixel_contrastive_loss.3} parent=0 // pred_check
    _
  $region31: #{pixel_contrastive_loss.3} parent=0 // pred_check_branch
    %2594 = sbr.rel (0) target = $region33
  $region32: #{pixel_contrastive_loss.3} parent=0 // pred_region
    _
  $region33: #{pixel_contrastive_loss.3} parent=0 // pred_fallthru
    _
  // Predicated region
  $region34: #{pixel_contrastive_loss.3} parent=0 // pred_check
    _
  $region35: #{pixel_contrastive_loss.3} parent=0 // pred_check_branch
    %2596 = sbr.rel (0) target = $region37
  $region36: #{pixel_contrastive_loss.3} parent=0 // pred_region
    _
  $region37: #{pixel_contrastive_loss.3} parent=0 // pred_fallthru
    _
  // Predicated region
  $region38: #{pixel_contrastive_loss.3} parent=0 // pred_check
    _
  $region39: #{pixel_contrastive_loss.3} parent=0 // pred_check_branch
    %2598 = sbr.rel (0) target = $region41
  $region40: #{pixel_contrastive_loss.3} parent=0 // pred_region
    _
  $region41: #{pixel_contrastive_loss.3} parent=0 // pred_fallthru
    _
  // Predicated region
  $region42: #{pixel_contrastive_loss.3} parent=0 // pred_check
    _
  $region43: #{pixel_contrastive_loss.3} parent=0 // pred_check_branch
    %2600 = sbr.rel (0) target = $region45
  $region44: #{pixel_contrastive_loss.3} parent=0 // pred_region
    _
  $region45: #{pixel_contrastive_loss.3} parent=0 // pred_fallthru
    _
  // Predicated region
  $region46: #{pixel_contrastive_loss.3} parent=0 // pred_check
    _
  $region47: #{pixel_contrastive_loss.3} parent=0 // pred_check_branch
    %2602 = sbr.rel (0) target = $region49
  $region48: #{pixel_contrastive_loss.3} parent=0 // pred_region
    _
  $region49: #{pixel_contrastive_loss.3} parent=0 // pred_fallthru
    _
  // Predicated region
  $region50: #{pixel_contrastive_loss.3} parent=0 // pred_check
    _
  $region51: #{pixel_contrastive_loss.3} parent=0 // pred_check_branch
    %2604 = sbr.rel (0) target = $region53
  $region52: #{pixel_contrastive_loss.3} parent=0 // pred_region
    _
  $region53: #{pixel_contrastive_loss.3} parent=0 // pred_fallthru
    _

// kernel: pixel_contrastive_loss.5
$region0: #{pixel_contrastive_loss.5}
  #allocation0 [shape = 'u32[]', space=smem, size = 0x4, offset = 0x4, fixed_abs, tag = 'smem constant byte address 0x4 - core index']
  #allocation1 [shape = 'u32[144,128]{1,0:T(1,128)}', space=vmem, size = 0x12000, scoped, tag = 'internal scratch']
  #allocation2 [shape = 's32[1]{0}', space=sflag, size = 0x4, scoped, tag = 'scoped memory for pixel_contrastive_loss.5']
  #allocation3 [shape = 'u8[512]{0}', space=smem, size = 0x200, scoped, tag = 'prefetched SMEM operand 0']
  %s0 = inlined_call_operand.vmem [shape: s32[2], index: 0, kind: input, shape index: {}]
  %s1 = inlined_call_operand.vmem [shape: f32[2,64,128], index: 1, kind: input, shape index: {}]
  %s2 = inlined_call_operand.vmem [shape: f32[2,64,1], index: 2, kind: input, shape index: {}]
  %s3 = inlined_call_operand.vmem [shape: f32[2,1,64], index: 3, kind: input, shape index: {}]
  %s4 = inlined_call_operand.vmem [shape: f32[2,1,128], index: 4, kind: output, shape index: {}]
  %s5 = sld [smem:[#allocation0]]
  $region45: #{pixel_contrastive_loss.5} parent=0
    _
  %s7 = ssub.s32 1, %s5
  %s8 = scalar_select 0, %s7, %s5
  %s9 = sshll.u32 %s0, 4
  %s10 = int_to_ptr.vmem [resolvable:$true] %s9
  %12 = dma.vmem_to_smem %s10, 16, [#allocation3], [#allocation2]
  %13 = dma.done [#allocation2], 16
  %14 = sfence
  loop: start=0, step=1, limit=4
  $region2: #{pixel_contrastive_loss.5} parent=0 // loop_pre_header
    _
  $region3: #{pixel_contrastive_loss.5} parent=0 // loop_header
    %s16 = sphi 0, %s20
    %p17 = scmp.ge.s32.totalorder %s16, 4
    %s26 = sphi 0, %s28
    %s29 = sphi 0, %s26
    %s30 = sphi 0, %s29
    %s46 = sphi 0, %s30
    %s52 = sphi 0, %s54
    %s55 = sphi 0, %s52
    %s56 = sphi 0, %s55
    %s72 = sphi 0, %s56
    %s78 = sphi 0, %s80
    %s81 = sphi 0, %s78
    %s82 = sphi 0, %s81
    %s98 = sphi 0, %s82
    %s104 = sphi 0, %s106
    %s107 = sphi 0, %s104
    %s108 = sphi 0, %s107
    %s124 = sphi 0, %s108
  $region4: #{pixel_contrastive_loss.5} parent=0 // loop_header_branch
    %19 = sbr.rel (%p17) target = $region8
  $region5: #{pixel_contrastive_loss.5} parent=0 // loop_body
    %s21 = ssub.s32 %s16, 1
    %s22 = ssub.s32 %s16, 2
    %s23 = sadd.s32 %s16, 1
    %s24 = ssub.s32 %s16, %s23
    %p25 = scmp.eq.s32.totalorder %s24, 0
    %s27 = sadd.s32 %s26, 1
    %s28 = scalar_select %p25, %s26, %s27
    %p31 = pneg %p25
    %p32 = scmp.eq.s32.totalorder %s16, 1
    %p33 = por %p31, %p32
    %p34 = scmp.ne.s32.totalorder %s26, %s29
    %p35 = scmp.eq.s32.totalorder %s16, 0
    %p36 = por %p34, %p35
    %p37 = scmp.ne.s32.totalorder %s26, %s29
    %p38 = scmp.eq.s32.totalorder %s21, 1
    %p39 = por %p37, %p38
    %p40 = scmp.ne.s32.totalorder %s29, %s30
    %p41 = scmp.eq.s32.totalorder %s21, 0
    %p42 = por %p40, %p41
    %p43 = scmp.ne.s32.totalorder %s29, %s30
    %p44 = scmp.eq.s32.totalorder %s22, 1
    %p45 = por %p43, %p44
    %p47 = scmp.ne.s32.totalorder %s30, %s46
    %p48 = scmp.eq.s32.totalorder %s22, 0
    %p49 = por %p47, %p48
    %s50 = ssub.s32 %s16, %s23
    %p51 = scmp.eq.s32.totalorder %s50, 0
    %s53 = sadd.s32 %s52, 1
    %s54 = scalar_select %p51, %s52, %s53
    %p57 = pneg %p51
    %p58 = scmp.eq.s32.totalorder %s16, 1
    %p59 = por %p57, %p58
    %p60 = scmp.ne.s32.totalorder %s52, %s55
    %p61 = scmp.eq.s32.totalorder %s16, 0
    %p62 = por %p60, %p61
    %p63 = scmp.ne.s32.totalorder %s52, %s55
    %p64 = scmp.eq.s32.totalorder %s21, 1
    %p65 = por %p63, %p64
    %p66 = scmp.ne.s32.totalorder %s55, %s56
    %p67 = scmp.eq.s32.totalorder %s21, 0
    %p68 = por %p66, %p67
    %p69 = scmp.ne.s32.totalorder %s55, %s56
    %p70 = scmp.eq.s32.totalorder %s22, 1
    %p71 = por %p69, %p70
    %p73 = scmp.ne.s32.totalorder %s56, %s72
    %p74 = scmp.eq.s32.totalorder %s22, 0
    %p75 = por %p73, %p74
    %s76 = ssub.s32 %s16, %s23
    %p77 = scmp.eq.s32.totalorder %s76, 0
    %s79 = sadd.s32 %s78, 1
    %s80 = scalar_select %p77, %s78, %s79
    %p83 = pneg %p77
    %p84 = scmp.eq.s32.totalorder %s16, 1
    %p85 = por %p83, %p84
    %p86 = scmp.ne.s32.totalorder %s78, %s81
    %p87 = scmp.eq.s32.totalorder %s16, 0
    %p88 = por %p86, %p87
    %p89 = scmp.ne.s32.totalorder %s78, %s81
    %p90 = scmp.eq.s32.totalorder %s21, 1
    %p91 = por %p89, %p90
    %p92 = scmp.ne.s32.totalorder %s81, %s82
    %p93 = scmp.eq.s32.totalorder %s21, 0
    %p94 = por %p92, %p93
    %p95 = scmp.ne.s32.totalorder %s81, %s82
    %p96 = scmp.eq.s32.totalorder %s22, 1
    %p97 = por %p95, %p96
    %p99 = scmp.ne.s32.totalorder %s82, %s98
    %p100 = scmp.eq.s32.totalorder %s22, 0
    %p101 = por %p99, %p100
    %s102 = ssub.s32 %s16, %s23
    %p103 = scmp.eq.s32.totalorder %s102, 0
    %s105 = sadd.s32 %s104, 1
    %s106 = scalar_select %p103, %s104, %s105
    %p109 = pneg %p103
    %p110 = scmp.eq.s32.totalorder %s16, 1
    %p111 = por %p109, %p110
    %p112 = scmp.ne.s32.totalorder %s104, %s107
    %p113 = scmp.eq.s32.totalorder %s16, 0
    %p114 = por %p112, %p113
    %p115 = scmp.ne.s32.totalorder %s104, %s107
    %p116 = scmp.eq.s32.totalorder %s21, 1
    %p117 = por %p115, %p116
    %p118 = scmp.ne.s32.totalorder %s107, %s108
    %p119 = scmp.eq.s32.totalorder %s21, 0
    %p120 = por %p118, %p119
    %p121 = scmp.ne.s32.totalorder %s107, %s108
    %p122 = scmp.eq.s32.totalorder %s22, 1
    %p123 = por %p121, %p122
    %p125 = scmp.ne.s32.totalorder %s108, %s124
    %p126 = scmp.eq.s32.totalorder %s22, 0
    %p127 = por %p125, %p126
    %p128 = scmp.le.s32.totalorder 1, %s16
    %p129 = scmp.lt.s32.totalorder %s16, 3
    %p130 = pnand %p128, %p129
    %p131 = pneg %p130
    // Predicated region
    $region9: #{pixel_contrastive_loss.5} parent=5 // pred_check
      _
    $region10: #{pixel_contrastive_loss.5} parent=5 // pred_check_branch
      %133 = sbr.rel (%p130) target = $region12
    $region11: #{pixel_contrastive_loss.5} parent=5 // pred_region
      %s134 = ssub.s32 %s16, 1
    $region12: #{pixel_contrastive_loss.5} parent=5 // pred_fallthru
      _
    %p135 = scmp.lt.s32.totalorder %s16, 2
    // Predicated region
    $region13: #{pixel_contrastive_loss.5} parent=5 // pred_check
      %p136 = pneg %p135
    $region14: #{pixel_contrastive_loss.5} parent=5 // pred_check_branch
      %138 = sbr.rel (%p136) target = $region16
    $region15: #{pixel_contrastive_loss.5} parent=5 // pred_region
      // Predicated region
      $region17: #{pixel_contrastive_loss.5} parent=15 // pred_check
        %p139 = pneg %p36
      $region18: #{pixel_contrastive_loss.5} parent=15 // pred_check_branch
        %141 = sbr.rel (%p139) target = $region20
      $region19: #{pixel_contrastive_loss.5} parent=15 // pred_region
        %p142 = scmp.lt.s32.totalorder %s16, 1
        %s143 = scalar_select %p142, %s16, 1
        %s144 = smul.addr %s143, 8
        %s145 = smul.addr %s144, 8
        %s146 = scalar_lea.vmem %s1, %s145
      $region20: #{pixel_contrastive_loss.5} parent=15 // pred_fallthru
        _
      // Predicated region
      $region21: #{pixel_contrastive_loss.5} parent=15 // pred_check
        %p147 = pneg %p62
      $region22: #{pixel_contrastive_loss.5} parent=15 // pred_check_branch
        %149 = sbr.rel (%p147) target = $region24
      $region23: #{pixel_contrastive_loss.5} parent=15 // pred_region
        %p150 = scmp.lt.s32.totalorder %s16, 1
        %s151 = scalar_select %p150, %s16, 1
        %s152 = smul.addr %s151, 8
        %s153 = smul.addr %s152, 8
        %s154 = scalar_lea.vmem %s2, %s153
      $region24: #{pixel_contrastive_loss.5} parent=15 // pred_fallthru
        _
      // Predicated region
      $region25: #{pixel_contrastive_loss.5} parent=15 // pred_check
        %p155 = pneg %p88
      $region26: #{pixel_contrastive_loss.5} parent=15 // pred_check_branch
        %157 = sbr.rel (%p155) target = $region28
      $region27: #{pixel_contrastive_loss.5} parent=15 // pred_region
        %p158 = scmp.lt.s32.totalorder %s16, 1
        %s159 = scalar_select %p158, %s16, 1
        %s160 = scalar_lea.vmem %s3, %s159
      $region28: #{pixel_contrastive_loss.5} parent=15 // pred_fallthru
        _
    $region16: #{pixel_contrastive_loss.5} parent=5 // pred_fallthru
      _
    %p161 = scmp.le.s32.totalorder 1, %s16
    %p162 = scmp.lt.s32.totalorder %s16, 3
    %p163 = pnand %p161, %p162
    %p164 = pneg %p163
    // Predicated region
    $region29: #{pixel_contrastive_loss.5} parent=5 // pred_check
      _
    $region30: #{pixel_contrastive_loss.5} parent=5 // pred_check_branch
      %166 = sbr.rel (%p163) target = $region32
    $region31: #{pixel_contrastive_loss.5} parent=5 // pred_region
      %s167 = ssub.s32 %s16, 1
      %p168 = scmp.lt.s32.totalorder %s21, 1
      %s169 = scalar_select %p168, %s21, 1
      %s170 = smul.addr %s169, 8
      %s171 = smul.addr %s170, 8
      %s172 = scalar_lea.vmem %s1, %s171
      %p173 = pneg %p42
      %p174 = pneg %p39
      %p175 = scmp.lt.s32.totalorder %s21, 1
      %s176 = scalar_select %p175, %s21, 1
      %s177 = smul.addr %s176, 8
      %s178 = smul.addr %s177, 8
      %s179 = scalar_lea.vmem %s2, %s178
      %p180 = pneg %p68
      %p181 = pneg %p65
      %p182 = scmp.lt.s32.totalorder %s21, 1
      %s183 = scalar_select %p182, %s21, 1
      %s184 = scalar_lea.vmem %s3, %s183
      %p185 = pneg %p94
      %p186 = pneg %p91
      %p187 = pneg %p120
      %p188 = pneg %p117
      %p189 = scmp.lt.s32.totalorder %s21, 1
      %s190 = scalar_select %p189, %s21, 1
      %s191 = scalar_lea.vmem %s4, %s190
      %p192 = scmp.lt.s32.totalorder %s21, 1
      %s193 = scalar_select %p192, %s21, 1
      %s194 = smul.addr %s193, 8
      %s195 = smul.addr %s194, 8
      %s196 = scalar_lea.vmem %s1, %s195
      %p197 = scmp.lt.s32.totalorder %s21, 1
      %s198 = scalar_select %p197, %s21, 1
      %s199 = smul.addr %s198, 8
      %s200 = smul.addr %s199, 8
      %s201 = scalar_lea.vmem %s2, %s200
      %p202 = scmp.lt.s32.totalorder %s21, 1
      %s203 = scalar_select %p202, %s21, 1
      %s204 = scalar_lea.vmem %s3, %s203
      %p205 = scmp.lt.s32.totalorder %s21, 1
      %s206 = scalar_select %p205, %s21, 1
      %s207 = scalar_lea.vmem %s4, %s206
      %s208 = sld [smem:[#allocation3 + %s21]]
      %v209 = vld [vmem:[%s196] sm:$0xff]
      %v210 = vld [vmem:[%s196 + $0x8] sm:$0xff]
      %v211 = vld [vmem:[%s196 + $0x10] sm:$0xff]
      %v212 = vld [vmem:[%s196 + $0x18] sm:$0xff]
      %v213 = vld [vmem:[%s196 + $0x20] sm:$0xff]
      %v214 = vld [vmem:[%s196 + $0x28] sm:$0xff]
      %v215 = vld [vmem:[%s196 + $0x30] sm:$0xff]
      %v216 = vld [vmem:[%s196 + $0x38] sm:$0xff]
      %v217 = vld [vmem:[%s201] sm:$0xff]
      %v218 = vld [vmem:[%s201 + $0x8] sm:$0xff]
      %v219 = vld [vmem:[%s201 + $0x10] sm:$0xff]
      %v220 = vld [vmem:[%s201 + $0x18] sm:$0xff]
      %v221 = vld [vmem:[%s201 + $0x20] sm:$0xff]
      %v222 = vld [vmem:[%s201 + $0x28] sm:$0xff]
      %v223 = vld [vmem:[%s201 + $0x30] sm:$0xff]
      %v224 = vld [vmem:[%s201 + $0x38] sm:$0xff]
      %v225 = vld [vmem:[%s204] sm:$0x1]
      %v226 = vlaneseq
      %v227 = vshrl.u32 %v226, 7
      %v228 = vadd.s32 %v227, 8
      %v229 = vadd.s32 %v227, 16
      %v230 = vadd.s32 %v227, 24
      %v231 = vadd.s32 %v227, 32
      %v232 = vadd.s32 %v227, 40
      %v233 = vadd.s32 %v227, 48
      %v234 = vadd.s32 %v227, 56
      %v235 = vlaneseq
      %v236 = vand.u32 %v235, 127
      %v237 = vstv %s208
      %vm238 = vcmp.lt.s32.totalorder %v227, %v237
      %vm239 = vcmp.lt.s32.totalorder %v228, %v237
      %vm240 = vcmp.lt.s32.totalorder %v229, %v237
      %vm241 = vcmp.lt.s32.totalorder %v230, %v237
      %vm242 = vcmp.lt.s32.totalorder %v231, %v237
      %vm243 = vcmp.lt.s32.totalorder %v232, %v237
      %vm244 = vcmp.lt.s32.totalorder %v233, %v237
      %vm245 = vcmp.lt.s32.totalorder %v234, %v237
      %vm246 = vcmp.lt.s32.totalorder %v236, %v237
      %247 = vmatprep.subr.mxu0 0.0
      %248 = vmatpush1.xpose.msra.mxu0 0.0
      %249 = vmatprep.subr.mxu0 0.0
      %250 = vmatpush1.xpose.msra.mxu0 0.0
      %251 = vmatprep.subr.mxu0 0.0
      %252 = vmatpush1.xpose.msra.mxu0 0.0
      %253 = vmatprep.subr.mxu0 0.0
      %254 = vmatpush1.xpose.msra.mxu0 0.0
      %255 = vmatprep.subr.mxu0 0.0
      %256 = vmatpush1.xpose.msra.mxu0 0.0
      %257 = vmatprep.subr.mxu0 0.0
      %258 = vmatpush1.xpose.msra.mxu0 0.0
      %259 = vmatprep.subr.mxu0 0.0
      %260 = vmatpush1.xpose.msra.mxu0 0.0
      %261 = vmatprep.subr.mxu0 0.0
      %262 = vmatpush1.xpose.msra.mxu0 0.0
      %263 = vmatprep.subr.mxu0 0.0
      %264 = vmatpush1.xpose.msra.mxu0 %v216
      %265 = vmatprep.subr.mxu0 0.0
      %266 = vmatpush1.xpose.msra.mxu0 %v215
      %267 = vmatprep.subr.mxu0 0.0
      %268 = vmatpush1.xpose.msra.mxu0 %v214
      %269 = vmatprep.subr.mxu0 0.0
      %270 = vmatpush1.xpose.msra.mxu0 %v213
      %271 = vmatprep.subr.mxu0 0.0
      %272 = vmatpush1.xpose.msra.mxu0 %v212
      %273 = vmatprep.subr.mxu0 0.0
      %274 = vmatpush1.xpose.msra.mxu0 %v211
      %275 = vmatprep.subr.mxu0 0.0
      %276 = vmatpush1.xpose.msra.mxu0 %v210
      %277 = vmatprep.subr.mxu0 0.0
      %278 = vmatpush1.xpose.msra.mxu0 %v209
      %279 = vmatprep.subr.mxu0 0.0
      %280 = vmatpush2.xpose.msra.mxu0 0.0
      %281 = vmatprep.subr.mxu0 0.0
      %282 = vmatpush2.xpose.msra.mxu0 0.0
      %283 = vmatprep.subr.mxu0 0.0
      %284 = vmatpush2.xpose.msra.mxu0 0.0
      %285 = vmatprep.subr.mxu0 0.0
      %286 = vmatpush2.xpose.msra.mxu0 0.0
      %287 = vmatprep.subr.mxu0 0.0
      %288 = vmatpush2.xpose.msra.mxu0 0.0
      %289 = vmatprep.subr.mxu0 0.0
      %290 = vmatpush2.xpose.msra.mxu0 0.0
      %291 = vmatprep.subr.mxu0 0.0
      %292 = vmatpush2.xpose.msra.mxu0 0.0
      %293 = vmatprep.subr.mxu0 0.0
      %294 = vmatpush2.xpose.msra.mxu0 0.0
      %295 = vmatprep.subr.mxu0 0.0
      %296 = vmatpush2.xpose.msra.mxu0 0.0
      %297 = vmatprep.subr.mxu0 0.0
      %298 = vmatpush2.xpose.msra.mxu0 0.0
      %299 = vmatprep.subr.mxu0 0.0
      %300 = vmatpush2.xpose.msra.mxu0 0.0
      %301 = vmatprep.subr.mxu0 0.0
      %302 = vmatpush2.xpose.msra.mxu0 0.0
      %303 = vmatprep.subr.mxu0 0.0
      %304 = vmatpush2.xpose.msra.mxu0 0.0
      %305 = vmatprep.subr.mxu0 0.0
      %306 = vmatpush2.xpose.msra.mxu0 0.0
      %307 = vmatprep.subr.mxu0 0.0
      %308 = vmatpush2.xpose.msra.mxu0 0.0
      %309 = vmatprep.subr.mxu0 0.0
      %310 = vmatpush2.xpose.msra.mxu0 0.0
      %311 = vmatprep.mubr.f32.mxu0 0.0
      %312 = vmatmul.mubr.f32.gmra.mxu0 %v209
      %v313 = vpop.f32.mrf.mxu0
      %v314 = vadd.f32 0.0, %v313
      %v315 = vpop.f32.mrf.mxu0
      %316 = vmatprep.mubr.f32.mxu0 0.0
      %317 = vmatmul.mubr.f32.gmra.mxu0 %v210
      %v318 = vpop.f32.mrf.mxu0
      %v319 = vadd.f32 0.0, %v318
      %v320 = vpop.f32.mrf.mxu0
      %321 = vmatprep.mubr.f32.mxu0 0.0
      %322 = vmatmul.mubr.f32.gmra.mxu0 %v211
      %v323 = vpop.f32.mrf.mxu0
      %v324 = vadd.f32 0.0, %v323
      %v325 = vpop.f32.mrf.mxu0
      %326 = vmatprep.mubr.f32.mxu0 0.0
      %327 = vmatmul.mubr.f32.gmra.mxu0 %v212
      %v328 = vpop.f32.mrf.mxu0
      %v329 = vadd.f32 0.0, %v328
      %v330 = vpop.f32.mrf.mxu0
      %331 = vmatprep.mubr.f32.mxu0 0.0
      %332 = vmatmul.mubr.f32.gmra.mxu0 %v213
      %v333 = vpop.f32.mrf.mxu0
      %v334 = vadd.f32 0.0, %v333
      %v335 = vpop.f32.mrf.mxu0
      %336 = vmatprep.mubr.f32.mxu0 0.0
      %337 = vmatmul.mubr.f32.gmra.mxu0 %v214
      %v338 = vpop.f32.mrf.mxu0
      %v339 = vadd.f32 0.0, %v338
      %v340 = vpop.f32.mrf.mxu0
      %341 = vmatprep.mubr.f32.mxu0 0.0
      %342 = vmatmul.mubr.f32.gmra.mxu0 %v215
      %v343 = vpop.f32.mrf.mxu0
      %v344 = vadd.f32 0.0, %v343
      %v345 = vpop.f32.mrf.mxu0
      %346 = vmatprep.mubr.f32.mxu0 0.0
      %347 = vmatmul.mubr.f32.gmra.mxu0 %v216
      %v348 = vpop.f32.mrf.mxu0
      %v349 = vadd.f32 0.0, %v348
      %v350 = vpop.f32.mrf.mxu0
      %351 = vdwg.mxu0
      %v352 = vrcp.pop 0.1
      %v353 = vmul.f32 %v314, %v352
      %v354 = vmul.f32 %v319, %v352
      %v355 = vmul.f32 %v324, %v352
      %v356 = vmul.f32 %v329, %v352
      %v357 = vmul.f32 %v334, %v352
      %v358 = vmul.f32 %v339, %v352
      %v359 = vmul.f32 %v344, %v352
      %v360 = vmul.f32 %v349, %v352
      %vm361 = vcmp.gt.f32.partialorder %v353, 0.7
      %vm362 = vcmp.gt.f32.partialorder %v354, 0.7
      %vm363 = vcmp.gt.f32.partialorder %v355, 0.7
      %vm364 = vcmp.gt.f32.partialorder %v356, 0.7
      %vm365 = vcmp.gt.f32.partialorder %v357, 0.7
      %vm366 = vcmp.gt.f32.partialorder %v358, 0.7
      %vm367 = vcmp.gt.f32.partialorder %v359, 0.7
      %vm368 = vcmp.gt.f32.partialorder %v360, 0.7
      %vm369 = vmand %vm361, %vm238
      %vm370 = vmand %vm362, %vm239
      %vm371 = vmand %vm363, %vm240
      %vm372 = vmand %vm364, %vm241
      %vm373 = vmand %vm365, %vm242
      %vm374 = vmand %vm366, %vm243
      %vm375 = vmand %vm367, %vm244
      %vm376 = vmand %vm368, %vm245
      %vm377 = vmand %vm369, %vm246
      %vm378 = vmand %vm370, %vm246
      %vm379 = vmand %vm371, %vm246
      %vm380 = vmand %vm372, %vm246
      %vm381 = vmand %vm373, %vm246
      %vm382 = vmand %vm374, %vm246
      %vm383 = vmand %vm375, %vm246
      %vm384 = vmand %vm376, %vm246
      %vm385 = vcmp.ne.s32.totalorder %v227, %v236
      %vm386 = vcmp.ne.s32.totalorder %v228, %v236
      %vm387 = vcmp.ne.s32.totalorder %v229, %v236
      %vm388 = vcmp.ne.s32.totalorder %v230, %v236
      %vm389 = vcmp.ne.s32.totalorder %v231, %v236
      %vm390 = vcmp.ne.s32.totalorder %v232, %v236
      %vm391 = vcmp.ne.s32.totalorder %v233, %v236
      %vm392 = vcmp.ne.s32.totalorder %v234, %v236
      %vm393 = vmand %vm377, %vm385
      %vm394 = vmand %vm378, %vm386
      %vm395 = vmand %vm379, %vm387
      %vm396 = vmand %vm380, %vm388
      %vm397 = vmand %vm381, %vm389
      %vm398 = vmand %vm382, %vm390
      %vm399 = vmand %vm383, %vm391
      %vm400 = vmand %vm384, %vm392
      %v401 = vsel %vm393, 1, 0
      %v402 = vsel %vm394, 1, 0
      %v403 = vsel %vm395, 1, 0
      %v404 = vsel %vm396, 1, 0
      %v405 = vsel %vm397, 1, 0
      %v406 = vsel %vm398, 1, 0
      %v407 = vsel %vm399, 1, 0
      %v408 = vsel %vm400, 1, 0
      %v409 = vcvt.s32.f32 %v401
      %v410 = vcvt.s32.f32 %v402
      %v411 = vcvt.s32.f32 %v403
      %v412 = vcvt.s32.f32 %v404
      %v413 = vcvt.s32.f32 %v405
      %v414 = vcvt.s32.f32 %v406
      %v415 = vcvt.s32.f32 %v407
      %v416 = vcvt.s32.f32 %v408
      %v417 = vmul.f32 %v353, 1.442695
      %v418 = vpow.pop %v417
      %v419 = vmul.f32 %v354, 1.442695
      %v420 = vpow.pop %v419
      %v421 = vmul.f32 %v355, 1.442695
      %v422 = vpow.pop %v421
      %v423 = vmul.f32 %v356, 1.442695
      %v424 = vpow.pop %v423
      %v425 = vmul.f32 %v357, 1.442695
      %v426 = vpow.pop %v425
      %v427 = vmul.f32 %v358, 1.442695
      %v428 = vpow.pop %v427
      %v429 = vmul.f32 %v359, 1.442695
      %v430 = vpow.pop %v429
      %v431 = vmul.f32 %v360, 1.442695
      %v432 = vpow.pop %v431
      %v433 = vsel %vm246, %v418, 0.0
      %v434 = vsel %vm246, %v420, 0.0
      %v435 = vsel %vm246, %v422, 0.0
      %v436 = vsel %vm246, %v424, 0.0
      %v437 = vsel %vm246, %v426, 0.0
      %v438 = vsel %vm246, %v428, 0.0
      %v439 = vsel %vm246, %v430, 0.0
      %v440 = vsel %vm246, %v432, 0.0
      %vm441 = vcmask 523264
      %v442 = vsel %vm441, %v433, 0.0
      %443 = vadd.xlane.f32.xlu0 %v442
      %v444 = vpop.xlane.xlu0 %443
      %v445 = vsel %vm441, %v434, 0.0
      %446 = vadd.xlane.f32.xlu0 %v445
      %v447 = vpop.xlane.xlu0 %446
      %v448 = vsel %vm441, %v435, 0.0
      %449 = vadd.xlane.f32.xlu0 %v448
      %v450 = vpop.xlane.xlu0 %449
      %v451 = vsel %vm441, %v436, 0.0
      %452 = vadd.xlane.f32.xlu0 %v451
      %v453 = vpop.xlane.xlu0 %452
      %v454 = vsel %vm441, %v437, 0.0
      %455 = vadd.xlane.f32.xlu0 %v454
      %v456 = vpop.xlane.xlu0 %455
      %v457 = vsel %vm441, %v438, 0.0
      %458 = vadd.xlane.f32.xlu0 %v457
      %v459 = vpop.xlane.xlu0 %458
      %v460 = vsel %vm441, %v439, 0.0
      %461 = vadd.xlane.f32.xlu0 %v460
      %v462 = vpop.xlane.xlu0 %461
      %v463 = vsel %vm441, %v440, 0.0
      %464 = vadd.xlane.f32.xlu0 %v463
      %v465 = vpop.xlane.xlu0 %464
      %v466 = vmax.f32 %v444, 1e-30
      %v467 = vmax.f32 %v447, 1e-30
      %v468 = vmax.f32 %v450, 1e-30
      %v469 = vmax.f32 %v453, 1e-30
      %v470 = vmax.f32 %v456, 1e-30
      %v471 = vmax.f32 %v459, 1e-30
      %v472 = vmax.f32 %v462, 1e-30
      %v473 = vmax.f32 %v465, 1e-30
      %v474 = vrcp.pop %v466
      %v475 = vmul.f32 %v418, %v474
      %v476 = vrcp.pop %v467
      %v477 = vmul.f32 %v420, %v476
      %v478 = vrcp.pop %v468
      %v479 = vmul.f32 %v422, %v478
      %v480 = vrcp.pop %v469
      %v481 = vmul.f32 %v424, %v480
      %v482 = vrcp.pop %v470
      %v483 = vmul.f32 %v426, %v482
      %v484 = vrcp.pop %v471
      %v485 = vmul.f32 %v428, %v484
      %v486 = vrcp.pop %v472
      %v487 = vmul.f32 %v430, %v486
      %v488 = vrcp.pop %v473
      %v489 = vmul.f32 %v432, %v488
      %v490 = vadd.f32 %v475, 1e-10
      %v491 = vadd.f32 %v477, 1e-10
      %v492 = vadd.f32 %v479, 1e-10
      %v493 = vadd.f32 %v481, 1e-10
      %v494 = vadd.f32 %v483, 1e-10
      %v495 = vadd.f32 %v485, 1e-10
      %v496 = vadd.f32 %v487, 1e-10
      %v497 = vadd.f32 %v489, 1e-10
      %v498 = vlog2.pop %v490
      %v499 = vmul.f32 %v498, 0.6931472
      %v500 = vlog2.pop %v491
      %v501 = vmul.f32 %v500, 0.6931472
      %v502 = vlog2.pop %v492
      %v503 = vmul.f32 %v502, 0.6931472
      %v504 = vlog2.pop %v493
      %v505 = vmul.f32 %v504, 0.6931472
      %v506 = vlog2.pop %v494
      %v507 = vmul.f32 %v506, 0.6931472
      %v508 = vlog2.pop %v495
      %v509 = vmul.f32 %v508, 0.6931472
      %v510 = vlog2.pop %v496
      %v511 = vmul.f32 %v510, 0.6931472
      %v512 = vlog2.pop %v497
      %v513 = vmul.f32 %v512, 0.6931472
      %515 = vset.pattern.permute.xlu0 0
      %516 = vperm.xlu0 %515, %v217
      %v517 = vpop.permute.xlu0 %516
      %520 = vset.pattern.permute.xlu0 0
      %521 = vperm.xlu0 %520, %v218
      %v522 = vpop.permute.xlu0 %521
      %525 = vset.pattern.permute.xlu0 0
      %526 = vperm.xlu0 %525, %v219
      %v527 = vpop.permute.xlu0 %526
      %530 = vset.pattern.permute.xlu0 0
      %531 = vperm.xlu0 %530, %v220
      %v532 = vpop.permute.xlu0 %531
      %535 = vset.pattern.permute.xlu0 0
      %536 = vperm.xlu0 %535, %v221
      %v537 = vpop.permute.xlu0 %536
      %540 = vset.pattern.permute.xlu0 0
      %541 = vperm.xlu0 %540, %v222
      %v542 = vpop.permute.xlu0 %541
      %545 = vset.pattern.permute.xlu0 0
      %546 = vperm.xlu0 %545, %v223
      %v547 = vpop.permute.xlu0 %546
      %550 = vset.pattern.permute.xlu0 0
      %551 = vperm.xlu0 %550, %v224
      %v552 = vpop.permute.xlu0 %551
      %v555 = vlaneseq
      %v556 = vshrl.u32 %v555, 7
      %v557 = vsub.s32 0, %v556
      %v558 = vrot.slane %v225, %v557
      %v560 = vmul.f32 %v517, %v558
      %v561 = vmul.f32 %v522, %v558
      %v562 = vmul.f32 %v527, %v558
      %v563 = vmul.f32 %v532, %v558
      %v564 = vmul.f32 %v537, %v558
      %v565 = vmul.f32 %v542, %v558
      %v566 = vmul.f32 %v547, %v558
      %v567 = vmul.f32 %v552, %v558
      %vm568 = vcmp.lt.s32.totalorder %v227, %v236
      %vm569 = vcmp.lt.s32.totalorder %v228, %v236
      %vm570 = vcmp.lt.s32.totalorder %v229, %v236
      %vm571 = vcmp.lt.s32.totalorder %v230, %v236
      %vm572 = vcmp.lt.s32.totalorder %v231, %v236
      %vm573 = vcmp.lt.s32.totalorder %v232, %v236
      %vm574 = vcmp.lt.s32.totalorder %v233, %v236
      %vm575 = vcmp.lt.s32.totalorder %v234, %v236
      %v576 = vsel %vm568, 1, 0
      %v577 = vsel %vm569, 1, 0
      %v578 = vsel %vm570, 1, 0
      %v579 = vsel %vm571, 1, 0
      %v580 = vsel %vm572, 1, 0
      %v581 = vsel %vm573, 1, 0
      %v582 = vsel %vm574, 1, 0
      %v583 = vsel %vm575, 1, 0
      %v584 = vcvt.s32.f32 %v576
      %v585 = vcvt.s32.f32 %v577
      %v586 = vcvt.s32.f32 %v578
      %v587 = vcvt.s32.f32 %v579
      %v588 = vcvt.s32.f32 %v580
      %v589 = vcvt.s32.f32 %v581
      %v590 = vcvt.s32.f32 %v582
      %v591 = vcvt.s32.f32 %v583
      %v592 = vsel %vm441, %v409, 0.0
      %v593 = vsel %vm441, %v410, 0.0
      %v594 = vadd.f32 %v592, %v593
      %v595 = vsel %vm441, %v411, 0.0
      %v596 = vadd.f32 %v594, %v595
      %v597 = vsel %vm441, %v412, 0.0
      %v598 = vadd.f32 %v596, %v597
      %v599 = vsel %vm441, %v413, 0.0
      %v600 = vadd.f32 %v598, %v599
      %v601 = vsel %vm441, %v414, 0.0
      %v602 = vadd.f32 %v600, %v601
      %v603 = vsel %vm441, %v415, 0.0
      %v604 = vadd.f32 %v602, %v603
      %v605 = vsel %vm441, %v416, 0.0
      %v606 = vadd.f32 %v604, %v605
      %v607 = vrot.slane %v606, 4
      %v608 = vadd.f32 %v606, %v607
      %v609 = vrot.slane %v608, 2
      %v610 = vadd.f32 %v608, %v609
      %v611 = vrot.slane %v610, 1
      %v612 = vadd.f32 %v610, %v611
      %vm613 = vcmp.gt.s32.totalorder %v227, %v236
      %vm614 = vcmp.gt.s32.totalorder %v228, %v236
      %vm615 = vcmp.gt.s32.totalorder %v229, %v236
      %vm616 = vcmp.gt.s32.totalorder %v230, %v236
      %vm617 = vcmp.gt.s32.totalorder %v231, %v236
      %vm618 = vcmp.gt.s32.totalorder %v232, %v236
      %vm619 = vcmp.gt.s32.totalorder %v233, %v236
      %vm620 = vcmp.gt.s32.totalorder %v234, %v236
      %v621 = vsel %vm613, %v612, 0.0
      %v622 = vsel %vm614, %v612, 0.0
      %v623 = vsel %vm615, %v612, 0.0
      %v624 = vsel %vm616, %v612, 0.0
      %v625 = vsel %vm617, %v612, 0.0
      %v626 = vsel %vm618, %v612, 0.0
      %v627 = vsel %vm619, %v612, 0.0
      %v628 = vsel %vm620, %v612, 0.0
      %v629 = vsel %vm441, %v621, 0.0
      %630 = vadd.xlane.f32.xlu0 %v629
      %v631 = vpop.xlane.xlu0 %630
      %v632 = vsel %vm441, %v622, 0.0
      %633 = vadd.xlane.f32.xlu0 %v632
      %v634 = vpop.xlane.xlu0 %633
      %v635 = vsel %vm441, %v623, 0.0
      %636 = vadd.xlane.f32.xlu0 %v635
      %v637 = vpop.xlane.xlu0 %636
      %v638 = vsel %vm441, %v624, 0.0
      %639 = vadd.xlane.f32.xlu0 %v638
      %v640 = vpop.xlane.xlu0 %639
      %v641 = vsel %vm441, %v625, 0.0
      %642 = vadd.xlane.f32.xlu0 %v641
      %v643 = vpop.xlane.xlu0 %642
      %v644 = vsel %vm441, %v626, 0.0
      %645 = vadd.xlane.f32.xlu0 %v644
      %v646 = vpop.xlane.xlu0 %645
      %v647 = vsel %vm441, %v627, 0.0
      %648 = vadd.xlane.f32.xlu0 %v647
      %v649 = vpop.xlane.xlu0 %648
      %v650 = vsel %vm441, %v628, 0.0
      %651 = vadd.xlane.f32.xlu0 %v650
      %v652 = vpop.xlane.xlu0 %651
      %v654 = vsel %vm441, %v409, 0
      %v657 = vsel %vm441, %v410, 0
      %v660 = vsel %vm441, %v411, 0
      %v663 = vsel %vm441, %v412, 0
      %v666 = vsel %vm441, %v413, 0
      %v669 = vsel %vm441, %v414, 0
      %v672 = vsel %vm441, %v415, 0
      %v675 = vsel %vm441, %v416, 0
      %677 = vmatprep.subr.mxu0 0.0
      %678 = vmatpush1.msra.mxu0 0.0
      %679 = vmatprep.subr.mxu0 0.0
      %680 = vmatpush1.msra.mxu0 0.0
      %681 = vmatprep.subr.mxu0 0.0
      %682 = vmatpush1.msra.mxu0 0.0
      %683 = vmatprep.subr.mxu0 0.0
      %684 = vmatpush1.msra.mxu0 0.0
      %685 = vmatprep.subr.mxu0 0.0
      %686 = vmatpush1.msra.mxu0 0.0
      %687 = vmatprep.subr.mxu0 0.0
      %688 = vmatpush1.msra.mxu0 0.0
      %689 = vmatprep.subr.mxu0 0.0
      %690 = vmatpush1.msra.mxu0 0.0
      %691 = vmatprep.subr.mxu0 0.0
      %692 = vmatpush1.msra.mxu0 0.0
      %693 = vmatprep.subr.mxu0 0.0
      %694 = vmatpush1.msra.mxu0 %v591
      %695 = vmatprep.subr.mxu0 0.0
      %696 = vmatpush1.msra.mxu0 %v590
      %697 = vmatprep.subr.mxu0 0.0
      %698 = vmatpush1.msra.mxu0 %v589
      %699 = vmatprep.subr.mxu0 0.0
      %700 = vmatpush1.msra.mxu0 %v588
      %701 = vmatprep.subr.mxu0 0.0
      %702 = vmatpush1.msra.mxu0 %v587
      %703 = vmatprep.subr.mxu0 0.0
      %704 = vmatpush1.msra.mxu0 %v586
      %705 = vmatprep.subr.mxu0 0.0
      %706 = vmatpush1.msra.mxu0 %v585
      %707 = vmatprep.subr.mxu0 0.0
      %708 = vmatpush1.msra.mxu0 %v584
      %709 = vmatprep.subr.mxu0 0.0
      %710 = vmatpush2.msra.mxu0 0.0
      %711 = vmatprep.subr.mxu0 0.0
      %712 = vmatpush2.msra.mxu0 0.0
      %713 = vmatprep.subr.mxu0 0.0
      %714 = vmatpush2.msra.mxu0 0.0
      %715 = vmatprep.subr.mxu0 0.0
      %716 = vmatpush2.msra.mxu0 0.0
      %717 = vmatprep.subr.mxu0 0.0
      %718 = vmatpush2.msra.mxu0 0.0
      %719 = vmatprep.subr.mxu0 0.0
      %720 = vmatpush2.msra.mxu0 0.0
      %721 = vmatprep.subr.mxu0 0.0
      %722 = vmatpush2.msra.mxu0 0.0
      %723 = vmatprep.subr.mxu0 0.0
      %724 = vmatpush2.msra.mxu0 0.0
      %725 = vmatprep.subr.mxu0 0.0
      %726 = vmatpush2.msra.mxu0 0.0
      %727 = vmatprep.subr.mxu0 0.0
      %728 = vmatpush2.msra.mxu0 0.0
      %729 = vmatprep.subr.mxu0 0.0
      %730 = vmatpush2.msra.mxu0 0.0
      %731 = vmatprep.subr.mxu0 0.0
      %732 = vmatpush2.msra.mxu0 0.0
      %733 = vmatprep.subr.mxu0 0.0
      %734 = vmatpush2.msra.mxu0 0.0
      %735 = vmatprep.subr.mxu0 0.0
      %736 = vmatpush2.msra.mxu0 0.0
      %737 = vmatprep.subr.mxu0 0.0
      %738 = vmatpush2.msra.mxu0 0.0
      %739 = vmatprep.subr.mxu0 0.0
      %740 = vmatpush2.msra.mxu0 0.0
      %741 = vmatprep.mubr.f32.mxu0 0.0
      %742 = vmatmul.mubr.f32.gmra.mxu0 %v654
      %v743 = vpop.f32.mrf.mxu0
      %v744 = vadd.f32 0.0, %v743
      %v745 = vpop.f32.mrf.mxu0
      %746 = vmatprep.mubr.f32.mxu0 0.0
      %747 = vmatmul.mubr.f32.gmra.mxu0 %v657
      %v748 = vpop.f32.mrf.mxu0
      %v749 = vadd.f32 0.0, %v748
      %v750 = vpop.f32.mrf.mxu0
      %751 = vmatprep.mubr.f32.mxu0 0.0
      %752 = vmatmul.mubr.f32.gmra.mxu0 %v660
      %v753 = vpop.f32.mrf.mxu0
      %v754 = vadd.f32 0.0, %v753
      %v755 = vpop.f32.mrf.mxu0
      %756 = vmatprep.mubr.f32.mxu0 0.0
      %757 = vmatmul.mubr.f32.gmra.mxu0 %v663
      %v758 = vpop.f32.mrf.mxu0
      %v759 = vadd.f32 0.0, %v758
      %v760 = vpop.f32.mrf.mxu0
      %761 = vmatprep.mubr.f32.mxu0 0.0
      %762 = vmatmul.mubr.f32.gmra.mxu0 %v666
      %v763 = vpop.f32.mrf.mxu0
      %v764 = vadd.f32 0.0, %v763
      %v765 = vpop.f32.mrf.mxu0
      %766 = vmatprep.mubr.f32.mxu0 0.0
      %767 = vmatmul.mubr.f32.gmra.mxu0 %v669
      %v768 = vpop.f32.mrf.mxu0
      %v769 = vadd.f32 0.0, %v768
      %v770 = vpop.f32.mrf.mxu0
      %771 = vmatprep.mubr.f32.mxu0 0.0
      %772 = vmatmul.mubr.f32.gmra.mxu0 %v672
      %v773 = vpop.f32.mrf.mxu0
      %v774 = vadd.f32 0.0, %v773
      %v775 = vpop.f32.mrf.mxu0
      %776 = vmatprep.mubr.f32.mxu0 0.0
      %777 = vmatmul.mubr.f32.gmra.mxu0 %v675
      %v778 = vpop.f32.mrf.mxu0
      %v779 = vadd.f32 0.0, %v778
      %v780 = vpop.f32.mrf.mxu0
      %781 = vdwg.mxu0
      %v782 = vadd.f32 %v631, %v744
      %v783 = vadd.f32 %v634, %v749
      %v784 = vadd.f32 %v637, %v754
      %v785 = vadd.f32 %v640, %v759
      %v786 = vadd.f32 %v643, %v764
      %v787 = vadd.f32 %v646, %v769
      %v788 = vadd.f32 %v649, %v774
      %v789 = vadd.f32 %v652, %v779
      %p790 = scmp.lt.s32.totalorder %s208, 16
      %s791 = scalar_select %p790, %s208, 16
      %p792 = scmp.gt.s32.totalorder %s791, 1
      %s793 = scalar_select %p792, %s791, 1
      %s794 = scvt.s32.f32 %s793
      %v795 = vstv %s794
      %v796 = vrcp.pop %v795
      %v797 = vmul.f32 %v782, %v796
      %v798 = vmul.f32 %v783, %v796
      %v799 = vmul.f32 %v784, %v796
      %v800 = vmul.f32 %v785, %v796
      %v801 = vmul.f32 %v786, %v796
      %v802 = vmul.f32 %v787, %v796
      %v803 = vmul.f32 %v788, %v796
      %v804 = vmul.f32 %v789, %v796
      %v805 = vfloor.f32 %v797
      %v806 = vfloor.f32 %v798
      %v807 = vfloor.f32 %v799
      %v808 = vfloor.f32 %v800
      %v809 = vfloor.f32 %v801
      %v810 = vfloor.f32 %v802
      %v811 = vfloor.f32 %v803
      %v812 = vfloor.f32 %v804
      %v813 = vmul.f32 %v631, %v796
      %v814 = vmul.f32 %v634, %v796
      %v815 = vmul.f32 %v637, %v796
      %v816 = vmul.f32 %v640, %v796
      %v817 = vmul.f32 %v643, %v796
      %v818 = vmul.f32 %v646, %v796
      %v819 = vmul.f32 %v649, %v796
      %v820 = vmul.f32 %v652, %v796
      %v821 = vfloor.f32 %v813
      %v822 = vfloor.f32 %v814
      %v823 = vfloor.f32 %v815
      %v824 = vfloor.f32 %v816
      %v825 = vfloor.f32 %v817
      %v826 = vfloor.f32 %v818
      %v827 = vfloor.f32 %v819
      %v828 = vfloor.f32 %v820
      %v829 = vmul.f32 %v560, %v409
      %v830 = vmul.f32 %v561, %v410
      %v831 = vmul.f32 %v562, %v411
      %v832 = vmul.f32 %v563, %v412
      %v833 = vmul.f32 %v564, %v413
      %v834 = vmul.f32 %v565, %v414
      %v835 = vmul.f32 %v566, %v415
      %v836 = vmul.f32 %v567, %v416
      %v837 = vmul.f32 %v499, %v409
      %v838 = vmul.f32 %v501, %v410
      %v839 = vmul.f32 %v503, %v411
      %v840 = vmul.f32 %v505, %v412
      %v841 = vmul.f32 %v507, %v413
      %v842 = vmul.f32 %v509, %v414
      %v843 = vmul.f32 %v511, %v415
      %v844 = vmul.f32 %v513, %v416
      %v845 = vadd.s32 %v236, 128
      %v846 = vcvt.f32.s32.to.zero.pseudo %v821
      %v847 = vcvt.f32.s32.to.zero.pseudo %v822
      %v848 = vcvt.f32.s32.to.zero.pseudo %v823
      %v849 = vcvt.f32.s32.to.zero.pseudo %v824
      %v850 = vcvt.f32.s32.to.zero.pseudo %v825
      %v851 = vcvt.f32.s32.to.zero.pseudo %v826
      %v852 = vcvt.f32.s32.to.zero.pseudo %v827
      %v853 = vcvt.f32.s32.to.zero.pseudo %v828
      %v854 = vsub.s32 %v236, %v846
      %v855 = vsub.s32 %v845, %v846
      %v856 = vsub.s32 %v236, %v847
      %v857 = vsub.s32 %v845, %v847
      %v858 = vsub.s32 %v236, %v848
      %v859 = vsub.s32 %v845, %v848
      %v860 = vsub.s32 %v236, %v849
      %v861 = vsub.s32 %v845, %v849
      %v862 = vsub.s32 %v236, %v850
      %v863 = vsub.s32 %v845, %v850
      %v864 = vsub.s32 %v236, %v851
      %v865 = vsub.s32 %v845, %v851
      %v866 = vsub.s32 %v236, %v852
      %v867 = vsub.s32 %v845, %v852
      %v868 = vsub.s32 %v236, %v853
      %v869 = vsub.s32 %v845, %v853
      %v870 = vadd.f32 %v821, 0.0
      %v871 = vadd.f32 %v822, 0.0
      %v872 = vadd.f32 %v823, 0.0
      %v873 = vadd.f32 %v824, 0.0
      %v874 = vadd.f32 %v825, 0.0
      %v875 = vadd.f32 %v826, 0.0
      %v876 = vadd.f32 %v827, 0.0
      %v877 = vadd.f32 %v828, 0.0
      %vm878 = vcmp.eq.f32.partialorder %v805, %v870
      %vm879 = vcmp.eq.f32.partialorder %v806, %v871
      %vm880 = vcmp.eq.f32.partialorder %v807, %v872
      %vm881 = vcmp.eq.f32.partialorder %v808, %v873
      %vm882 = vcmp.eq.f32.partialorder %v809, %v874
      %vm883 = vcmp.eq.f32.partialorder %v810, %v875
      %vm884 = vcmp.eq.f32.partialorder %v811, %v876
      %vm885 = vcmp.eq.f32.partialorder %v812, %v877
      %vm886 = vmand %vm393, %vm878
      %vm887 = vmand %vm394, %vm879
      %vm888 = vmand %vm395, %vm880
      %vm889 = vmand %vm396, %vm881
      %vm890 = vmand %vm397, %vm882
      %vm891 = vmand %vm398, %vm883
      %vm892 = vmand %vm399, %vm884
      %vm893 = vmand %vm400, %vm885
      %v894 = vsel %vm886, %v829, 0.0
      %v895 = vsel %vm887, %v830, 0.0
      %v896 = vsel %vm888, %v831, 0.0
      %v897 = vsel %vm889, %v832, 0.0
      %v898 = vsel %vm890, %v833, 0.0
      %v899 = vsel %vm891, %v834, 0.0
      %v900 = vsel %vm892, %v835, 0.0
      %v901 = vsel %vm893, %v836, 0.0
      %v902 = vsel %vm441, %v894, 0.0
      %903 = vadd.xlane.f32.xlu0 %v902
      %v904 = vpop.xlane.xlu0 %903
      %v905 = vsel %vm441, %v895, 0.0
      %906 = vadd.xlane.f32.xlu0 %v905
      %v907 = vpop.xlane.xlu0 %906
      %v908 = vsel %vm441, %v896, 0.0
      %909 = vadd.xlane.f32.xlu0 %v908
      %v910 = vpop.xlane.xlu0 %909
      %v911 = vsel %vm441, %v897, 0.0
      %912 = vadd.xlane.f32.xlu0 %v911
      %v913 = vpop.xlane.xlu0 %912
      %v914 = vsel %vm441, %v898, 0.0
      %915 = vadd.xlane.f32.xlu0 %v914
      %v916 = vpop.xlane.xlu0 %915
      %v917 = vsel %vm441, %v899, 0.0
      %918 = vadd.xlane.f32.xlu0 %v917
      %v919 = vpop.xlane.xlu0 %918
      %v920 = vsel %vm441, %v900, 0.0
      %921 = vadd.xlane.f32.xlu0 %v920
      %v922 = vpop.xlane.xlu0 %921
      %v923 = vsel %vm441, %v901, 0.0
      %924 = vadd.xlane.f32.xlu0 %v923
      %v925 = vpop.xlane.xlu0 %924
      %v926 = vsel %vm886, %v837, 0.0
      %v927 = vsel %vm887, %v838, 0.0
      %v928 = vsel %vm888, %v839, 0.0
      %v929 = vsel %vm889, %v840, 0.0
      %v930 = vsel %vm890, %v841, 0.0
      %v931 = vsel %vm891, %v842, 0.0
      %v932 = vsel %vm892, %v843, 0.0
      %v933 = vsel %vm893, %v844, 0.0
      %v934 = vsel %vm441, %v926, 0.0
      %935 = vadd.xlane.f32.xlu0 %v934
      %v936 = vpop.xlane.xlu0 %935
      %v937 = vsel %vm441, %v927, 0.0
      %938 = vadd.xlane.f32.xlu0 %v937
      %v939 = vpop.xlane.xlu0 %938
      %v940 = vsel %vm441, %v928, 0.0
      %941 = vadd.xlane.f32.xlu0 %v940
      %v942 = vpop.xlane.xlu0 %941
      %v943 = vsel %vm441, %v929, 0.0
      %944 = vadd.xlane.f32.xlu0 %v943
      %v945 = vpop.xlane.xlu0 %944
      %v946 = vsel %vm441, %v930, 0.0
      %947 = vadd.xlane.f32.xlu0 %v946
      %v948 = vpop.xlane.xlu0 %947
      %v949 = vsel %vm441, %v931, 0.0
      %950 = vadd.xlane.f32.xlu0 %v949
      %v951 = vpop.xlane.xlu0 %950
      %v952 = vsel %vm441, %v932, 0.0
      %953 = vadd.xlane.f32.xlu0 %v952
      %v954 = vpop.xlane.xlu0 %953
      %v955 = vsel %vm441, %v933, 0.0
      %956 = vadd.xlane.f32.xlu0 %v955
      %v957 = vpop.xlane.xlu0 %956
      %vm958 = vcmp.eq.s32.totalorder %v854, 0
      %vm959 = vcmp.eq.s32.totalorder %v855, 0
      %vm960 = vcmp.eq.s32.totalorder %v856, 0
      %vm961 = vcmp.eq.s32.totalorder %v857, 0
      %vm962 = vcmp.eq.s32.totalorder %v858, 0
      %vm963 = vcmp.eq.s32.totalorder %v859, 0
      %vm964 = vcmp.eq.s32.totalorder %v860, 0
      %vm965 = vcmp.eq.s32.totalorder %v861, 0
      %vm966 = vcmp.eq.s32.totalorder %v862, 0
      %vm967 = vcmp.eq.s32.totalorder %v863, 0
      %vm968 = vcmp.eq.s32.totalorder %v864, 0
      %vm969 = vcmp.eq.s32.totalorder %v865, 0
      %vm970 = vcmp.eq.s32.totalorder %v866, 0
      %vm971 = vcmp.eq.s32.totalorder %v867, 0
      %vm972 = vcmp.eq.s32.totalorder %v868, 0
      %vm973 = vcmp.eq.s32.totalorder %v869, 0
      %v974 = vsel %vm958, %v904, 0.0
      %v975 = vsel %vm959, %v904, 0.0
      %v976 = vsel %vm960, %v907, 0.0
      %v977 = vsel %vm961, %v907, 0.0
      %v978 = vsel %vm962, %v910, 0.0
      %v979 = vsel %vm963, %v910, 0.0
      %v980 = vsel %vm964, %v913, 0.0
      %v981 = vsel %vm965, %v913, 0.0
      %v982 = vsel %vm966, %v916, 0.0
      %v983 = vsel %vm967, %v916, 0.0
      %v984 = vsel %vm968, %v919, 0.0
      %v985 = vsel %vm969, %v919, 0.0
      %v986 = vsel %vm970, %v922, 0.0
      %v987 = vsel %vm971, %v922, 0.0
      %v988 = vsel %vm972, %v925, 0.0
      %v989 = vsel %vm973, %v925, 0.0
      %v990 = vadd.f32 %v974, 0.0
      %v991 = vadd.f32 %v975, 0.0
      %v992 = vadd.f32 %v976, 0.0
      %v993 = vadd.f32 %v977, 0.0
      %v994 = vadd.f32 %v978, 0.0
      %v995 = vadd.f32 %v979, 0.0
      %v996 = vadd.f32 %v980, 0.0
      %v997 = vadd.f32 %v981, 0.0
      %v998 = vadd.f32 %v982, 0.0
      %v999 = vadd.f32 %v983, 0.0
      %v1000 = vadd.f32 %v984, 0.0
      %v1001 = vadd.f32 %v985, 0.0
      %v1002 = vadd.f32 %v986, 0.0
      %v1003 = vadd.f32 %v987, 0.0
      %v1004 = vadd.f32 %v988, 0.0
      %v1005 = vadd.f32 %v989, 0.0
      %v1006 = vsel %vm958, %v936, 0.0
      %v1007 = vsel %vm959, %v936, 0.0
      %v1008 = vsel %vm960, %v939, 0.0
      %v1009 = vsel %vm961, %v939, 0.0
      %v1010 = vsel %vm962, %v942, 0.0
      %v1011 = vsel %vm963, %v942, 0.0
      %v1012 = vsel %vm964, %v945, 0.0
      %v1013 = vsel %vm965, %v945, 0.0
      %v1014 = vsel %vm966, %v948, 0.0
      %v1015 = vsel %vm967, %v948, 0.0
      %v1016 = vsel %vm968, %v951, 0.0
      %v1017 = vsel %vm969, %v951, 0.0
      %v1018 = vsel %vm970, %v954, 0.0
      %v1019 = vsel %vm971, %v954, 0.0
      %v1020 = vsel %vm972, %v957, 0.0
      %v1021 = vsel %vm973, %v957, 0.0
      %v1022 = vadd.f32 %v1006, 0.0
      %v1023 = vadd.f32 %v1007, 0.0
      %v1024 = vadd.f32 %v1008, 0.0
      %v1025 = vadd.f32 %v1009, 0.0
      %v1026 = vadd.f32 %v1010, 0.0
      %v1027 = vadd.f32 %v1011, 0.0
      %v1028 = vadd.f32 %v1012, 0.0
      %v1029 = vadd.f32 %v1013, 0.0
      %v1030 = vadd.f32 %v1014, 0.0
      %v1031 = vadd.f32 %v1015, 0.0
      %v1032 = vadd.f32 %v1016, 0.0
      %v1033 = vadd.f32 %v1017, 0.0
      %v1034 = vadd.f32 %v1018, 0.0
      %v1035 = vadd.f32 %v1019, 0.0
      %v1036 = vadd.f32 %v1020, 0.0
      %v1037 = vadd.f32 %v1021, 0.0
      %v1038 = vadd.f32 %v821, 1.0
      %v1039 = vadd.f32 %v822, 1.0
      %v1040 = vadd.f32 %v823, 1.0
      %v1041 = vadd.f32 %v824, 1.0
      %v1042 = vadd.f32 %v825, 1.0
      %v1043 = vadd.f32 %v826, 1.0
      %v1044 = vadd.f32 %v827, 1.0
      %v1045 = vadd.f32 %v828, 1.0
      %vm1046 = vcmp.eq.f32.partialorder %v805, %v1038
      %vm1047 = vcmp.eq.f32.partialorder %v806, %v1039
      %vm1048 = vcmp.eq.f32.partialorder %v807, %v1040
      %vm1049 = vcmp.eq.f32.partialorder %v808, %v1041
      %vm1050 = vcmp.eq.f32.partialorder %v809, %v1042
      %vm1051 = vcmp.eq.f32.partialorder %v810, %v1043
      %vm1052 = vcmp.eq.f32.partialorder %v811, %v1044
      %vm1053 = vcmp.eq.f32.partialorder %v812, %v1045
      %vm1054 = vmand %vm393, %vm1046
      %vm1055 = vmand %vm394, %vm1047
      %vm1056 = vmand %vm395, %vm1048
      %vm1057 = vmand %vm396, %vm1049
      %vm1058 = vmand %vm397, %vm1050
      %vm1059 = vmand %vm398, %vm1051
      %vm1060 = vmand %vm399, %vm1052
      %vm1061 = vmand %vm400, %vm1053
      %v1062 = vsel %vm1054, %v829, 0.0
      %v1063 = vsel %vm1055, %v830, 0.0
      %v1064 = vsel %vm1056, %v831, 0.0
      %v1065 = vsel %vm1057, %v832, 0.0
      %v1066 = vsel %vm1058, %v833, 0.0
      %v1067 = vsel %vm1059, %v834, 0.0
      %v1068 = vsel %vm1060, %v835, 0.0
      %v1069 = vsel %vm1061, %v836, 0.0
      %v1070 = vsel %vm441, %v1062, 0.0
      %1071 = vadd.xlane.f32.xlu0 %v1070
      %v1072 = vpop.xlane.xlu0 %1071
      %v1073 = vsel %vm441, %v1063, 0.0
      %1074 = vadd.xlane.f32.xlu0 %v1073
      %v1075 = vpop.xlane.xlu0 %1074
      %v1076 = vsel %vm441, %v1064, 0.0
      %1077 = vadd.xlane.f32.xlu0 %v1076
      %v1078 = vpop.xlane.xlu0 %1077
      %v1079 = vsel %vm441, %v1065, 0.0
      %1080 = vadd.xlane.f32.xlu0 %v1079
      %v1081 = vpop.xlane.xlu0 %1080
      %v1082 = vsel %vm441, %v1066, 0.0
      %1083 = vadd.xlane.f32.xlu0 %v1082
      %v1084 = vpop.xlane.xlu0 %1083
      %v1085 = vsel %vm441, %v1067, 0.0
      %1086 = vadd.xlane.f32.xlu0 %v1085
      %v1087 = vpop.xlane.xlu0 %1086
      %v1088 = vsel %vm441, %v1068, 0.0
      %1089 = vadd.xlane.f32.xlu0 %v1088
      %v1090 = vpop.xlane.xlu0 %1089
      %v1091 = vsel %vm441, %v1069, 0.0
      %1092 = vadd.xlane.f32.xlu0 %v1091
      %v1093 = vpop.xlane.xlu0 %1092
      %v1094 = vsel %vm1054, %v837, 0.0
      %v1095 = vsel %vm1055, %v838, 0.0
      %v1096 = vsel %vm1056, %v839, 0.0
      %v1097 = vsel %vm1057, %v840, 0.0
      %v1098 = vsel %vm1058, %v841, 0.0
      %v1099 = vsel %vm1059, %v842, 0.0
      %v1100 = vsel %vm1060, %v843, 0.0
      %v1101 = vsel %vm1061, %v844, 0.0
      %v1102 = vsel %vm441, %v1094, 0.0
      %1103 = vadd.xlane.f32.xlu0 %v1102
      %v1104 = vpop.xlane.xlu0 %1103
      %v1105 = vsel %vm441, %v1095, 0.0
      %1106 = vadd.xlane.f32.xlu0 %v1105
      %v1107 = vpop.xlane.xlu0 %1106
      %v1108 = vsel %vm441, %v1096, 0.0
      %1109 = vadd.xlane.f32.xlu0 %v1108
      %v1110 = vpop.xlane.xlu0 %1109
      %v1111 = vsel %vm441, %v1097, 0.0
      %1112 = vadd.xlane.f32.xlu0 %v1111
      %v1113 = vpop.xlane.xlu0 %1112
      %v1114 = vsel %vm441, %v1098, 0.0
      %1115 = vadd.xlane.f32.xlu0 %v1114
      %v1116 = vpop.xlane.xlu0 %1115
      %v1117 = vsel %vm441, %v1099, 0.0
      %1118 = vadd.xlane.f32.xlu0 %v1117
      %v1119 = vpop.xlane.xlu0 %1118
      %v1120 = vsel %vm441, %v1100, 0.0
      %1121 = vadd.xlane.f32.xlu0 %v1120
      %v1122 = vpop.xlane.xlu0 %1121
      %v1123 = vsel %vm441, %v1101, 0.0
      %1124 = vadd.xlane.f32.xlu0 %v1123
      %v1125 = vpop.xlane.xlu0 %1124
      %vm1126 = vcmp.eq.s32.totalorder %v854, 1
      %vm1127 = vcmp.eq.s32.totalorder %v855, 1
      %vm1128 = vcmp.eq.s32.totalorder %v856, 1
      %vm1129 = vcmp.eq.s32.totalorder %v857, 1
      %vm1130 = vcmp.eq.s32.totalorder %v858, 1
      %vm1131 = vcmp.eq.s32.totalorder %v859, 1
      %vm1132 = vcmp.eq.s32.totalorder %v860, 1
      %vm1133 = vcmp.eq.s32.totalorder %v861, 1
      %vm1134 = vcmp.eq.s32.totalorder %v862, 1
      %vm1135 = vcmp.eq.s32.totalorder %v863, 1
      %vm1136 = vcmp.eq.s32.totalorder %v864, 1
      %vm1137 = vcmp.eq.s32.totalorder %v865, 1
      %vm1138 = vcmp.eq.s32.totalorder %v866, 1
      %vm1139 = vcmp.eq.s32.totalorder %v867, 1
      %vm1140 = vcmp.eq.s32.totalorder %v868, 1
      %vm1141 = vcmp.eq.s32.totalorder %v869, 1
      %v1142 = vsel %vm1126, %v1072, 0.0
      %v1143 = vsel %vm1127, %v1072, 0.0
      %v1144 = vsel %vm1128, %v1075, 0.0
      %v1145 = vsel %vm1129, %v1075, 0.0
      %v1146 = vsel %vm1130, %v1078, 0.0
      %v1147 = vsel %vm1131, %v1078, 0.0
      %v1148 = vsel %vm1132, %v1081, 0.0
      %v1149 = vsel %vm1133, %v1081, 0.0
      %v1150 = vsel %vm1134, %v1084, 0.0
      %v1151 = vsel %vm1135, %v1084, 0.0
      %v1152 = vsel %vm1136, %v1087, 0.0
      %v1153 = vsel %vm1137, %v1087, 0.0
      %v1154 = vsel %vm1138, %v1090, 0.0
      %v1155 = vsel %vm1139, %v1090, 0.0
      %v1156 = vsel %vm1140, %v1093, 0.0
      %v1157 = vsel %vm1141, %v1093, 0.0
      %v1158 = vadd.f32 %v990, %v1142
      %v1159 = vadd.f32 %v991, %v1143
      %v1160 = vadd.f32 %v992, %v1144
      %v1161 = vadd.f32 %v993, %v1145
      %v1162 = vadd.f32 %v994, %v1146
      %v1163 = vadd.f32 %v995, %v1147
      %v1164 = vadd.f32 %v996, %v1148
      %v1165 = vadd.f32 %v997, %v1149
      %v1166 = vadd.f32 %v998, %v1150
      %v1167 = vadd.f32 %v999, %v1151
      %v1168 = vadd.f32 %v1000, %v1152
      %v1169 = vadd.f32 %v1001, %v1153
      %v1170 = vadd.f32 %v1002, %v1154
      %v1171 = vadd.f32 %v1003, %v1155
      %v1172 = vadd.f32 %v1004, %v1156
      %v1173 = vadd.f32 %v1005, %v1157
      %v1174 = vsel %vm1126, %v1104, 0.0
      %v1175 = vsel %vm1127, %v1104, 0.0
      %v1176 = vsel %vm1128, %v1107, 0.0
      %v1177 = vsel %vm1129, %v1107, 0.0
      %v1178 = vsel %vm1130, %v1110, 0.0
      %v1179 = vsel %vm1131, %v1110, 0.0
      %v1180 = vsel %vm1132, %v1113, 0.0
      %v1181 = vsel %vm1133, %v1113, 0.0
      %v1182 = vsel %vm1134, %v1116, 0.0
      %v1183 = vsel %vm1135, %v1116, 0.0
      %v1184 = vsel %vm1136, %v1119, 0.0
      %v1185 = vsel %vm1137, %v1119, 0.0
      %v1186 = vsel %vm1138, %v1122, 0.0
      %v1187 = vsel %vm1139, %v1122, 0.0
      %v1188 = vsel %vm1140, %v1125, 0.0
      %v1189 = vsel %vm1141, %v1125, 0.0
      %v1190 = vadd.f32 %v1022, %v1174
      %v1191 = vadd.f32 %v1023, %v1175
      %v1192 = vadd.f32 %v1024, %v1176
      %v1193 = vadd.f32 %v1025, %v1177
      %v1194 = vadd.f32 %v1026, %v1178
      %v1195 = vadd.f32 %v1027, %v1179
      %v1196 = vadd.f32 %v1028, %v1180
      %v1197 = vadd.f32 %v1029, %v1181
      %v1198 = vadd.f32 %v1030, %v1182
      %v1199 = vadd.f32 %v1031, %v1183
      %v1200 = vadd.f32 %v1032, %v1184
      %v1201 = vadd.f32 %v1033, %v1185
      %v1202 = vadd.f32 %v1034, %v1186
      %v1203 = vadd.f32 %v1035, %v1187
      %v1204 = vadd.f32 %v1036, %v1188
      %v1205 = vadd.f32 %v1037, %v1189
      %v1206 = vadd.f32 %v821, 2.0
      %v1207 = vadd.f32 %v822, 2.0
      %v1208 = vadd.f32 %v823, 2.0
      %v1209 = vadd.f32 %v824, 2.0
      %v1210 = vadd.f32 %v825, 2.0
      %v1211 = vadd.f32 %v826, 2.0
      %v1212 = vadd.f32 %v827, 2.0
      %v1213 = vadd.f32 %v828, 2.0
      %vm1214 = vcmp.eq.f32.partialorder %v805, %v1206
      %vm1215 = vcmp.eq.f32.partialorder %v806, %v1207
      %vm1216 = vcmp.eq.f32.partialorder %v807, %v1208
      %vm1217 = vcmp.eq.f32.partialorder %v808, %v1209
      %vm1218 = vcmp.eq.f32.partialorder %v809, %v1210
      %vm1219 = vcmp.eq.f32.partialorder %v810, %v1211
      %vm1220 = vcmp.eq.f32.partialorder %v811, %v1212
      %vm1221 = vcmp.eq.f32.partialorder %v812, %v1213
      %vm1222 = vmand %vm393, %vm1214
      %vm1223 = vmand %vm394, %vm1215
      %vm1224 = vmand %vm395, %vm1216
      %vm1225 = vmand %vm396, %vm1217
      %vm1226 = vmand %vm397, %vm1218
      %vm1227 = vmand %vm398, %vm1219
      %vm1228 = vmand %vm399, %vm1220
      %vm1229 = vmand %vm400, %vm1221
      %v1230 = vsel %vm1222, %v829, 0.0
      %v1231 = vsel %vm1223, %v830, 0.0
      %v1232 = vsel %vm1224, %v831, 0.0
      %v1233 = vsel %vm1225, %v832, 0.0
      %v1234 = vsel %vm1226, %v833, 0.0
      %v1235 = vsel %vm1227, %v834, 0.0
      %v1236 = vsel %vm1228, %v835, 0.0
      %v1237 = vsel %vm1229, %v836, 0.0
      %v1238 = vsel %vm441, %v1230, 0.0
      %1239 = vadd.xlane.f32.xlu0 %v1238
      %v1240 = vpop.xlane.xlu0 %1239
      %v1241 = vsel %vm441, %v1231, 0.0
      %1242 = vadd.xlane.f32.xlu0 %v1241
      %v1243 = vpop.xlane.xlu0 %1242
      %v1244 = vsel %vm441, %v1232, 0.0
      %1245 = vadd.xlane.f32.xlu0 %v1244
      %v1246 = vpop.xlane.xlu0 %1245
      %v1247 = vsel %vm441, %v1233, 0.0
      %1248 = vadd.xlane.f32.xlu0 %v1247
      %v1249 = vpop.xlane.xlu0 %1248
      %v1250 = vsel %vm441, %v1234, 0.0
      %1251 = vadd.xlane.f32.xlu0 %v1250
      %v1252 = vpop.xlane.xlu0 %1251
      %v1253 = vsel %vm441, %v1235, 0.0
      %1254 = vadd.xlane.f32.xlu0 %v1253
      %v1255 = vpop.xlane.xlu0 %1254
      %v1256 = vsel %vm441, %v1236, 0.0
      %1257 = vadd.xlane.f32.xlu0 %v1256
      %v1258 = vpop.xlane.xlu0 %1257
      %v1259 = vsel %vm441, %v1237, 0.0
      %1260 = vadd.xlane.f32.xlu0 %v1259
      %v1261 = vpop.xlane.xlu0 %1260
      %v1262 = vsel %vm1222, %v837, 0.0
      %v1263 = vsel %vm1223, %v838, 0.0
      %v1264 = vsel %vm1224, %v839, 0.0
      %v1265 = vsel %vm1225, %v840, 0.0
      %v1266 = vsel %vm1226, %v841, 0.0
      %v1267 = vsel %vm1227, %v842, 0.0
      %v1268 = vsel %vm1228, %v843, 0.0
      %v1269 = vsel %vm1229, %v844, 0.0
      %v1270 = vsel %vm441, %v1262, 0.0
      %1271 = vadd.xlane.f32.xlu0 %v1270
      %v1272 = vpop.xlane.xlu0 %1271
      %v1273 = vsel %vm441, %v1263, 0.0
      %1274 = vadd.xlane.f32.xlu0 %v1273
      %v1275 = vpop.xlane.xlu0 %1274
      %v1276 = vsel %vm441, %v1264, 0.0
      %1277 = vadd.xlane.f32.xlu0 %v1276
      %v1278 = vpop.xlane.xlu0 %1277
      %v1279 = vsel %vm441, %v1265, 0.0
      %1280 = vadd.xlane.f32.xlu0 %v1279
      %v1281 = vpop.xlane.xlu0 %1280
      %v1282 = vsel %vm441, %v1266, 0.0
      %1283 = vadd.xlane.f32.xlu0 %v1282
      %v1284 = vpop.xlane.xlu0 %1283
      %v1285 = vsel %vm441, %v1267, 0.0
      %1286 = vadd.xlane.f32.xlu0 %v1285
      %v1287 = vpop.xlane.xlu0 %1286
      %v1288 = vsel %vm441, %v1268, 0.0
      %1289 = vadd.xlane.f32.xlu0 %v1288
      %v1290 = vpop.xlane.xlu0 %1289
      %v1291 = vsel %vm441, %v1269, 0.0
      %1292 = vadd.xlane.f32.xlu0 %v1291
      %v1293 = vpop.xlane.xlu0 %1292
      %vm1294 = vcmp.eq.s32.totalorder %v854, 2
      %vm1295 = vcmp.eq.s32.totalorder %v855, 2
      %vm1296 = vcmp.eq.s32.totalorder %v856, 2
      %vm1297 = vcmp.eq.s32.totalorder %v857, 2
      %vm1298 = vcmp.eq.s32.totalorder %v858, 2
      %vm1299 = vcmp.eq.s32.totalorder %v859, 2
      %vm1300 = vcmp.eq.s32.totalorder %v860, 2
      %vm1301 = vcmp.eq.s32.totalorder %v861, 2
      %vm1302 = vcmp.eq.s32.totalorder %v862, 2
      %vm1303 = vcmp.eq.s32.totalorder %v863, 2
      %vm1304 = vcmp.eq.s32.totalorder %v864, 2
      %vm1305 = vcmp.eq.s32.totalorder %v865, 2
      %vm1306 = vcmp.eq.s32.totalorder %v866, 2
      %vm1307 = vcmp.eq.s32.totalorder %v867, 2
      %vm1308 = vcmp.eq.s32.totalorder %v868, 2
      %vm1309 = vcmp.eq.s32.totalorder %v869, 2
      %v1310 = vsel %vm1294, %v1240, 0.0
      %v1311 = vsel %vm1295, %v1240, 0.0
      %v1312 = vsel %vm1296, %v1243, 0.0
      %v1313 = vsel %vm1297, %v1243, 0.0
      %v1314 = vsel %vm1298, %v1246, 0.0
      %v1315 = vsel %vm1299, %v1246, 0.0
      %v1316 = vsel %vm1300, %v1249, 0.0
      %v1317 = vsel %vm1301, %v1249, 0.0
      %v1318 = vsel %vm1302, %v1252, 0.0
      %v1319 = vsel %vm1303, %v1252, 0.0
      %v1320 = vsel %vm1304, %v1255, 0.0
      %v1321 = vsel %vm1305, %v1255, 0.0
      %v1322 = vsel %vm1306, %v1258, 0.0
      %v1323 = vsel %vm1307, %v1258, 0.0
      %v1324 = vsel %vm1308, %v1261, 0.0
      %v1325 = vsel %vm1309, %v1261, 0.0
      %v1326 = vadd.f32 %v1158, %v1310
      %v1327 = vadd.f32 %v1159, %v1311
      %v1328 = vadd.f32 %v1160, %v1312
      %v1329 = vadd.f32 %v1161, %v1313
      %v1330 = vadd.f32 %v1162, %v1314
      %v1331 = vadd.f32 %v1163, %v1315
      %v1332 = vadd.f32 %v1164, %v1316
      %v1333 = vadd.f32 %v1165, %v1317
      %v1334 = vadd.f32 %v1166, %v1318
      %v1335 = vadd.f32 %v1167, %v1319
      %v1336 = vadd.f32 %v1168, %v1320
      %v1337 = vadd.f32 %v1169, %v1321
      %v1338 = vadd.f32 %v1170, %v1322
      %v1339 = vadd.f32 %v1171, %v1323
      %v1340 = vadd.f32 %v1172, %v1324
      %v1341 = vadd.f32 %v1173, %v1325
      %v1342 = vsel %vm1294, %v1272, 0.0
      %v1343 = vsel %vm1295, %v1272, 0.0
      %v1344 = vsel %vm1296, %v1275, 0.0
      %v1345 = vsel %vm1297, %v1275, 0.0
      %v1346 = vsel %vm1298, %v1278, 0.0
      %v1347 = vsel %vm1299, %v1278, 0.0
      %v1348 = vsel %vm1300, %v1281, 0.0
      %v1349 = vsel %vm1301, %v1281, 0.0
      %v1350 = vsel %vm1302, %v1284, 0.0
      %v1351 = vsel %vm1303, %v1284, 0.0
      %v1352 = vsel %vm1304, %v1287, 0.0
      %v1353 = vsel %vm1305, %v1287, 0.0
      %v1354 = vsel %vm1306, %v1290, 0.0
      %v1355 = vsel %vm1307, %v1290, 0.0
      %v1356 = vsel %vm1308, %v1293, 0.0
      %v1357 = vsel %vm1309, %v1293, 0.0
      %v1358 = vadd.f32 %v1190, %v1342
      %v1359 = vadd.f32 %v1191, %v1343
      %v1360 = vadd.f32 %v1192, %v1344
      %v1361 = vadd.f32 %v1193, %v1345
      %v1362 = vadd.f32 %v1194, %v1346
      %v1363 = vadd.f32 %v1195, %v1347
      %v1364 = vadd.f32 %v1196, %v1348
      %v1365 = vadd.f32 %v1197, %v1349
      %v1366 = vadd.f32 %v1198, %v1350
      %v1367 = vadd.f32 %v1199, %v1351
      %v1368 = vadd.f32 %v1200, %v1352
      %v1369 = vadd.f32 %v1201, %v1353
      %v1370 = vadd.f32 %v1202, %v1354
      %v1371 = vadd.f32 %v1203, %v1355
      %v1372 = vadd.f32 %v1204, %v1356
      %v1373 = vadd.f32 %v1205, %v1357
      %v1374 = vadd.f32 %v821, 3.0
      %v1375 = vadd.f32 %v822, 3.0
      %v1376 = vadd.f32 %v823, 3.0
      %v1377 = vadd.f32 %v824, 3.0
      %v1378 = vadd.f32 %v825, 3.0
      %v1379 = vadd.f32 %v826, 3.0
      %v1380 = vadd.f32 %v827, 3.0
      %v1381 = vadd.f32 %v828, 3.0
      %vm1382 = vcmp.eq.f32.partialorder %v805, %v1374
      %vm1383 = vcmp.eq.f32.partialorder %v806, %v1375
      %vm1384 = vcmp.eq.f32.partialorder %v807, %v1376
      %vm1385 = vcmp.eq.f32.partialorder %v808, %v1377
      %vm1386 = vcmp.eq.f32.partialorder %v809, %v1378
      %vm1387 = vcmp.eq.f32.partialorder %v810, %v1379
      %vm1388 = vcmp.eq.f32.partialorder %v811, %v1380
      %vm1389 = vcmp.eq.f32.partialorder %v812, %v1381
      %vm1390 = vmand %vm393, %vm1382
      %vm1391 = vmand %vm394, %vm1383
      %vm1392 = vmand %vm395, %vm1384
      %vm1393 = vmand %vm396, %vm1385
      %vm1394 = vmand %vm397, %vm1386
      %vm1395 = vmand %vm398, %vm1387
      %vm1396 = vmand %vm399, %vm1388
      %vm1397 = vmand %vm400, %vm1389
      %v1398 = vsel %vm1390, %v829, 0.0
      %v1399 = vsel %vm1391, %v830, 0.0
      %v1400 = vsel %vm1392, %v831, 0.0
      %v1401 = vsel %vm1393, %v832, 0.0
      %v1402 = vsel %vm1394, %v833, 0.0
      %v1403 = vsel %vm1395, %v834, 0.0
      %v1404 = vsel %vm1396, %v835, 0.0
      %v1405 = vsel %vm1397, %v836, 0.0
      %v1406 = vsel %vm441, %v1398, 0.0
      %1407 = vadd.xlane.f32.xlu0 %v1406
      %v1408 = vpop.xlane.xlu0 %1407
      %v1409 = vsel %vm441, %v1399, 0.0
      %1410 = vadd.xlane.f32.xlu0 %v1409
      %v1411 = vpop.xlane.xlu0 %1410
      %v1412 = vsel %vm441, %v1400, 0.0
      %1413 = vadd.xlane.f32.xlu0 %v1412
      %v1414 = vpop.xlane.xlu0 %1413
      %v1415 = vsel %vm441, %v1401, 0.0
      %1416 = vadd.xlane.f32.xlu0 %v1415
      %v1417 = vpop.xlane.xlu0 %1416
      %v1418 = vsel %vm441, %v1402, 0.0
      %1419 = vadd.xlane.f32.xlu0 %v1418
      %v1420 = vpop.xlane.xlu0 %1419
      %v1421 = vsel %vm441, %v1403, 0.0
      %1422 = vadd.xlane.f32.xlu0 %v1421
      %v1423 = vpop.xlane.xlu0 %1422
      %v1424 = vsel %vm441, %v1404, 0.0
      %1425 = vadd.xlane.f32.xlu0 %v1424
      %v1426 = vpop.xlane.xlu0 %1425
      %v1427 = vsel %vm441, %v1405, 0.0
      %1428 = vadd.xlane.f32.xlu0 %v1427
      %v1429 = vpop.xlane.xlu0 %1428
      %v1430 = vsel %vm1390, %v837, 0.0
      %v1431 = vsel %vm1391, %v838, 0.0
      %v1432 = vsel %vm1392, %v839, 0.0
      %v1433 = vsel %vm1393, %v840, 0.0
      %v1434 = vsel %vm1394, %v841, 0.0
      %v1435 = vsel %vm1395, %v842, 0.0
      %v1436 = vsel %vm1396, %v843, 0.0
      %v1437 = vsel %vm1397, %v844, 0.0
      %v1438 = vsel %vm441, %v1430, 0.0
      %1439 = vadd.xlane.f32.xlu0 %v1438
      %v1440 = vpop.xlane.xlu0 %1439
      %v1441 = vsel %vm441, %v1431, 0.0
      %1442 = vadd.xlane.f32.xlu0 %v1441
      %v1443 = vpop.xlane.xlu0 %1442
      %v1444 = vsel %vm441, %v1432, 0.0
      %1445 = vadd.xlane.f32.xlu0 %v1444
      %v1446 = vpop.xlane.xlu0 %1445
      %v1447 = vsel %vm441, %v1433, 0.0
      %1448 = vadd.xlane.f32.xlu0 %v1447
      %v1449 = vpop.xlane.xlu0 %1448
      %v1450 = vsel %vm441, %v1434, 0.0
      %1451 = vadd.xlane.f32.xlu0 %v1450
      %v1452 = vpop.xlane.xlu0 %1451
      %v1453 = vsel %vm441, %v1435, 0.0
      %1454 = vadd.xlane.f32.xlu0 %v1453
      %v1455 = vpop.xlane.xlu0 %1454
      %v1456 = vsel %vm441, %v1436, 0.0
      %1457 = vadd.xlane.f32.xlu0 %v1456
      %v1458 = vpop.xlane.xlu0 %1457
      %v1459 = vsel %vm441, %v1437, 0.0
      %1460 = vadd.xlane.f32.xlu0 %v1459
      %v1461 = vpop.xlane.xlu0 %1460
      %vm1462 = vcmp.eq.s32.totalorder %v854, 3
      %vm1463 = vcmp.eq.s32.totalorder %v855, 3
      %vm1464 = vcmp.eq.s32.totalorder %v856, 3
      %vm1465 = vcmp.eq.s32.totalorder %v857, 3
      %vm1466 = vcmp.eq.s32.totalorder %v858, 3
      %vm1467 = vcmp.eq.s32.totalorder %v859, 3
      %vm1468 = vcmp.eq.s32.totalorder %v860, 3
      %vm1469 = vcmp.eq.s32.totalorder %v861, 3
      %vm1470 = vcmp.eq.s32.totalorder %v862, 3
      %vm1471 = vcmp.eq.s32.totalorder %v863, 3
      %vm1472 = vcmp.eq.s32.totalorder %v864, 3
      %vm1473 = vcmp.eq.s32.totalorder %v865, 3
      %vm1474 = vcmp.eq.s32.totalorder %v866, 3
      %vm1475 = vcmp.eq.s32.totalorder %v867, 3
      %vm1476 = vcmp.eq.s32.totalorder %v868, 3
      %vm1477 = vcmp.eq.s32.totalorder %v869, 3
      %v1478 = vsel %vm1462, %v1408, 0.0
      %v1479 = vsel %vm1463, %v1408, 0.0
      %v1480 = vsel %vm1464, %v1411, 0.0
      %v1481 = vsel %vm1465, %v1411, 0.0
      %v1482 = vsel %vm1466, %v1414, 0.0
      %v1483 = vsel %vm1467, %v1414, 0.0
      %v1484 = vsel %vm1468, %v1417, 0.0
      %v1485 = vsel %vm1469, %v1417, 0.0
      %v1486 = vsel %vm1470, %v1420, 0.0
      %v1487 = vsel %vm1471, %v1420, 0.0
      %v1488 = vsel %vm1472, %v1423, 0.0
      %v1489 = vsel %vm1473, %v1423, 0.0
      %v1490 = vsel %vm1474, %v1426, 0.0
      %v1491 = vsel %vm1475, %v1426, 0.0
      %v1492 = vsel %vm1476, %v1429, 0.0
      %v1493 = vsel %vm1477, %v1429, 0.0
      %v1494 = vadd.f32 %v1326, %v1478
      %v1495 = vadd.f32 %v1327, %v1479
      %v1496 = vadd.f32 %v1328, %v1480
      %v1497 = vadd.f32 %v1329, %v1481
      %v1498 = vadd.f32 %v1330, %v1482
      %v1499 = vadd.f32 %v1331, %v1483
      %v1500 = vadd.f32 %v1332, %v1484
      %v1501 = vadd.f32 %v1333, %v1485
      %v1502 = vadd.f32 %v1334, %v1486
      %v1503 = vadd.f32 %v1335, %v1487
      %v1504 = vadd.f32 %v1336, %v1488
      %v1505 = vadd.f32 %v1337, %v1489
      %v1506 = vadd.f32 %v1338, %v1490
      %v1507 = vadd.f32 %v1339, %v1491
      %v1508 = vadd.f32 %v1340, %v1492
      %v1509 = vadd.f32 %v1341, %v1493
      %v1510 = vsel %vm1462, %v1440, 0.0
      %v1511 = vsel %vm1463, %v1440, 0.0
      %v1512 = vsel %vm1464, %v1443, 0.0
      %v1513 = vsel %vm1465, %v1443, 0.0
      %v1514 = vsel %vm1466, %v1446, 0.0
      %v1515 = vsel %vm1467, %v1446, 0.0
      %v1516 = vsel %vm1468, %v1449, 0.0
      %v1517 = vsel %vm1469, %v1449, 0.0
      %v1518 = vsel %vm1470, %v1452, 0.0
      %v1519 = vsel %vm1471, %v1452, 0.0
      %v1520 = vsel %vm1472, %v1455, 0.0
      %v1521 = vsel %vm1473, %v1455, 0.0
      %v1522 = vsel %vm1474, %v1458, 0.0
      %v1523 = vsel %vm1475, %v1458, 0.0
      %v1524 = vsel %vm1476, %v1461, 0.0
      %v1525 = vsel %vm1477, %v1461, 0.0
      %v1526 = vadd.f32 %v1358, %v1510
      %v1527 = vadd.f32 %v1359, %v1511
      %v1528 = vadd.f32 %v1360, %v1512
      %v1529 = vadd.f32 %v1361, %v1513
      %v1530 = vadd.f32 %v1362, %v1514
      %v1531 = vadd.f32 %v1363, %v1515
      %v1532 = vadd.f32 %v1364, %v1516
      %v1533 = vadd.f32 %v1365, %v1517
      %v1534 = vadd.f32 %v1366, %v1518
      %v1535 = vadd.f32 %v1367, %v1519
      %v1536 = vadd.f32 %v1368, %v1520
      %v1537 = vadd.f32 %v1369, %v1521
      %v1538 = vadd.f32 %v1370, %v1522
      %v1539 = vadd.f32 %v1371, %v1523
      %v1540 = vadd.f32 %v1372, %v1524
      %v1541 = vadd.f32 %v1373, %v1525
      %v1542 = vadd.f32 %v821, 4.0
      %v1543 = vadd.f32 %v822, 4.0
      %v1544 = vadd.f32 %v823, 4.0
      %v1545 = vadd.f32 %v824, 4.0
      %v1546 = vadd.f32 %v825, 4.0
      %v1547 = vadd.f32 %v826, 4.0
      %v1548 = vadd.f32 %v827, 4.0
      %v1549 = vadd.f32 %v828, 4.0
      %vm1550 = vcmp.eq.f32.partialorder %v805, %v1542
      %vm1551 = vcmp.eq.f32.partialorder %v806, %v1543
      %vm1552 = vcmp.eq.f32.partialorder %v807, %v1544
      %vm1553 = vcmp.eq.f32.partialorder %v808, %v1545
      %vm1554 = vcmp.eq.f32.partialorder %v809, %v1546
      %vm1555 = vcmp.eq.f32.partialorder %v810, %v1547
      %vm1556 = vcmp.eq.f32.partialorder %v811, %v1548
      %vm1557 = vcmp.eq.f32.partialorder %v812, %v1549
      %vm1558 = vmand %vm393, %vm1550
      %vm1559 = vmand %vm394, %vm1551
      %vm1560 = vmand %vm395, %vm1552
      %vm1561 = vmand %vm396, %vm1553
      %vm1562 = vmand %vm397, %vm1554
      %vm1563 = vmand %vm398, %vm1555
      %vm1564 = vmand %vm399, %vm1556
      %vm1565 = vmand %vm400, %vm1557
      %v1566 = vsel %vm1558, %v829, 0.0
      %v1567 = vsel %vm1559, %v830, 0.0
      %v1568 = vsel %vm1560, %v831, 0.0
      %v1569 = vsel %vm1561, %v832, 0.0
      %v1570 = vsel %vm1562, %v833, 0.0
      %v1571 = vsel %vm1563, %v834, 0.0
      %v1572 = vsel %vm1564, %v835, 0.0
      %v1573 = vsel %vm1565, %v836, 0.0
      %v1574 = vsel %vm441, %v1566, 0.0
      %1575 = vadd.xlane.f32.xlu0 %v1574
      %v1576 = vpop.xlane.xlu0 %1575
      %v1577 = vsel %vm441, %v1567, 0.0
      %1578 = vadd.xlane.f32.xlu0 %v1577
      %v1579 = vpop.xlane.xlu0 %1578
      %v1580 = vsel %vm441, %v1568, 0.0
      %1581 = vadd.xlane.f32.xlu0 %v1580
      %v1582 = vpop.xlane.xlu0 %1581
      %v1583 = vsel %vm441, %v1569, 0.0
      %1584 = vadd.xlane.f32.xlu0 %v1583
      %v1585 = vpop.xlane.xlu0 %1584
      %v1586 = vsel %vm441, %v1570, 0.0
      %1587 = vadd.xlane.f32.xlu0 %v1586
      %v1588 = vpop.xlane.xlu0 %1587
      %v1589 = vsel %vm441, %v1571, 0.0
      %1590 = vadd.xlane.f32.xlu0 %v1589
      %v1591 = vpop.xlane.xlu0 %1590
      %v1592 = vsel %vm441, %v1572, 0.0
      %1593 = vadd.xlane.f32.xlu0 %v1592
      %v1594 = vpop.xlane.xlu0 %1593
      %v1595 = vsel %vm441, %v1573, 0.0
      %1596 = vadd.xlane.f32.xlu0 %v1595
      %v1597 = vpop.xlane.xlu0 %1596
      %v1598 = vsel %vm1558, %v837, 0.0
      %v1599 = vsel %vm1559, %v838, 0.0
      %v1600 = vsel %vm1560, %v839, 0.0
      %v1601 = vsel %vm1561, %v840, 0.0
      %v1602 = vsel %vm1562, %v841, 0.0
      %v1603 = vsel %vm1563, %v842, 0.0
      %v1604 = vsel %vm1564, %v843, 0.0
      %v1605 = vsel %vm1565, %v844, 0.0
      %v1606 = vsel %vm441, %v1598, 0.0
      %1607 = vadd.xlane.f32.xlu0 %v1606
      %v1608 = vpop.xlane.xlu0 %1607
      %v1609 = vsel %vm441, %v1599, 0.0
      %1610 = vadd.xlane.f32.xlu0 %v1609
      %v1611 = vpop.xlane.xlu0 %1610
      %v1612 = vsel %vm441, %v1600, 0.0
      %1613 = vadd.xlane.f32.xlu0 %v1612
      %v1614 = vpop.xlane.xlu0 %1613
      %v1615 = vsel %vm441, %v1601, 0.0
      %1616 = vadd.xlane.f32.xlu0 %v1615
      %v1617 = vpop.xlane.xlu0 %1616
      %v1618 = vsel %vm441, %v1602, 0.0
      %1619 = vadd.xlane.f32.xlu0 %v1618
      %v1620 = vpop.xlane.xlu0 %1619
      %v1621 = vsel %vm441, %v1603, 0.0
      %1622 = vadd.xlane.f32.xlu0 %v1621
      %v1623 = vpop.xlane.xlu0 %1622
      %v1624 = vsel %vm441, %v1604, 0.0
      %1625 = vadd.xlane.f32.xlu0 %v1624
      %v1626 = vpop.xlane.xlu0 %1625
      %v1627 = vsel %vm441, %v1605, 0.0
      %1628 = vadd.xlane.f32.xlu0 %v1627
      %v1629 = vpop.xlane.xlu0 %1628
      %vm1630 = vcmp.eq.s32.totalorder %v854, 4
      %vm1631 = vcmp.eq.s32.totalorder %v855, 4
      %vm1632 = vcmp.eq.s32.totalorder %v856, 4
      %vm1633 = vcmp.eq.s32.totalorder %v857, 4
      %vm1634 = vcmp.eq.s32.totalorder %v858, 4
      %vm1635 = vcmp.eq.s32.totalorder %v859, 4
      %vm1636 = vcmp.eq.s32.totalorder %v860, 4
      %vm1637 = vcmp.eq.s32.totalorder %v861, 4
      %vm1638 = vcmp.eq.s32.totalorder %v862, 4
      %vm1639 = vcmp.eq.s32.totalorder %v863, 4
      %vm1640 = vcmp.eq.s32.totalorder %v864, 4
      %vm1641 = vcmp.eq.s32.totalorder %v865, 4
      %vm1642 = vcmp.eq.s32.totalorder %v866, 4
      %vm1643 = vcmp.eq.s32.totalorder %v867, 4
      %vm1644 = vcmp.eq.s32.totalorder %v868, 4
      %vm1645 = vcmp.eq.s32.totalorder %v869, 4
      %v1646 = vsel %vm1630, %v1576, 0.0
      %v1647 = vsel %vm1631, %v1576, 0.0
      %v1648 = vsel %vm1632, %v1579, 0.0
      %v1649 = vsel %vm1633, %v1579, 0.0
      %v1650 = vsel %vm1634, %v1582, 0.0
      %v1651 = vsel %vm1635, %v1582, 0.0
      %v1652 = vsel %vm1636, %v1585, 0.0
      %v1653 = vsel %vm1637, %v1585, 0.0
      %v1654 = vsel %vm1638, %v1588, 0.0
      %v1655 = vsel %vm1639, %v1588, 0.0
      %v1656 = vsel %vm1640, %v1591, 0.0
      %v1657 = vsel %vm1641, %v1591, 0.0
      %v1658 = vsel %vm1642, %v1594, 0.0
      %v1659 = vsel %vm1643, %v1594, 0.0
      %v1660 = vsel %vm1644, %v1597, 0.0
      %v1661 = vsel %vm1645, %v1597, 0.0
      %v1662 = vadd.f32 %v1494, %v1646
      %v1663 = vadd.f32 %v1495, %v1647
      %v1664 = vadd.f32 %v1496, %v1648
      %v1665 = vadd.f32 %v1497, %v1649
      %v1666 = vadd.f32 %v1498, %v1650
      %v1667 = vadd.f32 %v1499, %v1651
      %v1668 = vadd.f32 %v1500, %v1652
      %v1669 = vadd.f32 %v1501, %v1653
      %v1670 = vadd.f32 %v1502, %v1654
      %v1671 = vadd.f32 %v1503, %v1655
      %v1672 = vadd.f32 %v1504, %v1656
      %v1673 = vadd.f32 %v1505, %v1657
      %v1674 = vadd.f32 %v1506, %v1658
      %v1675 = vadd.f32 %v1507, %v1659
      %v1676 = vadd.f32 %v1508, %v1660
      %v1677 = vadd.f32 %v1509, %v1661
      %v1678 = vsel %vm1630, %v1608, 0.0
      %v1679 = vsel %vm1631, %v1608, 0.0
      %v1680 = vsel %vm1632, %v1611, 0.0
      %v1681 = vsel %vm1633, %v1611, 0.0
      %v1682 = vsel %vm1634, %v1614, 0.0
      %v1683 = vsel %vm1635, %v1614, 0.0
      %v1684 = vsel %vm1636, %v1617, 0.0
      %v1685 = vsel %vm1637, %v1617, 0.0
      %v1686 = vsel %vm1638, %v1620, 0.0
      %v1687 = vsel %vm1639, %v1620, 0.0
      %v1688 = vsel %vm1640, %v1623, 0.0
      %v1689 = vsel %vm1641, %v1623, 0.0
      %v1690 = vsel %vm1642, %v1626, 0.0
      %v1691 = vsel %vm1643, %v1626, 0.0
      %v1692 = vsel %vm1644, %v1629, 0.0
      %v1693 = vsel %vm1645, %v1629, 0.0
      %v1694 = vadd.f32 %v1526, %v1678
      %v1695 = vadd.f32 %v1527, %v1679
      %v1696 = vadd.f32 %v1528, %v1680
      %v1697 = vadd.f32 %v1529, %v1681
      %v1698 = vadd.f32 %v1530, %v1682
      %v1699 = vadd.f32 %v1531, %v1683
      %v1700 = vadd.f32 %v1532, %v1684
      %v1701 = vadd.f32 %v1533, %v1685
      %v1702 = vadd.f32 %v1534, %v1686
      %v1703 = vadd.f32 %v1535, %v1687
      %v1704 = vadd.f32 %v1536, %v1688
      %v1705 = vadd.f32 %v1537, %v1689
      %v1706 = vadd.f32 %v1538, %v1690
      %v1707 = vadd.f32 %v1539, %v1691
      %v1708 = vadd.f32 %v1540, %v1692
      %v1709 = vadd.f32 %v1541, %v1693
      %v1710 = vadd.f32 %v1662, %v1664
      %v1711 = vadd.f32 %v1710, %v1666
      %v1712 = vadd.f32 %v1711, %v1668
      %v1713 = vadd.f32 %v1712, %v1670
      %v1714 = vadd.f32 %v1713, %v1672
      %v1715 = vadd.f32 %v1714, %v1674
      %v1716 = vadd.f32 %v1715, %v1676
      %v1717 = vrot.slane %v1716, 4
      %v1718 = vadd.f32 %v1716, %v1717
      %v1719 = vrot.slane %v1718, 2
      %v1720 = vadd.f32 %v1718, %v1719
      %v1721 = vrot.slane %v1720, 1
      %v1722 = vadd.f32 %v1720, %v1721
      %v1723 = vadd.f32 %v1663, %v1665
      %v1724 = vadd.f32 %v1723, %v1667
      %v1725 = vadd.f32 %v1724, %v1669
      %v1726 = vadd.f32 %v1725, %v1671
      %v1727 = vadd.f32 %v1726, %v1673
      %v1728 = vadd.f32 %v1727, %v1675
      %v1729 = vadd.f32 %v1728, %v1677
      %v1730 = vrot.slane %v1729, 4
      %v1731 = vadd.f32 %v1729, %v1730
      %v1732 = vrot.slane %v1731, 2
      %v1733 = vadd.f32 %v1731, %v1732
      %v1734 = vrot.slane %v1733, 1
      %v1735 = vadd.f32 %v1733, %v1734
      %v1736 = vadd.f32 %v1694, %v1696
      %v1737 = vadd.f32 %v1736, %v1698
      %v1738 = vadd.f32 %v1737, %v1700
      %v1739 = vadd.f32 %v1738, %v1702
      %v1740 = vadd.f32 %v1739, %v1704
      %v1741 = vadd.f32 %v1740, %v1706
      %v1742 = vadd.f32 %v1741, %v1708
      %v1743 = vrot.slane %v1742, 4
      %v1744 = vadd.f32 %v1742, %v1743
      %v1745 = vrot.slane %v1744, 2
      %v1746 = vadd.f32 %v1744, %v1745
      %v1747 = vrot.slane %v1746, 1
      %v1748 = vadd.f32 %v1746, %v1747
      %v1749 = vadd.f32 %v1695, %v1697
      %v1750 = vadd.f32 %v1749, %v1699
      %v1751 = vadd.f32 %v1750, %v1701
      %v1752 = vadd.f32 %v1751, %v1703
      %v1753 = vadd.f32 %v1752, %v1705
      %v1754 = vadd.f32 %v1753, %v1707
      %v1755 = vadd.f32 %v1754, %v1709
      %v1756 = vrot.slane %v1755, 4
      %v1757 = vadd.f32 %v1755, %v1756
      %v1758 = vrot.slane %v1757, 2
      %v1759 = vadd.f32 %v1757, %v1758
      %v1760 = vrot.slane %v1759, 1
      %v1761 = vadd.f32 %v1759, %v1760
      %v1762 = vmul.f32 %v1722, %v1748
      %v1763 = vmul.f32 %v1735, %v1761
      %vm1764 = vcmask 1040384
      %v1765 = vsel %vm1764, %v1762, 0.0
      %v1766 = vsel %vm1764, %v1763, 0.0
      %v1767 = vadd.f32 %v1765, %v1766
      %1768 = vadd.xlane.f32.xlu0 %v1767
      %v1769 = vpop.xlane.xlu0 %1768
      %v1770 = vrot.slane %v1769, 4
      %v1771 = vadd.f32 %v1769, %v1770
      %v1772 = vrot.slane %v1771, 2
      %v1773 = vadd.f32 %v1771, %v1772
      %v1774 = vrot.slane %v1773, 1
      %v1775 = vadd.f32 %v1773, %v1774
      %s1776 = vtos %v1775
      %s1777 = smul.f32 %s1776, -1.4285715
      %1778 = vadd.xlane.f32.xlu0 %v606
      %v1779 = vpop.xlane.xlu0 %1778
      %v1780 = vrot.slane %v1779, 4
      %v1781 = vadd.f32 %v1779, %v1780
      %v1782 = vrot.slane %v1781, 2
      %v1783 = vadd.f32 %v1781, %v1782
      %v1784 = vrot.slane %v1783, 1
      %v1785 = vadd.f32 %v1783, %v1784
      %s1786 = vtos %v1785
      %vm1787 = vcmask 7168
      %v1788 = vsel %vm1787, %v217, 0.0
      %v1789 = vsel %vm1787, %v218, 0.0
      %v1790 = vadd.f32 %v1788, %v1789
      %v1791 = vsel %vm1787, %v219, 0.0
      %v1792 = vadd.f32 %v1790, %v1791
      %v1793 = vsel %vm1787, %v220, 0.0
      %v1794 = vadd.f32 %v1792, %v1793
      %v1795 = vsel %vm1787, %v221, 0.0
      %v1796 = vadd.f32 %v1794, %v1795
      %v1797 = vsel %vm1787, %v222, 0.0
      %v1798 = vadd.f32 %v1796, %v1797
      %v1799 = vsel %vm1787, %v223, 0.0
      %v1800 = vadd.f32 %v1798, %v1799
      %v1801 = vsel %vm1787, %v224, 0.0
      %v1802 = vadd.f32 %v1800, %v1801
      %1803 = vadd.xlane.f32.xlu0 %v1802
      %v1804 = vpop.xlane.xlu0 %1803
      %v1805 = vrot.slane %v1804, 4
      %v1806 = vadd.f32 %v1804, %v1805
      %v1807 = vrot.slane %v1806, 2
      %v1808 = vadd.f32 %v1806, %v1807
      %v1809 = vrot.slane %v1808, 1
      %v1810 = vadd.f32 %v1808, %v1809
      %s1811 = vtos %v1810
      %vm1812 = vcmp.eq.s32.totalorder %v236, 0
      %vm1813 = vcmp.eq.s32.totalorder %v236, 1
      %vm1814 = vcmp.eq.s32.totalorder %v236, 2
      %v1815 = vstv %s1811
      %v1816 = vsel %vm1814, %v1815, 0.0
      %v1817 = vstv %s1786
      %v1818 = vsel %vm1813, %v1817, %v1816
      %v1819 = vstv %s1777
      %v1820 = vsel %vm1812, %v1819, %v1818
      %1821 = vst [vmem:[%s207] sm:$0x1] %v1820
      %p1822 = scmp.lt.s32.totalorder %s21, 1
      %s1823 = scalar_select %p1822, %s21, 1
      %s1824 = scalar_lea.vmem %s4, %s1823
      // Predicated region
      $region33: #{pixel_contrastive_loss.5} parent=31 // pred_check
        %p1825 = pneg %p117
      $region34: #{pixel_contrastive_loss.5} parent=31 // pred_check_branch
        %1827 = sbr.rel (%p1825) target = $region36
      $region35: #{pixel_contrastive_loss.5} parent=31 // pred_region
        _
      $region36: #{pixel_contrastive_loss.5} parent=31 // pred_fallthru
        _
    $region32: #{pixel_contrastive_loss.5} parent=5 // pred_fallthru
      _
    %p1828 = scmp.le.s32.totalorder 2, %s16
    // Predicated region
    $region37: #{pixel_contrastive_loss.5} parent=5 // pred_check
      %p1829 = pneg %p1828
    $region38: #{pixel_contrastive_loss.5} parent=5 // pred_check_branch
      %1831 = sbr.rel (%p1829) target = $region40
    $region39: #{pixel_contrastive_loss.5} parent=5 // pred_region
      %s1832 = ssub.s32 %s16, 2
      // Predicated region
      $region41: #{pixel_contrastive_loss.5} parent=39 // pred_check
        %p1833 = pneg %p123
      $region42: #{pixel_contrastive_loss.5} parent=39 // pred_check_branch
        %1835 = sbr.rel (%p1833) target = $region44
      $region43: #{pixel_contrastive_loss.5} parent=39 // pred_region
        %p1836 = scmp.lt.s32.totalorder %s22, 1
        %s1837 = scalar_select %p1836, %s22, 1
        %s1838 = scalar_lea.vmem %s4, %s1837
      $region44: #{pixel_contrastive_loss.5} parent=39 // pred_fallthru
        _
    $region40: #{pixel_contrastive_loss.5} parent=5 // pred_fallthru
      _
  $region6: #{pixel_contrastive_loss.5} parent=0 // loop_footer
    %s20 = sadd.s32 1, %s16
  $region7: #{pixel_contrastive_loss.5} parent=0 // loop_footer_branch
    %15 = sbr.rel target = $region3
  $region8: #{pixel_contrastive_loss.5} parent=0 // loop_exit
    _

</llo_original>
